<compile_context>
chip_gen: v7x
topology: tpu7x:2x2x1
jax: 0.10.0
libtpu: 0.0.40
codegen_flags: <defaults>
</compile_context>

<pallas_src>
import functools

import jax
import jax.numpy as jnp
from jax.experimental import pallas as pl
from jax.experimental.pallas import tpu as pltpu

BN_EPS = 1e-5
KSIZE = 3


def _make_conv_bn_relu_kernel(H, Wp, C, dilation, n_out):
    """Fused dilated conv (9 tap matmuls on MXU) + folded-BN bias + ReLU."""
    M = H * Wp  # output rows, laid out with padded row stride Wp (junk cols sliced off later)

    def kernel(x_ref, w_ref, b_ref, o_ref):
        x = x_ref[0]          # (Lp, C)      zero-padded, spatially-flattened input (VMEM)
        w = w_ref[...]        # (9*C, n_out) folded conv+BN weights, Cout zero-padded to n_out
        acc = jnp.zeros((M, n_out), jnp.float32)
        for ki in range(KSIZE):
            for kj in range(KSIZE):
                tap = ki * KSIZE + kj
                off = (ki * Wp + kj) * dilation          # flat tap offset, static
                xs = x[off:off + M, :]                   # (M, C) static slice, stays in VMEM
                wt = w[tap * C:(tap + 1) * C, :]         # (C, n_out)
                acc = acc + jnp.dot(xs, wt, preferred_element_type=jnp.float32)
        y = acc + b_ref[...]                             # (M, n_out) + (1, n_out) folded BN bias
        o_ref[0] = jnp.maximum(y, 0.0)                   # ReLU, lane-dense (128-wide) store

    return kernel


def dilated_conv_block(x, conv_w, conv_b, bn_gamma, bn_beta, bn_mean, bn_var, *, dilation):
    """x: (B, Cin, H, W) f32 NCHW -> (B, Cout, H, W) f32. Eval-mode BatchNorm."""
    B, C, H, W = x.shape
    Cout = conv_w.shape[0]
    d = dilation
    Wp = W + 2 * d
    Hp = H + 2 * d
    n_out = max(128, -(-Cout // 128) * 128)              # lane-dense output width

    # ---- fold BatchNorm (eval) into conv weight/bias (tiny one-time arithmetic) ----
    s = bn_gamma * jax.lax.rsqrt(bn_var + BN_EPS)        # (Cout,)
    w_fold = conv_w * s[:, None, None, None]             # (Cout, C, 3, 3)
    b_fold = (conv_b - bn_mean) * s + bn_beta            # (Cout,)
    w_mat = jnp.transpose(w_fold, (2, 3, 1, 0)).reshape(KSIZE * KSIZE * C, Cout)
    w_mat = jnp.pad(w_mat, ((0, 0), (0, n_out - Cout)))  # zero columns -> relu(0)=0, sliced off
    b_mat = jnp.pad(b_fold, (0, n_out - Cout)).reshape(1, n_out)

    # ---- NHWC + spatial zero-pad (extra bottom row keeps every flat tap offset in
    #      range), then flatten the padded spatial dims to one axis ----
    x_nhwc = jnp.transpose(x, (0, 2, 3, 1))
    x_pad = jnp.pad(x_nhwc, ((0, 0), (d, d + 1), (d, d), (0, 0)))
    Lp = (Hp + 1) * Wp
    x_flat = x_pad.reshape(B, Lp, C)

    M = H * Wp
    out = pl.pallas_call(
        _make_conv_bn_relu_kernel(H, Wp, C, d, n_out),
        out_shape=jax.ShapeDtypeStruct((B, M, n_out), jnp.float32),
        grid=(B,),
        in_specs=[
            pl.BlockSpec((1, Lp, C), lambda b: (b, 0, 0)),
            pl.BlockSpec((KSIZE * KSIZE * C, n_out), lambda b: (0, 0)),
            pl.BlockSpec((1, n_out), lambda b: (0, 0)),
        ],
        out_specs=pl.BlockSpec((1, M, n_out), lambda b: (b, 0, 0)),
        compiler_params=pltpu.CompilerParams(dimension_semantics=("parallel",)),
    )(x_flat, w_mat, b_mat)

    # ---- un-stride: (B, H*Wp, n_out) -> (B, H, Wp, n_out) -> valid window -> NCHW ----
    out = out.reshape(B, H, Wp, n_out)[:, :, :W, :Cout]
    return jnp.transpose(out, (0, 3, 1, 2))


def _reference(x, conv_w, conv_b, g, beta, mu, var, dilation):
    """Plain-JAX reference matching the PyTorch module (eval mode)."""
    y = jax.lax.conv_general_dilated(
        x, conv_w, window_strides=(1, 1),
        padding=((dilation, dilation), (dilation, dilation)),
        rhs_dilation=(dilation, dilation),
        dimension_numbers=("NCHW", "OIHW", "NCHW"))
    y = y + conv_b[None, :, None, None]
    scale = (g / jnp.sqrt(var + BN_EPS))[None, :, None, None]
    y = (y - mu[None, :, None, None]) * scale + beta[None, :, None, None]
    return jnp.maximum(y, 0.0)


if __name__ == "__main__":
    B, CIN, COUT, H, W, DIL = 2, 4, 32, 16, 16, 2

    key = jax.random.PRNGKey(0)
    kx, kw, kb, kg, kbe, km, kv = jax.random.split(key, 7)
    x = jax.random.normal(kx, (B, CIN, H, W), dtype=jnp.float32)
    conv_w = 0.1 * jax.random.normal(kw, (COUT, CIN, KSIZE, KSIZE), dtype=jnp.float32)
    conv_b = 0.1 * jax.random.normal(kb, (COUT,), dtype=jnp.float32)
    bn_gamma = 1.0 + 0.1 * jax.random.normal(kg, (COUT,), dtype=jnp.float32)
    bn_beta = 0.1 * jax.random.normal(kbe, (COUT,), dtype=jnp.float32)
    bn_mean = 0.1 * jax.random.normal(km, (COUT,), dtype=jnp.float32)
    bn_var = 0.5 + jax.random.uniform(kv, (COUT,), dtype=jnp.float32)

    fwd = jax.jit(functools.partial(dilated_conv_block, dilation=DIL))
    out = fwd(x, conv_w, conv_b, bn_gamma, bn_beta, bn_mean, bn_var)
    jax.block_until_ready(out)

    assert out.shape == (B, COUT, H, W)
    assert bool(jnp.all(jnp.isfinite(out)))

    ref = _reference(x, conv_w, conv_b, bn_gamma, bn_beta, bn_mean, bn_var, DIL)
    max_err = float(jnp.max(jnp.abs(out - ref)))
    assert max_err < 1e-3, f"max abs error vs reference: {max_err}"

    print("KERNEL_OK")
</pallas_src>

<mosaic_0001>
module attributes {stable_mosaic.version = 11 : i64} {
  func.func @kernel(%arg0: i32, %arg1: memref<1x420x4xf32, #tpu.memory_space<vmem>>, %arg2: memref<36x128xf32, #tpu.memory_space<vmem>>, %arg3: memref<1x128xf32, #tpu.memory_space<vmem>>, %arg4: memref<1x320x128xf32, #tpu.memory_space<vmem>>) attributes {dimension_semantics = [#tpu.dimension_semantics<parallel>], iteration_bounds = array<i64: 2>, scalar_prefetch = 0 : i64, scratch_operands = 0 : i64, tpu.core_type = #tpu.core_type<tc>, window_params = [{transform_indices = @transform_0, window_bounds = array<i64: 1, 420, 4>}, {pipeline_mode = #tpu.pipeline_mode<synchronous>, transform_indices = @transform_1, window_bounds = array<i64: 36, 128>}, {pipeline_mode = #tpu.pipeline_mode<synchronous>, transform_indices = @transform_2, window_bounds = array<i64: 1, 128>}, {transform_indices = @transform_3, window_bounds = array<i64: 1, 320, 128>}]} {
    %c0 = arith.constant 0 : index
    %c0_0 = arith.constant 0 : index
    %c0_1 = arith.constant 0 : index
    %0 = vector.load %arg1[%c0, %c0_0, %c0_1] : memref<1x420x4xf32, #tpu.memory_space<vmem>>, vector<1x420x4xf32>
    %1 = vector.shape_cast %0 : vector<1x420x4xf32> to vector<420x4xf32>
    %c0_2 = arith.constant 0 : index
    %c0_3 = arith.constant 0 : index
    %2 = vector.load %arg2[%c0_2, %c0_3] : memref<36x128xf32, #tpu.memory_space<vmem>>, vector<36x128xf32>
    %cst = arith.constant 0.000000e+00 : f32
    %3 = vector.broadcast %cst : f32 to vector<320x128xf32>
    %4 = vector.extract_strided_slice %1 {offsets = [0, 0], sizes = [320, 4], strides = [1, 1]} : vector<420x4xf32> to vector<320x4xf32>
    %5 = vector.extract_strided_slice %2 {offsets = [0, 0], sizes = [4, 128], strides = [1, 1]} : vector<36x128xf32> to vector<4x128xf32>
    %cst_4 = arith.constant dense<0.000000e+00> : vector<320x128xf32>
    %6 = tpu.matmul %4, %5, %cst_4 {dimension_numbers = #tpu.dot_dimension_numbers<[1], [0], [0], [1], [0, 0, 1, 1], [], []>} : vector<320x4xf32>, vector<4x128xf32>, vector<320x128xf32> -> vector<320x128xf32>
    %7 = arith.addf %3, %6 : vector<320x128xf32>
    %8 = vector.extract_strided_slice %1 {offsets = [2, 0], sizes = [320, 4], strides = [1, 1]} : vector<420x4xf32> to vector<320x4xf32>
    %9 = vector.extract_strided_slice %2 {offsets = [4, 0], sizes = [4, 128], strides = [1, 1]} : vector<36x128xf32> to vector<4x128xf32>
    %cst_5 = arith.constant dense<0.000000e+00> : vector<320x128xf32>
    %10 = tpu.matmul %8, %9, %cst_5 {dimension_numbers = #tpu.dot_dimension_numbers<[1], [0], [0], [1], [0, 0, 1, 1], [], []>} : vector<320x4xf32>, vector<4x128xf32>, vector<320x128xf32> -> vector<320x128xf32>
    %11 = arith.addf %7, %10 : vector<320x128xf32>
    %12 = vector.extract_strided_slice %1 {offsets = [4, 0], sizes = [320, 4], strides = [1, 1]} : vector<420x4xf32> to vector<320x4xf32>
    %13 = vector.extract_strided_slice %2 {offsets = [8, 0], sizes = [4, 128], strides = [1, 1]} : vector<36x128xf32> to vector<4x128xf32>
    %cst_6 = arith.constant dense<0.000000e+00> : vector<320x128xf32>
    %14 = tpu.matmul %12, %13, %cst_6 {dimension_numbers = #tpu.dot_dimension_numbers<[1], [0], [0], [1], [0, 0, 1, 1], [], []>} : vector<320x4xf32>, vector<4x128xf32>, vector<320x128xf32> -> vector<320x128xf32>
    %15 = arith.addf %11, %14 : vector<320x128xf32>
    %16 = vector.extract_strided_slice %1 {offsets = [40, 0], sizes = [320, 4], strides = [1, 1]} : vector<420x4xf32> to vector<320x4xf32>
    %17 = vector.extract_strided_slice %2 {offsets = [12, 0], sizes = [4, 128], strides = [1, 1]} : vector<36x128xf32> to vector<4x128xf32>
    %cst_7 = arith.constant dense<0.000000e+00> : vector<320x128xf32>
    %18 = tpu.matmul %16, %17, %cst_7 {dimension_numbers = #tpu.dot_dimension_numbers<[1], [0], [0], [1], [0, 0, 1, 1], [], []>} : vector<320x4xf32>, vector<4x128xf32>, vector<320x128xf32> -> vector<320x128xf32>
    %19 = arith.addf %15, %18 : vector<320x128xf32>
    %20 = vector.extract_strided_slice %1 {offsets = [42, 0], sizes = [320, 4], strides = [1, 1]} : vector<420x4xf32> to vector<320x4xf32>
    %21 = vector.extract_strided_slice %2 {offsets = [16, 0], sizes = [4, 128], strides = [1, 1]} : vector<36x128xf32> to vector<4x128xf32>
    %cst_8 = arith.constant dense<0.000000e+00> : vector<320x128xf32>
    %22 = tpu.matmul %20, %21, %cst_8 {dimension_numbers = #tpu.dot_dimension_numbers<[1], [0], [0], [1], [0, 0, 1, 1], [], []>} : vector<320x4xf32>, vector<4x128xf32>, vector<320x128xf32> -> vector<320x128xf32>
    %23 = arith.addf %19, %22 : vector<320x128xf32>
    %24 = vector.extract_strided_slice %1 {offsets = [44, 0], sizes = [320, 4], strides = [1, 1]} : vector<420x4xf32> to vector<320x4xf32>
    %25 = vector.extract_strided_slice %2 {offsets = [20, 0], sizes = [4, 128], strides = [1, 1]} : vector<36x128xf32> to vector<4x128xf32>
    %cst_9 = arith.constant dense<0.000000e+00> : vector<320x128xf32>
    %26 = tpu.matmul %24, %25, %cst_9 {dimension_numbers = #tpu.dot_dimension_numbers<[1], [0], [0], [1], [0, 0, 1, 1], [], []>} : vector<320x4xf32>, vector<4x128xf32>, vector<320x128xf32> -> vector<320x128xf32>
    %27 = arith.addf %23, %26 : vector<320x128xf32>
    %28 = vector.extract_strided_slice %1 {offsets = [80, 0], sizes = [320, 4], strides = [1, 1]} : vector<420x4xf32> to vector<320x4xf32>
    %29 = vector.extract_strided_slice %2 {offsets = [24, 0], sizes = [4, 128], strides = [1, 1]} : vector<36x128xf32> to vector<4x128xf32>
    %cst_10 = arith.constant dense<0.000000e+00> : vector<320x128xf32>
    %30 = tpu.matmul %28, %29, %cst_10 {dimension_numbers = #tpu.dot_dimension_numbers<[1], [0], [0], [1], [0, 0, 1, 1], [], []>} : vector<320x4xf32>, vector<4x128xf32>, vector<320x128xf32> -> vector<320x128xf32>
    %31 = arith.addf %27, %30 : vector<320x128xf32>
    %32 = vector.extract_strided_slice %1 {offsets = [82, 0], sizes = [320, 4], strides = [1, 1]} : vector<420x4xf32> to vector<320x4xf32>
    %33 = vector.extract_strided_slice %2 {offsets = [28, 0], sizes = [4, 128], strides = [1, 1]} : vector<36x128xf32> to vector<4x128xf32>
    %cst_11 = arith.constant dense<0.000000e+00> : vector<320x128xf32>
    %34 = tpu.matmul %32, %33, %cst_11 {dimension_numbers = #tpu.dot_dimension_numbers<[1], [0], [0], [1], [0, 0, 1, 1], [], []>} : vector<320x4xf32>, vector<4x128xf32>, vector<320x128xf32> -> vector<320x128xf32>
    %35 = arith.addf %31, %34 : vector<320x128xf32>
    %36 = vector.extract_strided_slice %1 {offsets = [84, 0], sizes = [320, 4], strides = [1, 1]} : vector<420x4xf32> to vector<320x4xf32>
    %37 = vector.extract_strided_slice %2 {offsets = [32, 0], sizes = [4, 128], strides = [1, 1]} : vector<36x128xf32> to vector<4x128xf32>
    %cst_12 = arith.constant dense<0.000000e+00> : vector<320x128xf32>
    %38 = tpu.matmul %36, %37, %cst_12 {dimension_numbers = #tpu.dot_dimension_numbers<[1], [0], [0], [1], [0, 0, 1, 1], [], []>} : vector<320x4xf32>, vector<4x128xf32>, vector<320x128xf32> -> vector<320x128xf32>
    %39 = arith.addf %35, %38 : vector<320x128xf32>
    %c0_13 = arith.constant 0 : index
    %c0_14 = arith.constant 0 : index
    %40 = vector.load %arg3[%c0_13, %c0_14] : memref<1x128xf32, #tpu.memory_space<vmem>>, vector<1x128xf32>
    %41 = vector.broadcast %40 : vector<1x128xf32> to vector<320x128xf32>
    %42 = arith.addf %39, %41 : vector<320x128xf32>
    %cst_15 = arith.constant 0.000000e+00 : f32
    %43 = vector.broadcast %cst_15 : f32 to vector<320x128xf32>
    %44 = arith.maximumf %42, %43 : vector<320x128xf32>
    %c0_16 = arith.constant 0 : index
    %c0_17 = arith.constant 0 : index
    %c0_18 = arith.constant 0 : index
    %45 = vector.load %arg4[%c0_16, %c0_17, %c0_18] : memref<1x320x128xf32, #tpu.memory_space<vmem>>, vector<1x320x128xf32>
    %46 = vector.shape_cast %45 : vector<1x320x128xf32> to vector<320x128xf32>
    %47 = vector.shape_cast %44 : vector<320x128xf32> to vector<1x320x128xf32>
    tpu.vector_store %arg4[%c0_16, %c0_17, %c0_18], %47 {strides = array<i32>} : memref<1x320x128xf32, #tpu.memory_space<vmem>>, vector<1x320x128xf32>,
    return
  }
  func.func @transform_0(%arg0: i32) -> (i32, i32, i32) {
    %c0_i32 = arith.constant 0 : i32
    %c0_i32_0 = arith.constant 0 : i32
    %c0_i32_1 = arith.constant 0 : i32
    return %arg0, %c0_i32, %c0_i32_0 : i32, i32, i32
  }
  func.func @transform_1(%arg0: i32) -> (i32, i32) {
    %c0_i32 = arith.constant 0 : i32
    %c0_i32_0 = arith.constant 0 : i32
    %c0_i32_1 = arith.constant 0 : i32
    return %c0_i32, %c0_i32_0 : i32, i32
  }
  func.func @transform_2(%arg0: i32) -> (i32, i32) {
    %c0_i32 = arith.constant 0 : i32
    %c0_i32_0 = arith.constant 0 : i32
    %c0_i32_1 = arith.constant 0 : i32
    return %c0_i32, %c0_i32_0 : i32, i32
  }
  func.func @transform_3(%arg0: i32) -> (i32, i32, i32) {
    %c0_i32 = arith.constant 0 : i32
    %c0_i32_0 = arith.constant 0 : i32
    %c0_i32_1 = arith.constant 0 : i32
    return %arg0, %c0_i32, %c0_i32_0 : i32, i32, i32
  }
}

</mosaic_0001>

<llo_original>
// kernel: dilated_conv_block.1
$region0: #{dilated_conv_block.1}
  #allocation0 [shape = 'u32[]', space=smem, size = 0x4, offset = 0x4, fixed_abs, tag = 'smem constant byte address 0x4 - core index']
  #allocation1 [shape = 'u32[144,128]{1,0:T(1,128)}', space=vmem, size = 0x12000, scoped, tag = 'internal scratch']
  %s0 = inlined_call_operand.vmem [shape: f32[2,420,4], index: 0, kind: input, shape index: {}]
  %s1 = inlined_call_operand.vmem [shape: f32[36,128], index: 1, kind: input, shape index: {}]
  %s2 = inlined_call_operand.vmem [shape: f32[1,128], index: 2, kind: input, shape index: {}]
  %s3 = inlined_call_operand.vmem [shape: f32[2,320,128], index: 3, kind: output, shape index: {}]
  %s4 = sld [smem:[#allocation0]]
  $region45: #{dilated_conv_block.1} parent=0
    _
  %s6 = ssub.s32 1, %s4
  %s7 = scalar_select 0, %s6, %s4
  loop: start=0, step=1, limit=4
  $region2: #{dilated_conv_block.1} parent=0 // loop_pre_header
    _
  $region3: #{dilated_conv_block.1} parent=0 // loop_header
    %s9 = sphi 0, %s13
    %p10 = scmp.ge.s32.totalorder %s9, 4
    %s19 = sphi 0, %s21
    %s22 = sphi 0, %s19
    %s23 = sphi 0, %s22
    %s39 = sphi 0, %s23
    %s43 = sphi 0, %s43
    %s45 = sphi 0, %s43
    %s46 = sphi 0, %s45
    %s60 = sphi 0, %s46
    %s64 = sphi 0, %s64
    %s66 = sphi 0, %s64
    %s67 = sphi 0, %s66
    %s81 = sphi 0, %s67
    %s87 = sphi 0, %s89
    %s90 = sphi 0, %s87
    %s91 = sphi 0, %s90
    %s107 = sphi 0, %s91
  $region4: #{dilated_conv_block.1} parent=0 // loop_header_branch
    %12 = sbr.rel (%p10) target = $region8
  $region5: #{dilated_conv_block.1} parent=0 // loop_body
    %s14 = ssub.s32 %s9, 1
    %s15 = ssub.s32 %s9, 2
    %s16 = sadd.s32 %s9, 1
    %s17 = ssub.s32 %s9, %s16
    %p18 = scmp.eq.s32.totalorder %s17, 0
    %s20 = sadd.s32 %s19, 1
    %s21 = scalar_select %p18, %s19, %s20
    %p24 = pneg %p18
    %p25 = scmp.eq.s32.totalorder %s9, 1
    %p26 = por %p24, %p25
    %p27 = scmp.ne.s32.totalorder %s19, %s22
    %p28 = scmp.eq.s32.totalorder %s9, 0
    %p29 = por %p27, %p28
    %p30 = scmp.ne.s32.totalorder %s19, %s22
    %p31 = scmp.eq.s32.totalorder %s14, 1
    %p32 = por %p30, %p31
    %p33 = scmp.ne.s32.totalorder %s22, %s23
    %p34 = scmp.eq.s32.totalorder %s14, 0
    %p35 = por %p33, %p34
    %p36 = scmp.ne.s32.totalorder %s22, %s23
    %p37 = scmp.eq.s32.totalorder %s15, 1
    %p38 = por %p36, %p37
    %p40 = scmp.ne.s32.totalorder %s23, %s39
    %p41 = scmp.eq.s32.totalorder %s15, 0
    %p42 = por %p40, %p41
    %s44 = sadd.s32 %s43, 1
    %p47 = scmp.eq.s32.totalorder %s9, 1
    %p48 = scmp.ne.s32.totalorder %s43, %s45
    %p49 = scmp.eq.s32.totalorder %s9, 0
    %p50 = por %p48, %p49
    %p51 = scmp.ne.s32.totalorder %s43, %s45
    %p52 = scmp.eq.s32.totalorder %s14, 1
    %p53 = por %p51, %p52
    %p54 = scmp.ne.s32.totalorder %s45, %s46
    %p55 = scmp.eq.s32.totalorder %s14, 0
    %p56 = por %p54, %p55
    %p57 = scmp.ne.s32.totalorder %s45, %s46
    %p58 = scmp.eq.s32.totalorder %s15, 1
    %p59 = por %p57, %p58
    %p61 = scmp.ne.s32.totalorder %s46, %s60
    %p62 = scmp.eq.s32.totalorder %s15, 0
    %p63 = por %p61, %p62
    %s65 = sadd.s32 %s64, 1
    %p68 = scmp.eq.s32.totalorder %s9, 1
    %p69 = scmp.ne.s32.totalorder %s64, %s66
    %p70 = scmp.eq.s32.totalorder %s9, 0
    %p71 = por %p69, %p70
    %p72 = scmp.ne.s32.totalorder %s64, %s66
    %p73 = scmp.eq.s32.totalorder %s14, 1
    %p74 = por %p72, %p73
    %p75 = scmp.ne.s32.totalorder %s66, %s67
    %p76 = scmp.eq.s32.totalorder %s14, 0
    %p77 = por %p75, %p76
    %p78 = scmp.ne.s32.totalorder %s66, %s67
    %p79 = scmp.eq.s32.totalorder %s15, 1
    %p80 = por %p78, %p79
    %p82 = scmp.ne.s32.totalorder %s67, %s81
    %p83 = scmp.eq.s32.totalorder %s15, 0
    %p84 = por %p82, %p83
    %s85 = ssub.s32 %s9, %s16
    %p86 = scmp.eq.s32.totalorder %s85, 0
    %s88 = sadd.s32 %s87, 1
    %s89 = scalar_select %p86, %s87, %s88
    %p92 = pneg %p86
    %p93 = scmp.eq.s32.totalorder %s9, 1
    %p94 = por %p92, %p93
    %p95 = scmp.ne.s32.totalorder %s87, %s90
    %p96 = scmp.eq.s32.totalorder %s9, 0
    %p97 = por %p95, %p96
    %p98 = scmp.ne.s32.totalorder %s87, %s90
    %p99 = scmp.eq.s32.totalorder %s14, 1
    %p100 = por %p98, %p99
    %p101 = scmp.ne.s32.totalorder %s90, %s91
    %p102 = scmp.eq.s32.totalorder %s14, 0
    %p103 = por %p101, %p102
    %p104 = scmp.ne.s32.totalorder %s90, %s91
    %p105 = scmp.eq.s32.totalorder %s15, 1
    %p106 = por %p104, %p105
    %p108 = scmp.ne.s32.totalorder %s91, %s107
    %p109 = scmp.eq.s32.totalorder %s15, 0
    %p110 = por %p108, %p109
    %p111 = scmp.le.s32.totalorder 1, %s9
    %p112 = scmp.lt.s32.totalorder %s9, 3
    %p113 = pnand %p111, %p112
    %p114 = pneg %p113
    // Predicated region
    $region9: #{dilated_conv_block.1} parent=5 // pred_check
      _
    $region10: #{dilated_conv_block.1} parent=5 // pred_check_branch
      %116 = sbr.rel (%p113) target = $region12
    $region11: #{dilated_conv_block.1} parent=5 // pred_region
      %s117 = ssub.s32 %s9, 1
      // Predicated region
      $region13: #{dilated_conv_block.1} parent=11 // pred_check
        %p118 = pneg %p56
      $region14: #{dilated_conv_block.1} parent=11 // pred_check_branch
        %120 = sbr.rel (%p118) target = $region16
      $region15: #{dilated_conv_block.1} parent=11 // pred_region
        _
      $region16: #{dilated_conv_block.1} parent=11 // pred_fallthru
        _
      // Predicated region
      $region17: #{dilated_conv_block.1} parent=11 // pred_check
        %p121 = pneg %p77
      $region18: #{dilated_conv_block.1} parent=11 // pred_check_branch
        %123 = sbr.rel (%p121) target = $region20
      $region19: #{dilated_conv_block.1} parent=11 // pred_region
        _
      $region20: #{dilated_conv_block.1} parent=11 // pred_fallthru
        _
    $region12: #{dilated_conv_block.1} parent=5 // pred_fallthru
      _
    %p124 = scmp.lt.s32.totalorder %s9, 2
    // Predicated region
    $region21: #{dilated_conv_block.1} parent=5 // pred_check
      %p125 = pneg %p124
    $region22: #{dilated_conv_block.1} parent=5 // pred_check_branch
      %127 = sbr.rel (%p125) target = $region24
    $region23: #{dilated_conv_block.1} parent=5 // pred_region
      // Predicated region
      $region25: #{dilated_conv_block.1} parent=23 // pred_check
        %p128 = pneg %p29
      $region26: #{dilated_conv_block.1} parent=23 // pred_check_branch
        %130 = sbr.rel (%p128) target = $region28
      $region27: #{dilated_conv_block.1} parent=23 // pred_region
        %p131 = scmp.lt.s32.totalorder %s9, 1
        %s132 = scalar_select %p131, %s9, 1
        %s133 = smul.addr %s132, 53
        %s134 = smul.addr %s133, 8
        %s135 = scalar_lea.vmem %s0, %s134
      $region28: #{dilated_conv_block.1} parent=23 // pred_fallthru
        _
    $region24: #{dilated_conv_block.1} parent=5 // pred_fallthru
      _
    %p136 = scmp.le.s32.totalorder 1, %s9
    %p137 = scmp.lt.s32.totalorder %s9, 3
    %p138 = pnand %p136, %p137
    %p139 = pneg %p138
    // Predicated region
    $region29: #{dilated_conv_block.1} parent=5 // pred_check
      _
    $region30: #{dilated_conv_block.1} parent=5 // pred_check_branch
      %141 = sbr.rel (%p138) target = $region32
    $region31: #{dilated_conv_block.1} parent=5 // pred_region
      %s142 = ssub.s32 %s9, 1
      %p143 = scmp.lt.s32.totalorder %s14, 1
      %s144 = scalar_select %p143, %s14, 1
      %s145 = smul.addr %s144, 53
      %s146 = smul.addr %s145, 8
      %s147 = scalar_lea.vmem %s0, %s146
      %p148 = pneg %p35
      %p149 = pneg %p32
      %p150 = pneg %p56
      %p151 = pneg %p53
      %p152 = pneg %p77
      %p153 = pneg %p74
      %p154 = pneg %p103
      %p155 = pneg %p100
      %p156 = scmp.lt.s32.totalorder %s14, 1
      %s157 = scalar_select %p156, %s14, 1
      %s158 = smul.addr %s157, 40
      %s159 = smul.addr %s158, 8
      %s160 = scalar_lea.vmem %s3, %s159
      %p161 = scmp.lt.s32.totalorder %s14, 1
      %s162 = scalar_select %p161, %s14, 1
      %s163 = smul.addr %s162, 53
      %s164 = smul.addr %s163, 8
      %s165 = scalar_lea.vmem %s0, %s164
      %p166 = scmp.lt.s32.totalorder %s14, 1
      %s167 = scalar_select %p166, %s14, 1
      %s168 = smul.addr %s167, 40
      %s169 = smul.addr %s168, 8
      %s170 = scalar_lea.vmem %s3, %s169
      %v171 = vld [vmem:[%s165] sm:$0xff]
      %v172 = vld [vmem:[%s165 + $0x8] sm:$0xff]
      %v173 = vld [vmem:[%s165 + $0x10] sm:$0xff]
      %v174 = vld [vmem:[%s165 + $0x18] sm:$0xff]
      %v175 = vld [vmem:[%s165 + $0x20] sm:$0xff]
      %v176 = vld [vmem:[%s165 + $0x28] sm:$0xff]
      %v177 = vld [vmem:[%s165 + $0x30] sm:$0xff]
      %v178 = vld [vmem:[%s165 + $0x38] sm:$0xff]
      %v179 = vld [vmem:[%s165 + $0x40] sm:$0xff]
      %v180 = vld [vmem:[%s165 + $0x48] sm:$0xff]
      %v181 = vld [vmem:[%s165 + $0x50] sm:$0xff]
      %v182 = vld [vmem:[%s165 + $0x58] sm:$0xff]
      %v183 = vld [vmem:[%s165 + $0x60] sm:$0xff]
      %v184 = vld [vmem:[%s165 + $0x68] sm:$0xff]
      %v185 = vld [vmem:[%s165 + $0x70] sm:$0xff]
      %v186 = vld [vmem:[%s165 + $0x78] sm:$0xff]
      %v187 = vld [vmem:[%s165 + $0x80] sm:$0xff]
      %v188 = vld [vmem:[%s165 + $0x88] sm:$0xff]
      %v189 = vld [vmem:[%s165 + $0x90] sm:$0xff]
      %v190 = vld [vmem:[%s165 + $0x98] sm:$0xff]
      %v191 = vld [vmem:[%s165 + $0xa0] sm:$0xff]
      %v192 = vld [vmem:[%s165 + $0xa8] sm:$0xff]
      %v193 = vld [vmem:[%s165 + $0xb0] sm:$0xff]
      %v194 = vld [vmem:[%s165 + $0xb8] sm:$0xff]
      %v195 = vld [vmem:[%s165 + $0xc0] sm:$0xff]
      %v196 = vld [vmem:[%s165 + $0xc8] sm:$0xff]
      %v197 = vld [vmem:[%s165 + $0xd0] sm:$0xff]
      %v198 = vld [vmem:[%s165 + $0xd8] sm:$0xff]
      %v199 = vld [vmem:[%s165 + $0xe0] sm:$0xff]
      %v200 = vld [vmem:[%s165 + $0xe8] sm:$0xff]
      %v201 = vld [vmem:[%s165 + $0xf0] sm:$0xff]
      %v202 = vld [vmem:[%s165 + $0xf8] sm:$0xff]
      %v203 = vld [vmem:[%s165 + $0x100] sm:$0xff]
      %v204 = vld [vmem:[%s165 + $0x108] sm:$0xff]
      %v205 = vld [vmem:[%s165 + $0x110] sm:$0xff]
      %v206 = vld [vmem:[%s165 + $0x118] sm:$0xff]
      %v207 = vld [vmem:[%s165 + $0x120] sm:$0xff]
      %v208 = vld [vmem:[%s165 + $0x128] sm:$0xff]
      %v209 = vld [vmem:[%s165 + $0x130] sm:$0xff]
      %v210 = vld [vmem:[%s165 + $0x138] sm:$0xff]
      %v211 = vld [vmem:[%s165 + $0x140] sm:$0xff]
      %v212 = vld [vmem:[%s165 + $0x148] sm:$0xff]
      %v213 = vld [vmem:[%s165 + $0x150] sm:$0xff]
      %v214 = vld [vmem:[%s165 + $0x158] sm:$0xff]
      %v215 = vld [vmem:[%s165 + $0x160] sm:$0xff]
      %v216 = vld [vmem:[%s165 + $0x168] sm:$0xff]
      %v217 = vld [vmem:[%s165 + $0x170] sm:$0xff]
      %v218 = vld [vmem:[%s165 + $0x178] sm:$0xff]
      %v219 = vld [vmem:[%s165 + $0x180] sm:$0xff]
      %v220 = vld [vmem:[%s165 + $0x188] sm:$0xff]
      %v221 = vld [vmem:[%s165 + $0x190] sm:$0xff]
      %v222 = vld [vmem:[%s1] sm:$0xff]
      %v223 = vld [vmem:[%s1 + $0x8] sm:$0xff]
      %v224 = vld [vmem:[%s1 + $0x10] sm:$0xff]
      %v225 = vld [vmem:[%s1 + $0x18] sm:$0xff]
      %v226 = vld [vmem:[%s1 + $0x20] sm:$0xf]
      %vm268 = vcmask 1045504
      %v269 = vrot.slane %v171, 2
      %v270 = vrot.slane %v172, 2
      %v271 = vsel %vm268, %v269, %v270
      %v272 = vrot.slane %v173, 2
      %v273 = vsel %vm268, %v270, %v272
      %v274 = vrot.slane %v174, 2
      %v275 = vsel %vm268, %v272, %v274
      %v276 = vrot.slane %v175, 2
      %v277 = vsel %vm268, %v274, %v276
      %v278 = vrot.slane %v176, 2
      %v279 = vsel %vm268, %v276, %v278
      %v280 = vrot.slane %v177, 2
      %v281 = vsel %vm268, %v278, %v280
      %v282 = vrot.slane %v178, 2
      %v283 = vsel %vm268, %v280, %v282
      %v284 = vrot.slane %v179, 2
      %v285 = vsel %vm268, %v282, %v284
      %v286 = vrot.slane %v180, 2
      %v287 = vsel %vm268, %v284, %v286
      %v288 = vrot.slane %v181, 2
      %v289 = vsel %vm268, %v286, %v288
      %v290 = vrot.slane %v182, 2
      %v291 = vsel %vm268, %v288, %v290
      %v292 = vrot.slane %v183, 2
      %v293 = vsel %vm268, %v290, %v292
      %v294 = vrot.slane %v184, 2
      %v295 = vsel %vm268, %v292, %v294
      %v296 = vrot.slane %v185, 2
      %v297 = vsel %vm268, %v294, %v296
      %v298 = vrot.slane %v186, 2
      %v299 = vsel %vm268, %v296, %v298
      %v300 = vrot.slane %v187, 2
      %v301 = vsel %vm268, %v298, %v300
      %v302 = vrot.slane %v188, 2
      %v303 = vsel %vm268, %v300, %v302
      %v304 = vrot.slane %v189, 2
      %v305 = vsel %vm268, %v302, %v304
      %v306 = vrot.slane %v190, 2
      %v307 = vsel %vm268, %v304, %v306
      %v308 = vrot.slane %v191, 2
      %v309 = vsel %vm268, %v306, %v308
      %v310 = vrot.slane %v192, 2
      %v311 = vsel %vm268, %v308, %v310
      %v312 = vrot.slane %v193, 2
      %v313 = vsel %vm268, %v310, %v312
      %v314 = vrot.slane %v194, 2
      %v315 = vsel %vm268, %v312, %v314
      %v316 = vrot.slane %v195, 2
      %v317 = vsel %vm268, %v314, %v316
      %v318 = vrot.slane %v196, 2
      %v319 = vsel %vm268, %v316, %v318
      %v320 = vrot.slane %v197, 2
      %v321 = vsel %vm268, %v318, %v320
      %v322 = vrot.slane %v198, 2
      %v323 = vsel %vm268, %v320, %v322
      %v324 = vrot.slane %v199, 2
      %v325 = vsel %vm268, %v322, %v324
      %v326 = vrot.slane %v200, 2
      %v327 = vsel %vm268, %v324, %v326
      %v328 = vrot.slane %v201, 2
      %v329 = vsel %vm268, %v326, %v328
      %v330 = vrot.slane %v202, 2
      %v331 = vsel %vm268, %v328, %v330
      %v332 = vrot.slane %v203, 2
      %v333 = vsel %vm268, %v330, %v332
      %v334 = vrot.slane %v204, 2
      %v335 = vsel %vm268, %v332, %v334
      %v336 = vrot.slane %v205, 2
      %v337 = vsel %vm268, %v334, %v336
      %v338 = vrot.slane %v206, 2
      %v339 = vsel %vm268, %v336, %v338
      %v340 = vrot.slane %v207, 2
      %v341 = vsel %vm268, %v338, %v340
      %v342 = vrot.slane %v208, 2
      %v343 = vsel %vm268, %v340, %v342
      %v344 = vrot.slane %v209, 2
      %v345 = vsel %vm268, %v342, %v344
      %v346 = vrot.slane %v210, 2
      %v347 = vsel %vm268, %v344, %v346
      %v348 = vrot.slane %v211, 2
      %v349 = vsel %vm268, %v346, %v348
      %v351 = vrot.slane %v222, 4
      %vm352 = vcmask 31744
      %v353 = vsel %vm352, %v271, 0
      %v355 = vsel %vm352, %v273, 0
      %v357 = vsel %vm352, %v275, 0
      %v359 = vsel %vm352, %v277, 0
      %v361 = vsel %vm352, %v279, 0
      %v363 = vsel %vm352, %v281, 0
      %v365 = vsel %vm352, %v283, 0
      %v367 = vsel %vm352, %v285, 0
      %v369 = vsel %vm352, %v287, 0
      %v371 = vsel %vm352, %v289, 0
      %v373 = vsel %vm352, %v291, 0
      %v375 = vsel %vm352, %v293, 0
      %v377 = vsel %vm352, %v295, 0
      %v379 = vsel %vm352, %v297, 0
      %v381 = vsel %vm352, %v299, 0
      %v383 = vsel %vm352, %v301, 0
      %v385 = vsel %vm352, %v303, 0
      %v387 = vsel %vm352, %v305, 0
      %v389 = vsel %vm352, %v307, 0
      %v391 = vsel %vm352, %v309, 0
      %v393 = vsel %vm352, %v311, 0
      %v395 = vsel %vm352, %v313, 0
      %v397 = vsel %vm352, %v315, 0
      %v399 = vsel %vm352, %v317, 0
      %v401 = vsel %vm352, %v319, 0
      %v403 = vsel %vm352, %v321, 0
      %v405 = vsel %vm352, %v323, 0
      %v407 = vsel %vm352, %v325, 0
      %v409 = vsel %vm352, %v327, 0
      %v411 = vsel %vm352, %v329, 0
      %v413 = vsel %vm352, %v331, 0
      %v415 = vsel %vm352, %v333, 0
      %v417 = vsel %vm352, %v335, 0
      %v419 = vsel %vm352, %v337, 0
      %v421 = vsel %vm352, %v339, 0
      %v423 = vsel %vm352, %v341, 0
      %v425 = vsel %vm352, %v343, 0
      %v427 = vsel %vm352, %v345, 0
      %v429 = vsel %vm352, %v347, 0
      %v431 = vsel %vm352, %v349, 0
      %vm433 = vcmask 1043456
      %v434 = vsel %vm433, %v351, 0
      %436 = vmatprep.subr.mxu0 0.0
      %437 = vmatpush1.msra.mxu0 %v434
      %438 = vmatprep.subr.mxu0 0.0
      %439 = vmatpush1.msra.mxu0 0.0
      %440 = vmatprep.subr.mxu0 0.0
      %441 = vmatpush1.msra.mxu0 0.0
      %442 = vmatprep.subr.mxu0 0.0
      %443 = vmatpush1.msra.mxu0 0.0
      %444 = vmatprep.subr.mxu0 0.0
      %445 = vmatpush1.msra.mxu0 0.0
      %446 = vmatprep.subr.mxu0 0.0
      %447 = vmatpush1.msra.mxu0 0.0
      %448 = vmatprep.subr.mxu0 0.0
      %449 = vmatpush1.msra.mxu0 0.0
      %450 = vmatprep.subr.mxu0 0.0
      %451 = vmatpush1.msra.mxu0 0.0
      %452 = vmatprep.subr.mxu0 0.0
      %453 = vmatpush1.msra.mxu0 0.0
      %454 = vmatprep.subr.mxu0 0.0
      %455 = vmatpush1.msra.mxu0 0.0
      %456 = vmatprep.subr.mxu0 0.0
      %457 = vmatpush1.msra.mxu0 0.0
      %458 = vmatprep.subr.mxu0 0.0
      %459 = vmatpush1.msra.mxu0 0.0
      %460 = vmatprep.subr.mxu0 0.0
      %461 = vmatpush1.msra.mxu0 0.0
      %462 = vmatprep.subr.mxu0 0.0
      %463 = vmatpush1.msra.mxu0 0.0
      %464 = vmatprep.subr.mxu0 0.0
      %465 = vmatpush1.msra.mxu0 0.0
      %466 = vmatprep.subr.mxu0 0.0
      %467 = vmatpush1.msra.mxu0 0.0
      %468 = vmatprep.subr.mxu0 0.0
      %469 = vmatpush1.msra.mxu0 0.0
      %470 = vmatprep.subr.mxu0 0.0
      %471 = vmatpush1.msra.mxu0 0.0
      %472 = vmatprep.subr.mxu0 0.0
      %473 = vmatpush1.msra.mxu0 0.0
      %474 = vmatprep.subr.mxu0 0.0
      %475 = vmatpush1.msra.mxu0 0.0
      %476 = vmatprep.subr.mxu0 0.0
      %477 = vmatpush1.msra.mxu0 0.0
      %478 = vmatprep.subr.mxu0 0.0
      %479 = vmatpush1.msra.mxu0 0.0
      %480 = vmatprep.subr.mxu0 0.0
      %481 = vmatpush1.msra.mxu0 0.0
      %482 = vmatprep.subr.mxu0 0.0
      %483 = vmatpush1.msra.mxu0 0.0
      %484 = vmatprep.subr.mxu0 0.0
      %485 = vmatpush1.msra.mxu0 0.0
      %486 = vmatprep.subr.mxu0 0.0
      %487 = vmatpush1.msra.mxu0 0.0
      %488 = vmatprep.subr.mxu0 0.0
      %489 = vmatpush1.msra.mxu0 0.0
      %490 = vmatprep.subr.mxu0 0.0
      %491 = vmatpush1.msra.mxu0 0.0
      %492 = vmatprep.subr.mxu0 0.0
      %493 = vmatpush1.msra.mxu0 0.0
      %494 = vmatprep.subr.mxu0 0.0
      %495 = vmatpush1.msra.mxu0 0.0
      %496 = vmatprep.subr.mxu0 0.0
      %497 = vmatpush1.msra.mxu0 0.0
      %498 = vmatprep.subr.mxu0 0.0
      %499 = vmatpush1.msra.mxu0 0.0
      %500 = vmatprep.mubr.f32.mxu0 0.0
      %501 = vmatmul.mubr.f32.gmra.mrb[0].mxu0 %v353
      %v502 = vpop.f32.mrb[0].mxu0
      %v503 = vadd.f32 0.0, %v502
      %v504 = vpop.f32.mrb[0].mxu0
      %505 = vmatprep.mubr.f32.mxu0 0.0
      %506 = vmatmul.mubr.f32.gmra.mrb[0].mxu0 %v355
      %v507 = vpop.f32.mrb[0].mxu0
      %v508 = vadd.f32 0.0, %v507
      %v509 = vpop.f32.mrb[0].mxu0
      %510 = vmatprep.mubr.f32.mxu0 0.0
      %511 = vmatmul.mubr.f32.gmra.mrb[0].mxu0 %v357
      %v512 = vpop.f32.mrb[0].mxu0
      %v513 = vadd.f32 0.0, %v512
      %v514 = vpop.f32.mrb[0].mxu0
      %515 = vmatprep.mubr.f32.mxu0 0.0
      %516 = vmatmul.mubr.f32.gmra.mrb[0].mxu0 %v359
      %v517 = vpop.f32.mrb[0].mxu0
      %v518 = vadd.f32 0.0, %v517
      %v519 = vpop.f32.mrb[0].mxu0
      %520 = vmatprep.mubr.f32.mxu0 0.0
      %521 = vmatmul.mubr.f32.gmra.mrb[0].mxu0 %v361
      %v522 = vpop.f32.mrb[0].mxu0
      %v523 = vadd.f32 0.0, %v522
      %v524 = vpop.f32.mrb[0].mxu0
      %525 = vmatprep.mubr.f32.mxu0 0.0
      %526 = vmatmul.mubr.f32.gmra.mrb[0].mxu0 %v363
      %v527 = vpop.f32.mrb[0].mxu0
      %v528 = vadd.f32 0.0, %v527
      %v529 = vpop.f32.mrb[0].mxu0
      %530 = vmatprep.mubr.f32.mxu0 0.0
      %531 = vmatmul.mubr.f32.gmra.mrb[0].mxu0 %v365
      %v532 = vpop.f32.mrb[0].mxu0
      %v533 = vadd.f32 0.0, %v532
      %v534 = vpop.f32.mrb[0].mxu0
      %535 = vmatprep.mubr.f32.mxu0 0.0
      %536 = vmatmul.mubr.f32.gmra.mrb[0].mxu0 %v367
      %v537 = vpop.f32.mrb[0].mxu0
      %v538 = vadd.f32 0.0, %v537
      %v539 = vpop.f32.mrb[0].mxu0
      %540 = vmatprep.mubr.f32.mxu0 0.0
      %541 = vmatmul.mubr.f32.gmra.mrb[0].mxu0 %v369
      %v542 = vpop.f32.mrb[0].mxu0
      %v543 = vadd.f32 0.0, %v542
      %v544 = vpop.f32.mrb[0].mxu0
      %545 = vmatprep.mubr.f32.mxu0 0.0
      %546 = vmatmul.mubr.f32.gmra.mrb[0].mxu0 %v371
      %v547 = vpop.f32.mrb[0].mxu0
      %v548 = vadd.f32 0.0, %v547
      %v549 = vpop.f32.mrb[0].mxu0
      %550 = vmatprep.mubr.f32.mxu0 0.0
      %551 = vmatmul.mubr.f32.gmra.mrb[0].mxu0 %v373
      %v552 = vpop.f32.mrb[0].mxu0
      %v553 = vadd.f32 0.0, %v552
      %v554 = vpop.f32.mrb[0].mxu0
      %555 = vmatprep.mubr.f32.mxu0 0.0
      %556 = vmatmul.mubr.f32.gmra.mrb[0].mxu0 %v375
      %v557 = vpop.f32.mrb[0].mxu0
      %v558 = vadd.f32 0.0, %v557
      %v559 = vpop.f32.mrb[0].mxu0
      %560 = vmatprep.mubr.f32.mxu0 0.0
      %561 = vmatmul.mubr.f32.gmra.mrb[0].mxu0 %v377
      %v562 = vpop.f32.mrb[0].mxu0
      %v563 = vadd.f32 0.0, %v562
      %v564 = vpop.f32.mrb[0].mxu0
      %565 = vmatprep.mubr.f32.mxu0 0.0
      %566 = vmatmul.mubr.f32.gmra.mrb[0].mxu0 %v379
      %v567 = vpop.f32.mrb[0].mxu0
      %v568 = vadd.f32 0.0, %v567
      %v569 = vpop.f32.mrb[0].mxu0
      %570 = vmatprep.mubr.f32.mxu0 0.0
      %571 = vmatmul.mubr.f32.gmra.mrb[0].mxu0 %v381
      %v572 = vpop.f32.mrb[0].mxu0
      %v573 = vadd.f32 0.0, %v572
      %v574 = vpop.f32.mrb[0].mxu0
      %575 = vmatprep.mubr.f32.mxu0 0.0
      %576 = vmatmul.mubr.f32.gmra.mrb[0].mxu0 %v383
      %v577 = vpop.f32.mrb[0].mxu0
      %v578 = vadd.f32 0.0, %v577
      %v579 = vpop.f32.mrb[0].mxu0
      %580 = vmatprep.mubr.f32.mxu0 0.0
      %581 = vmatmul.mubr.f32.gmra.mrb[0].mxu0 %v385
      %v582 = vpop.f32.mrb[0].mxu0
      %v583 = vadd.f32 0.0, %v582
      %v584 = vpop.f32.mrb[0].mxu0
      %585 = vmatprep.mubr.f32.mxu0 0.0
      %586 = vmatmul.mubr.f32.gmra.mrb[0].mxu0 %v387
      %v587 = vpop.f32.mrb[0].mxu0
      %v588 = vadd.f32 0.0, %v587
      %v589 = vpop.f32.mrb[0].mxu0
      %590 = vmatprep.mubr.f32.mxu0 0.0
      %591 = vmatmul.mubr.f32.gmra.mrb[0].mxu0 %v389
      %v592 = vpop.f32.mrb[0].mxu0
      %v593 = vadd.f32 0.0, %v592
      %v594 = vpop.f32.mrb[0].mxu0
      %595 = vmatprep.mubr.f32.mxu0 0.0
      %596 = vmatmul.mubr.f32.gmra.mrb[0].mxu0 %v391
      %v597 = vpop.f32.mrb[0].mxu0
      %v598 = vadd.f32 0.0, %v597
      %v599 = vpop.f32.mrb[0].mxu0
      %600 = vmatprep.mubr.f32.mxu0 0.0
      %601 = vmatmul.mubr.f32.gmra.mrb[0].mxu0 %v393
      %v602 = vpop.f32.mrb[0].mxu0
      %v603 = vadd.f32 0.0, %v602
      %v604 = vpop.f32.mrb[0].mxu0
      %605 = vmatprep.mubr.f32.mxu0 0.0
      %606 = vmatmul.mubr.f32.gmra.mrb[0].mxu0 %v395
      %v607 = vpop.f32.mrb[0].mxu0
      %v608 = vadd.f32 0.0, %v607
      %v609 = vpop.f32.mrb[0].mxu0
      %610 = vmatprep.mubr.f32.mxu0 0.0
      %611 = vmatmul.mubr.f32.gmra.mrb[0].mxu0 %v397
      %v612 = vpop.f32.mrb[0].mxu0
      %v613 = vadd.f32 0.0, %v612
      %v614 = vpop.f32.mrb[0].mxu0
      %615 = vmatprep.mubr.f32.mxu0 0.0
      %616 = vmatmul.mubr.f32.gmra.mrb[0].mxu0 %v399
      %v617 = vpop.f32.mrb[0].mxu0
      %v618 = vadd.f32 0.0, %v617
      %v619 = vpop.f32.mrb[0].mxu0
      %620 = vmatprep.mubr.f32.mxu0 0.0
      %621 = vmatmul.mubr.f32.gmra.mrb[0].mxu0 %v401
      %v622 = vpop.f32.mrb[0].mxu0
      %v623 = vadd.f32 0.0, %v622
      %v624 = vpop.f32.mrb[0].mxu0
      %625 = vmatprep.mubr.f32.mxu0 0.0
      %626 = vmatmul.mubr.f32.gmra.mrb[0].mxu0 %v403
      %v627 = vpop.f32.mrb[0].mxu0
      %v628 = vadd.f32 0.0, %v627
      %v629 = vpop.f32.mrb[0].mxu0
      %630 = vmatprep.mubr.f32.mxu0 0.0
      %631 = vmatmul.mubr.f32.gmra.mrb[0].mxu0 %v405
      %v632 = vpop.f32.mrb[0].mxu0
      %v633 = vadd.f32 0.0, %v632
      %v634 = vpop.f32.mrb[0].mxu0
      %635 = vmatprep.mubr.f32.mxu0 0.0
      %636 = vmatmul.mubr.f32.gmra.mrb[0].mxu0 %v407
      %v637 = vpop.f32.mrb[0].mxu0
      %v638 = vadd.f32 0.0, %v637
      %v639 = vpop.f32.mrb[0].mxu0
      %640 = vmatprep.mubr.f32.mxu0 0.0
      %641 = vmatmul.mubr.f32.gmra.mrb[0].mxu0 %v409
      %v642 = vpop.f32.mrb[0].mxu0
      %v643 = vadd.f32 0.0, %v642
      %v644 = vpop.f32.mrb[0].mxu0
      %645 = vmatprep.mubr.f32.mxu0 0.0
      %646 = vmatmul.mubr.f32.gmra.mrb[0].mxu0 %v411
      %v647 = vpop.f32.mrb[0].mxu0
      %v648 = vadd.f32 0.0, %v647
      %v649 = vpop.f32.mrb[0].mxu0
      %650 = vmatprep.mubr.f32.mxu0 0.0
      %651 = vmatmul.mubr.f32.gmra.mrb[0].mxu0 %v413
      %v652 = vpop.f32.mrb[0].mxu0
      %v653 = vadd.f32 0.0, %v652
      %v654 = vpop.f32.mrb[0].mxu0
      %655 = vmatprep.mubr.f32.mxu0 0.0
      %656 = vmatmul.mubr.f32.gmra.mrb[0].mxu0 %v415
      %v657 = vpop.f32.mrb[0].mxu0
      %v658 = vadd.f32 0.0, %v657
      %v659 = vpop.f32.mrb[0].mxu0
      %660 = vmatprep.mubr.f32.mxu0 0.0
      %661 = vmatmul.mubr.f32.gmra.mrb[0].mxu0 %v417
      %v662 = vpop.f32.mrb[0].mxu0
      %v663 = vadd.f32 0.0, %v662
      %v664 = vpop.f32.mrb[0].mxu0
      %665 = vmatprep.mubr.f32.mxu0 0.0
      %666 = vmatmul.mubr.f32.gmra.mrb[0].mxu0 %v419
      %v667 = vpop.f32.mrb[0].mxu0
      %v668 = vadd.f32 0.0, %v667
      %v669 = vpop.f32.mrb[0].mxu0
      %670 = vmatprep.mubr.f32.mxu0 0.0
      %671 = vmatmul.mubr.f32.gmra.mrb[0].mxu0 %v421
      %v672 = vpop.f32.mrb[0].mxu0
      %v673 = vadd.f32 0.0, %v672
      %v674 = vpop.f32.mrb[0].mxu0
      %675 = vmatprep.mubr.f32.mxu0 0.0
      %676 = vmatmul.mubr.f32.gmra.mrb[0].mxu0 %v423
      %v677 = vpop.f32.mrb[0].mxu0
      %v678 = vadd.f32 0.0, %v677
      %v679 = vpop.f32.mrb[0].mxu0
      %680 = vmatprep.mubr.f32.mxu0 0.0
      %681 = vmatmul.mubr.f32.gmra.mrb[0].mxu0 %v425
      %v682 = vpop.f32.mrb[0].mxu0
      %v683 = vadd.f32 0.0, %v682
      %v684 = vpop.f32.mrb[0].mxu0
      %685 = vmatprep.mubr.f32.mxu0 0.0
      %686 = vmatmul.mubr.f32.gmra.mrb[0].mxu0 %v427
      %v687 = vpop.f32.mrb[0].mxu0
      %v688 = vadd.f32 0.0, %v687
      %v689 = vpop.f32.mrb[0].mxu0
      %690 = vmatprep.mubr.f32.mxu0 0.0
      %691 = vmatmul.mubr.f32.gmra.mrb[0].mxu0 %v429
      %v692 = vpop.f32.mrb[0].mxu0
      %v693 = vadd.f32 0.0, %v692
      %v694 = vpop.f32.mrb[0].mxu0
      %695 = vmatprep.mubr.f32.mxu0 0.0
      %696 = vmatmul.mubr.f32.gmra.mrb[0].mxu0 %v431
      %v697 = vpop.f32.mrb[0].mxu0
      %v698 = vadd.f32 0.0, %v697
      %v699 = vpop.f32.mrb[0].mxu0
      %700 = vdwg.mxu0
      %v701 = vsel %vm352, %v171, 0
      %v703 = vsel %vm352, %v172, 0
      %v705 = vsel %vm352, %v173, 0
      %v707 = vsel %vm352, %v174, 0
      %v709 = vsel %vm352, %v175, 0
      %v711 = vsel %vm352, %v176, 0
      %v713 = vsel %vm352, %v177, 0
      %v715 = vsel %vm352, %v178, 0
      %v717 = vsel %vm352, %v179, 0
      %v719 = vsel %vm352, %v180, 0
      %v721 = vsel %vm352, %v181, 0
      %v723 = vsel %vm352, %v182, 0
      %v725 = vsel %vm352, %v183, 0
      %v727 = vsel %vm352, %v184, 0
      %v729 = vsel %vm352, %v185, 0
      %v731 = vsel %vm352, %v186, 0
      %v733 = vsel %vm352, %v187, 0
      %v735 = vsel %vm352, %v188, 0
      %v737 = vsel %vm352, %v189, 0
      %v739 = vsel %vm352, %v190, 0
      %v741 = vsel %vm352, %v191, 0
      %v743 = vsel %vm352, %v192, 0
      %v745 = vsel %vm352, %v193, 0
      %v747 = vsel %vm352, %v194, 0
      %v749 = vsel %vm352, %v195, 0
      %v751 = vsel %vm352, %v196, 0
      %v753 = vsel %vm352, %v197, 0
      %v755 = vsel %vm352, %v198, 0
      %v757 = vsel %vm352, %v199, 0
      %v759 = vsel %vm352, %v200, 0
      %v761 = vsel %vm352, %v201, 0
      %v763 = vsel %vm352, %v202, 0
      %v765 = vsel %vm352, %v203, 0
      %v767 = vsel %vm352, %v204, 0
      %v769 = vsel %vm352, %v205, 0
      %v771 = vsel %vm352, %v206, 0
      %v773 = vsel %vm352, %v207, 0
      %v775 = vsel %vm352, %v208, 0
      %v777 = vsel %vm352, %v209, 0
      %v779 = vsel %vm352, %v210, 0
      %v781 = vsel %vm433, %v222, 0
      %783 = vmatprep.subr.mxu0 0.0
      %784 = vmatpush1.msra.mxu0 %v781
      %785 = vmatprep.subr.mxu0 0.0
      %786 = vmatpush1.msra.mxu0 0.0
      %787 = vmatprep.subr.mxu0 0.0
      %788 = vmatpush1.msra.mxu0 0.0
      %789 = vmatprep.subr.mxu0 0.0
      %790 = vmatpush1.msra.mxu0 0.0
      %791 = vmatprep.subr.mxu0 0.0
      %792 = vmatpush1.msra.mxu0 0.0
      %793 = vmatprep.subr.mxu0 0.0
      %794 = vmatpush1.msra.mxu0 0.0
      %795 = vmatprep.subr.mxu0 0.0
      %796 = vmatpush1.msra.mxu0 0.0
      %797 = vmatprep.subr.mxu0 0.0
      %798 = vmatpush1.msra.mxu0 0.0
      %799 = vmatprep.subr.mxu0 0.0
      %800 = vmatpush1.msra.mxu0 0.0
      %801 = vmatprep.subr.mxu0 0.0
      %802 = vmatpush1.msra.mxu0 0.0
      %803 = vmatprep.subr.mxu0 0.0
      %804 = vmatpush1.msra.mxu0 0.0
      %805 = vmatprep.subr.mxu0 0.0
      %806 = vmatpush1.msra.mxu0 0.0
      %807 = vmatprep.subr.mxu0 0.0
      %808 = vmatpush1.msra.mxu0 0.0
      %809 = vmatprep.subr.mxu0 0.0
      %810 = vmatpush1.msra.mxu0 0.0
      %811 = vmatprep.subr.mxu0 0.0
      %812 = vmatpush1.msra.mxu0 0.0
      %813 = vmatprep.subr.mxu0 0.0
      %814 = vmatpush1.msra.mxu0 0.0
      %815 = vmatprep.subr.mxu0 0.0
      %816 = vmatpush1.msra.mxu0 0.0
      %817 = vmatprep.subr.mxu0 0.0
      %818 = vmatpush1.msra.mxu0 0.0
      %819 = vmatprep.subr.mxu0 0.0
      %820 = vmatpush1.msra.mxu0 0.0
      %821 = vmatprep.subr.mxu0 0.0
      %822 = vmatpush1.msra.mxu0 0.0
      %823 = vmatprep.subr.mxu0 0.0
      %824 = vmatpush1.msra.mxu0 0.0
      %825 = vmatprep.subr.mxu0 0.0
      %826 = vmatpush1.msra.mxu0 0.0
      %827 = vmatprep.subr.mxu0 0.0
      %828 = vmatpush1.msra.mxu0 0.0
      %829 = vmatprep.subr.mxu0 0.0
      %830 = vmatpush1.msra.mxu0 0.0
      %831 = vmatprep.subr.mxu0 0.0
      %832 = vmatpush1.msra.mxu0 0.0
      %833 = vmatprep.subr.mxu0 0.0
      %834 = vmatpush1.msra.mxu0 0.0
      %835 = vmatprep.subr.mxu0 0.0
      %836 = vmatpush1.msra.mxu0 0.0
      %837 = vmatprep.subr.mxu0 0.0
      %838 = vmatpush1.msra.mxu0 0.0
      %839 = vmatprep.subr.mxu0 0.0
      %840 = vmatpush1.msra.mxu0 0.0
      %841 = vmatprep.subr.mxu0 0.0
      %842 = vmatpush1.msra.mxu0 0.0
      %843 = vmatprep.subr.mxu0 0.0
      %844 = vmatpush1.msra.mxu0 0.0
      %845 = vmatprep.subr.mxu0 0.0
      %846 = vmatpush1.msra.mxu0 0.0
      %847 = vmatprep.mubr.f32.mxu0 0.0
      %848 = vmatmul.mubr.f32.gmra.mrb[0].mxu0 %v701
      %v849 = vpop.f32.mrb[0].mxu0
      %v850 = vadd.f32 %v503, %v849
      %v851 = vpop.f32.mrb[0].mxu0
      %852 = vmatprep.mubr.f32.mxu0 0.0
      %853 = vmatmul.mubr.f32.gmra.mrb[0].mxu0 %v703
      %v854 = vpop.f32.mrb[0].mxu0
      %v855 = vadd.f32 %v508, %v854
      %v856 = vpop.f32.mrb[0].mxu0
      %857 = vmatprep.mubr.f32.mxu0 0.0
      %858 = vmatmul.mubr.f32.gmra.mrb[0].mxu0 %v705
      %v859 = vpop.f32.mrb[0].mxu0
      %v860 = vadd.f32 %v513, %v859
      %v861 = vpop.f32.mrb[0].mxu0
      %862 = vmatprep.mubr.f32.mxu0 0.0
      %863 = vmatmul.mubr.f32.gmra.mrb[0].mxu0 %v707
      %v864 = vpop.f32.mrb[0].mxu0
      %v865 = vadd.f32 %v518, %v864
      %v866 = vpop.f32.mrb[0].mxu0
      %867 = vmatprep.mubr.f32.mxu0 0.0
      %868 = vmatmul.mubr.f32.gmra.mrb[0].mxu0 %v709
      %v869 = vpop.f32.mrb[0].mxu0
      %v870 = vadd.f32 %v523, %v869
      %v871 = vpop.f32.mrb[0].mxu0
      %872 = vmatprep.mubr.f32.mxu0 0.0
      %873 = vmatmul.mubr.f32.gmra.mrb[0].mxu0 %v711
      %v874 = vpop.f32.mrb[0].mxu0
      %v875 = vadd.f32 %v528, %v874
      %v876 = vpop.f32.mrb[0].mxu0
      %877 = vmatprep.mubr.f32.mxu0 0.0
      %878 = vmatmul.mubr.f32.gmra.mrb[0].mxu0 %v713
      %v879 = vpop.f32.mrb[0].mxu0
      %v880 = vadd.f32 %v533, %v879
      %v881 = vpop.f32.mrb[0].mxu0
      %882 = vmatprep.mubr.f32.mxu0 0.0
      %883 = vmatmul.mubr.f32.gmra.mrb[0].mxu0 %v715
      %v884 = vpop.f32.mrb[0].mxu0
      %v885 = vadd.f32 %v538, %v884
      %v886 = vpop.f32.mrb[0].mxu0
      %887 = vmatprep.mubr.f32.mxu0 0.0
      %888 = vmatmul.mubr.f32.gmra.mrb[0].mxu0 %v717
      %v889 = vpop.f32.mrb[0].mxu0
      %v890 = vadd.f32 %v543, %v889
      %v891 = vpop.f32.mrb[0].mxu0
      %892 = vmatprep.mubr.f32.mxu0 0.0
      %893 = vmatmul.mubr.f32.gmra.mrb[0].mxu0 %v719
      %v894 = vpop.f32.mrb[0].mxu0
      %v895 = vadd.f32 %v548, %v894
      %v896 = vpop.f32.mrb[0].mxu0
      %897 = vmatprep.mubr.f32.mxu0 0.0
      %898 = vmatmul.mubr.f32.gmra.mrb[0].mxu0 %v721
      %v899 = vpop.f32.mrb[0].mxu0
      %v900 = vadd.f32 %v553, %v899
      %v901 = vpop.f32.mrb[0].mxu0
      %902 = vmatprep.mubr.f32.mxu0 0.0
      %903 = vmatmul.mubr.f32.gmra.mrb[0].mxu0 %v723
      %v904 = vpop.f32.mrb[0].mxu0
      %v905 = vadd.f32 %v558, %v904
      %v906 = vpop.f32.mrb[0].mxu0
      %907 = vmatprep.mubr.f32.mxu0 0.0
      %908 = vmatmul.mubr.f32.gmra.mrb[0].mxu0 %v725
      %v909 = vpop.f32.mrb[0].mxu0
      %v910 = vadd.f32 %v563, %v909
      %v911 = vpop.f32.mrb[0].mxu0
      %912 = vmatprep.mubr.f32.mxu0 0.0
      %913 = vmatmul.mubr.f32.gmra.mrb[0].mxu0 %v727
      %v914 = vpop.f32.mrb[0].mxu0
      %v915 = vadd.f32 %v568, %v914
      %v916 = vpop.f32.mrb[0].mxu0
      %917 = vmatprep.mubr.f32.mxu0 0.0
      %918 = vmatmul.mubr.f32.gmra.mrb[0].mxu0 %v729
      %v919 = vpop.f32.mrb[0].mxu0
      %v920 = vadd.f32 %v573, %v919
      %v921 = vpop.f32.mrb[0].mxu0
      %922 = vmatprep.mubr.f32.mxu0 0.0
      %923 = vmatmul.mubr.f32.gmra.mrb[0].mxu0 %v731
      %v924 = vpop.f32.mrb[0].mxu0
      %v925 = vadd.f32 %v578, %v924
      %v926 = vpop.f32.mrb[0].mxu0
      %927 = vmatprep.mubr.f32.mxu0 0.0
      %928 = vmatmul.mubr.f32.gmra.mrb[0].mxu0 %v733
      %v929 = vpop.f32.mrb[0].mxu0
      %v930 = vadd.f32 %v583, %v929
      %v931 = vpop.f32.mrb[0].mxu0
      %932 = vmatprep.mubr.f32.mxu0 0.0
      %933 = vmatmul.mubr.f32.gmra.mrb[0].mxu0 %v735
      %v934 = vpop.f32.mrb[0].mxu0
      %v935 = vadd.f32 %v588, %v934
      %v936 = vpop.f32.mrb[0].mxu0
      %937 = vmatprep.mubr.f32.mxu0 0.0
      %938 = vmatmul.mubr.f32.gmra.mrb[0].mxu0 %v737
      %v939 = vpop.f32.mrb[0].mxu0
      %v940 = vadd.f32 %v593, %v939
      %v941 = vpop.f32.mrb[0].mxu0
      %942 = vmatprep.mubr.f32.mxu0 0.0
      %943 = vmatmul.mubr.f32.gmra.mrb[0].mxu0 %v739
      %v944 = vpop.f32.mrb[0].mxu0
      %v945 = vadd.f32 %v598, %v944
      %v946 = vpop.f32.mrb[0].mxu0
      %947 = vmatprep.mubr.f32.mxu0 0.0
      %948 = vmatmul.mubr.f32.gmra.mrb[0].mxu0 %v741
      %v949 = vpop.f32.mrb[0].mxu0
      %v950 = vadd.f32 %v603, %v949
      %v951 = vpop.f32.mrb[0].mxu0
      %952 = vmatprep.mubr.f32.mxu0 0.0
      %953 = vmatmul.mubr.f32.gmra.mrb[0].mxu0 %v743
      %v954 = vpop.f32.mrb[0].mxu0
      %v955 = vadd.f32 %v608, %v954
      %v956 = vpop.f32.mrb[0].mxu0
      %957 = vmatprep.mubr.f32.mxu0 0.0
      %958 = vmatmul.mubr.f32.gmra.mrb[0].mxu0 %v745
      %v959 = vpop.f32.mrb[0].mxu0
      %v960 = vadd.f32 %v613, %v959
      %v961 = vpop.f32.mrb[0].mxu0
      %962 = vmatprep.mubr.f32.mxu0 0.0
      %963 = vmatmul.mubr.f32.gmra.mrb[0].mxu0 %v747
      %v964 = vpop.f32.mrb[0].mxu0
      %v965 = vadd.f32 %v618, %v964
      %v966 = vpop.f32.mrb[0].mxu0
      %967 = vmatprep.mubr.f32.mxu0 0.0
      %968 = vmatmul.mubr.f32.gmra.mrb[0].mxu0 %v749
      %v969 = vpop.f32.mrb[0].mxu0
      %v970 = vadd.f32 %v623, %v969
      %v971 = vpop.f32.mrb[0].mxu0
      %972 = vmatprep.mubr.f32.mxu0 0.0
      %973 = vmatmul.mubr.f32.gmra.mrb[0].mxu0 %v751
      %v974 = vpop.f32.mrb[0].mxu0
      %v975 = vadd.f32 %v628, %v974
      %v976 = vpop.f32.mrb[0].mxu0
      %977 = vmatprep.mubr.f32.mxu0 0.0
      %978 = vmatmul.mubr.f32.gmra.mrb[0].mxu0 %v753
      %v979 = vpop.f32.mrb[0].mxu0
      %v980 = vadd.f32 %v633, %v979
      %v981 = vpop.f32.mrb[0].mxu0
      %982 = vmatprep.mubr.f32.mxu0 0.0
      %983 = vmatmul.mubr.f32.gmra.mrb[0].mxu0 %v755
      %v984 = vpop.f32.mrb[0].mxu0
      %v985 = vadd.f32 %v638, %v984
      %v986 = vpop.f32.mrb[0].mxu0
      %987 = vmatprep.mubr.f32.mxu0 0.0
      %988 = vmatmul.mubr.f32.gmra.mrb[0].mxu0 %v757
      %v989 = vpop.f32.mrb[0].mxu0
      %v990 = vadd.f32 %v643, %v989
      %v991 = vpop.f32.mrb[0].mxu0
      %992 = vmatprep.mubr.f32.mxu0 0.0
      %993 = vmatmul.mubr.f32.gmra.mrb[0].mxu0 %v759
      %v994 = vpop.f32.mrb[0].mxu0
      %v995 = vadd.f32 %v648, %v994
      %v996 = vpop.f32.mrb[0].mxu0
      %997 = vmatprep.mubr.f32.mxu0 0.0
      %998 = vmatmul.mubr.f32.gmra.mrb[0].mxu0 %v761
      %v999 = vpop.f32.mrb[0].mxu0
      %v1000 = vadd.f32 %v653, %v999
      %v1001 = vpop.f32.mrb[0].mxu0
      %1002 = vmatprep.mubr.f32.mxu0 0.0
      %1003 = vmatmul.mubr.f32.gmra.mrb[0].mxu0 %v763
      %v1004 = vpop.f32.mrb[0].mxu0
      %v1005 = vadd.f32 %v658, %v1004
      %v1006 = vpop.f32.mrb[0].mxu0
      %1007 = vmatprep.mubr.f32.mxu0 0.0
      %1008 = vmatmul.mubr.f32.gmra.mrb[0].mxu0 %v765
      %v1009 = vpop.f32.mrb[0].mxu0
      %v1010 = vadd.f32 %v663, %v1009
      %v1011 = vpop.f32.mrb[0].mxu0
      %1012 = vmatprep.mubr.f32.mxu0 0.0
      %1013 = vmatmul.mubr.f32.gmra.mrb[0].mxu0 %v767
      %v1014 = vpop.f32.mrb[0].mxu0
      %v1015 = vadd.f32 %v668, %v1014
      %v1016 = vpop.f32.mrb[0].mxu0
      %1017 = vmatprep.mubr.f32.mxu0 0.0
      %1018 = vmatmul.mubr.f32.gmra.mrb[0].mxu0 %v769
      %v1019 = vpop.f32.mrb[0].mxu0
      %v1020 = vadd.f32 %v673, %v1019
      %v1021 = vpop.f32.mrb[0].mxu0
      %1022 = vmatprep.mubr.f32.mxu0 0.0
      %1023 = vmatmul.mubr.f32.gmra.mrb[0].mxu0 %v771
      %v1024 = vpop.f32.mrb[0].mxu0
      %v1025 = vadd.f32 %v678, %v1024
      %v1026 = vpop.f32.mrb[0].mxu0
      %1027 = vmatprep.mubr.f32.mxu0 0.0
      %1028 = vmatmul.mubr.f32.gmra.mrb[0].mxu0 %v773
      %v1029 = vpop.f32.mrb[0].mxu0
      %v1030 = vadd.f32 %v683, %v1029
      %v1031 = vpop.f32.mrb[0].mxu0
      %1032 = vmatprep.mubr.f32.mxu0 0.0
      %1033 = vmatmul.mubr.f32.gmra.mrb[0].mxu0 %v775
      %v1034 = vpop.f32.mrb[0].mxu0
      %v1035 = vadd.f32 %v688, %v1034
      %v1036 = vpop.f32.mrb[0].mxu0
      %1037 = vmatprep.mubr.f32.mxu0 0.0
      %1038 = vmatmul.mubr.f32.gmra.mrb[0].mxu0 %v777
      %v1039 = vpop.f32.mrb[0].mxu0
      %v1040 = vadd.f32 %v693, %v1039
      %v1041 = vpop.f32.mrb[0].mxu0
      %1042 = vmatprep.mubr.f32.mxu0 0.0
      %1043 = vmatmul.mubr.f32.gmra.mrb[0].mxu0 %v779
      %v1044 = vpop.f32.mrb[0].mxu0
      %v1045 = vadd.f32 %v698, %v1044
      %v1046 = vpop.f32.mrb[0].mxu0
      %1047 = vdwg.mxu0
      %v1048 = vrot.slane %v171, 4
      %v1049 = vrot.slane %v172, 4
      %v1050 = vsel %vm433, %v1048, %v1049
      %v1051 = vrot.slane %v173, 4
      %v1052 = vsel %vm433, %v1049, %v1051
      %v1053 = vrot.slane %v174, 4
      %v1054 = vsel %vm433, %v1051, %v1053
      %v1055 = vrot.slane %v175, 4
      %v1056 = vsel %vm433, %v1053, %v1055
      %v1057 = vrot.slane %v176, 4
      %v1058 = vsel %vm433, %v1055, %v1057
      %v1059 = vrot.slane %v177, 4
      %v1060 = vsel %vm433, %v1057, %v1059
      %v1061 = vrot.slane %v178, 4
      %v1062 = vsel %vm433, %v1059, %v1061
      %v1063 = vrot.slane %v179, 4
      %v1064 = vsel %vm433, %v1061, %v1063
      %v1065 = vrot.slane %v180, 4
      %v1066 = vsel %vm433, %v1063, %v1065
      %v1067 = vrot.slane %v181, 4
      %v1068 = vsel %vm433, %v1065, %v1067
      %v1069 = vrot.slane %v182, 4
      %v1070 = vsel %vm433, %v1067, %v1069
      %v1071 = vrot.slane %v183, 4
      %v1072 = vsel %vm433, %v1069, %v1071
      %v1073 = vrot.slane %v184, 4
      %v1074 = vsel %vm433, %v1071, %v1073
      %v1075 = vrot.slane %v185, 4
      %v1076 = vsel %vm433, %v1073, %v1075
      %v1077 = vrot.slane %v186, 4
      %v1078 = vsel %vm433, %v1075, %v1077
      %v1079 = vrot.slane %v187, 4
      %v1080 = vsel %vm433, %v1077, %v1079
      %v1081 = vrot.slane %v188, 4
      %v1082 = vsel %vm433, %v1079, %v1081
      %v1083 = vrot.slane %v189, 4
      %v1084 = vsel %vm433, %v1081, %v1083
      %v1085 = vrot.slane %v190, 4
      %v1086 = vsel %vm433, %v1083, %v1085
      %v1087 = vrot.slane %v191, 4
      %v1088 = vsel %vm433, %v1085, %v1087
      %v1089 = vrot.slane %v192, 4
      %v1090 = vsel %vm433, %v1087, %v1089
      %v1091 = vrot.slane %v193, 4
      %v1092 = vsel %vm433, %v1089, %v1091
      %v1093 = vrot.slane %v194, 4
      %v1094 = vsel %vm433, %v1091, %v1093
      %v1095 = vrot.slane %v195, 4
      %v1096 = vsel %vm433, %v1093, %v1095
      %v1097 = vrot.slane %v196, 4
      %v1098 = vsel %vm433, %v1095, %v1097
      %v1099 = vrot.slane %v197, 4
      %v1100 = vsel %vm433, %v1097, %v1099
      %v1101 = vrot.slane %v198, 4
      %v1102 = vsel %vm433, %v1099, %v1101
      %v1103 = vrot.slane %v199, 4
      %v1104 = vsel %vm433, %v1101, %v1103
      %v1105 = vrot.slane %v200, 4
      %v1106 = vsel %vm433, %v1103, %v1105
      %v1107 = vrot.slane %v201, 4
      %v1108 = vsel %vm433, %v1105, %v1107
      %v1109 = vrot.slane %v202, 4
      %v1110 = vsel %vm433, %v1107, %v1109
      %v1111 = vrot.slane %v203, 4
      %v1112 = vsel %vm433, %v1109, %v1111
      %v1113 = vrot.slane %v204, 4
      %v1114 = vsel %vm433, %v1111, %v1113
      %v1115 = vrot.slane %v205, 4
      %v1116 = vsel %vm433, %v1113, %v1115
      %v1117 = vrot.slane %v206, 4
      %v1118 = vsel %vm433, %v1115, %v1117
      %v1119 = vrot.slane %v207, 4
      %v1120 = vsel %vm433, %v1117, %v1119
      %v1121 = vrot.slane %v208, 4
      %v1122 = vsel %vm433, %v1119, %v1121
      %v1123 = vrot.slane %v209, 4
      %v1124 = vsel %vm433, %v1121, %v1123
      %v1125 = vrot.slane %v210, 4
      %v1126 = vsel %vm433, %v1123, %v1125
      %v1127 = vrot.slane %v211, 4
      %v1128 = vsel %vm433, %v1125, %v1127
      %v1129 = vsel %vm352, %v1050, 0
      %v1131 = vsel %vm352, %v1052, 0
      %v1133 = vsel %vm352, %v1054, 0
      %v1135 = vsel %vm352, %v1056, 0
      %v1137 = vsel %vm352, %v1058, 0
      %v1139 = vsel %vm352, %v1060, 0
      %v1141 = vsel %vm352, %v1062, 0
      %v1143 = vsel %vm352, %v1064, 0
      %v1145 = vsel %vm352, %v1066, 0
      %v1147 = vsel %vm352, %v1068, 0
      %v1149 = vsel %vm352, %v1070, 0
      %v1151 = vsel %vm352, %v1072, 0
      %v1153 = vsel %vm352, %v1074, 0
      %v1155 = vsel %vm352, %v1076, 0
      %v1157 = vsel %vm352, %v1078, 0
      %v1159 = vsel %vm352, %v1080, 0
      %v1161 = vsel %vm352, %v1082, 0
      %v1163 = vsel %vm352, %v1084, 0
      %v1165 = vsel %vm352, %v1086, 0
      %v1167 = vsel %vm352, %v1088, 0
      %v1169 = vsel %vm352, %v1090, 0
      %v1171 = vsel %vm352, %v1092, 0
      %v1173 = vsel %vm352, %v1094, 0
      %v1175 = vsel %vm352, %v1096, 0
      %v1177 = vsel %vm352, %v1098, 0
      %v1179 = vsel %vm352, %v1100, 0
      %v1181 = vsel %vm352, %v1102, 0
      %v1183 = vsel %vm352, %v1104, 0
      %v1185 = vsel %vm352, %v1106, 0
      %v1187 = vsel %vm352, %v1108, 0
      %v1189 = vsel %vm352, %v1110, 0
      %v1191 = vsel %vm352, %v1112, 0
      %v1193 = vsel %vm352, %v1114, 0
      %v1195 = vsel %vm352, %v1116, 0
      %v1197 = vsel %vm352, %v1118, 0
      %v1199 = vsel %vm352, %v1120, 0
      %v1201 = vsel %vm352, %v1122, 0
      %v1203 = vsel %vm352, %v1124, 0
      %v1205 = vsel %vm352, %v1126, 0
      %v1207 = vsel %vm352, %v1128, 0
      %v1210 = vsel %vm433, %v223, 0
      %1212 = vmatprep.subr.mxu0 0.0
      %1213 = vmatpush1.msra.mxu0 %v1210
      %1214 = vmatprep.subr.mxu0 0.0
      %1215 = vmatpush1.msra.mxu0 0.0
      %1216 = vmatprep.subr.mxu0 0.0
      %1217 = vmatpush1.msra.mxu0 0.0
      %1218 = vmatprep.subr.mxu0 0.0
      %1219 = vmatpush1.msra.mxu0 0.0
      %1220 = vmatprep.subr.mxu0 0.0
      %1221 = vmatpush1.msra.mxu0 0.0
      %1222 = vmatprep.subr.mxu0 0.0
      %1223 = vmatpush1.msra.mxu0 0.0
      %1224 = vmatprep.subr.mxu0 0.0
      %1225 = vmatpush1.msra.mxu0 0.0
      %1226 = vmatprep.subr.mxu0 0.0
      %1227 = vmatpush1.msra.mxu0 0.0
      %1228 = vmatprep.subr.mxu0 0.0
      %1229 = vmatpush1.msra.mxu0 0.0
      %1230 = vmatprep.subr.mxu0 0.0
      %1231 = vmatpush1.msra.mxu0 0.0
      %1232 = vmatprep.subr.mxu0 0.0
      %1233 = vmatpush1.msra.mxu0 0.0
      %1234 = vmatprep.subr.mxu0 0.0
      %1235 = vmatpush1.msra.mxu0 0.0
      %1236 = vmatprep.subr.mxu0 0.0
      %1237 = vmatpush1.msra.mxu0 0.0
      %1238 = vmatprep.subr.mxu0 0.0
      %1239 = vmatpush1.msra.mxu0 0.0
      %1240 = vmatprep.subr.mxu0 0.0
      %1241 = vmatpush1.msra.mxu0 0.0
      %1242 = vmatprep.subr.mxu0 0.0
      %1243 = vmatpush1.msra.mxu0 0.0
      %1244 = vmatprep.subr.mxu0 0.0
      %1245 = vmatpush1.msra.mxu0 0.0
      %1246 = vmatprep.subr.mxu0 0.0
      %1247 = vmatpush1.msra.mxu0 0.0
      %1248 = vmatprep.subr.mxu0 0.0
      %1249 = vmatpush1.msra.mxu0 0.0
      %1250 = vmatprep.subr.mxu0 0.0
      %1251 = vmatpush1.msra.mxu0 0.0
      %1252 = vmatprep.subr.mxu0 0.0
      %1253 = vmatpush1.msra.mxu0 0.0
      %1254 = vmatprep.subr.mxu0 0.0
      %1255 = vmatpush1.msra.mxu0 0.0
      %1256 = vmatprep.subr.mxu0 0.0
      %1257 = vmatpush1.msra.mxu0 0.0
      %1258 = vmatprep.subr.mxu0 0.0
      %1259 = vmatpush1.msra.mxu0 0.0
      %1260 = vmatprep.subr.mxu0 0.0
      %1261 = vmatpush1.msra.mxu0 0.0
      %1262 = vmatprep.subr.mxu0 0.0
      %1263 = vmatpush1.msra.mxu0 0.0
      %1264 = vmatprep.subr.mxu0 0.0
      %1265 = vmatpush1.msra.mxu0 0.0
      %1266 = vmatprep.subr.mxu0 0.0
      %1267 = vmatpush1.msra.mxu0 0.0
      %1268 = vmatprep.subr.mxu0 0.0
      %1269 = vmatpush1.msra.mxu0 0.0
      %1270 = vmatprep.subr.mxu0 0.0
      %1271 = vmatpush1.msra.mxu0 0.0
      %1272 = vmatprep.subr.mxu0 0.0
      %1273 = vmatpush1.msra.mxu0 0.0
      %1274 = vmatprep.subr.mxu0 0.0
      %1275 = vmatpush1.msra.mxu0 0.0
      %1276 = vmatprep.mubr.f32.mxu0 0.0
      %1277 = vmatmul.mubr.f32.gmra.mrb[0].mxu0 %v1129
      %v1278 = vpop.f32.mrb[0].mxu0
      %v1279 = vadd.f32 0.0, %v1278
      %v1280 = vpop.f32.mrb[0].mxu0
      %1281 = vmatprep.mubr.f32.mxu0 0.0
      %1282 = vmatmul.mubr.f32.gmra.mrb[0].mxu0 %v1131
      %v1283 = vpop.f32.mrb[0].mxu0
      %v1284 = vadd.f32 0.0, %v1283
      %v1285 = vpop.f32.mrb[0].mxu0
      %1286 = vmatprep.mubr.f32.mxu0 0.0
      %1287 = vmatmul.mubr.f32.gmra.mrb[0].mxu0 %v1133
      %v1288 = vpop.f32.mrb[0].mxu0
      %v1289 = vadd.f32 0.0, %v1288
      %v1290 = vpop.f32.mrb[0].mxu0
      %1291 = vmatprep.mubr.f32.mxu0 0.0
      %1292 = vmatmul.mubr.f32.gmra.mrb[0].mxu0 %v1135
      %v1293 = vpop.f32.mrb[0].mxu0
      %v1294 = vadd.f32 0.0, %v1293
      %v1295 = vpop.f32.mrb[0].mxu0
      %1296 = vmatprep.mubr.f32.mxu0 0.0
      %1297 = vmatmul.mubr.f32.gmra.mrb[0].mxu0 %v1137
      %v1298 = vpop.f32.mrb[0].mxu0
      %v1299 = vadd.f32 0.0, %v1298
      %v1300 = vpop.f32.mrb[0].mxu0
      %1301 = vmatprep.mubr.f32.mxu0 0.0
      %1302 = vmatmul.mubr.f32.gmra.mrb[0].mxu0 %v1139
      %v1303 = vpop.f32.mrb[0].mxu0
      %v1304 = vadd.f32 0.0, %v1303
      %v1305 = vpop.f32.mrb[0].mxu0
      %1306 = vmatprep.mubr.f32.mxu0 0.0
      %1307 = vmatmul.mubr.f32.gmra.mrb[0].mxu0 %v1141
      %v1308 = vpop.f32.mrb[0].mxu0
      %v1309 = vadd.f32 0.0, %v1308
      %v1310 = vpop.f32.mrb[0].mxu0
      %1311 = vmatprep.mubr.f32.mxu0 0.0
      %1312 = vmatmul.mubr.f32.gmra.mrb[0].mxu0 %v1143
      %v1313 = vpop.f32.mrb[0].mxu0
      %v1314 = vadd.f32 0.0, %v1313
      %v1315 = vpop.f32.mrb[0].mxu0
      %1316 = vmatprep.mubr.f32.mxu0 0.0
      %1317 = vmatmul.mubr.f32.gmra.mrb[0].mxu0 %v1145
      %v1318 = vpop.f32.mrb[0].mxu0
      %v1319 = vadd.f32 0.0, %v1318
      %v1320 = vpop.f32.mrb[0].mxu0
      %1321 = vmatprep.mubr.f32.mxu0 0.0
      %1322 = vmatmul.mubr.f32.gmra.mrb[0].mxu0 %v1147
      %v1323 = vpop.f32.mrb[0].mxu0
      %v1324 = vadd.f32 0.0, %v1323
      %v1325 = vpop.f32.mrb[0].mxu0
      %1326 = vmatprep.mubr.f32.mxu0 0.0
      %1327 = vmatmul.mubr.f32.gmra.mrb[0].mxu0 %v1149
      %v1328 = vpop.f32.mrb[0].mxu0
      %v1329 = vadd.f32 0.0, %v1328
      %v1330 = vpop.f32.mrb[0].mxu0
      %1331 = vmatprep.mubr.f32.mxu0 0.0
      %1332 = vmatmul.mubr.f32.gmra.mrb[0].mxu0 %v1151
      %v1333 = vpop.f32.mrb[0].mxu0
      %v1334 = vadd.f32 0.0, %v1333
      %v1335 = vpop.f32.mrb[0].mxu0
      %1336 = vmatprep.mubr.f32.mxu0 0.0
      %1337 = vmatmul.mubr.f32.gmra.mrb[0].mxu0 %v1153
      %v1338 = vpop.f32.mrb[0].mxu0
      %v1339 = vadd.f32 0.0, %v1338
      %v1340 = vpop.f32.mrb[0].mxu0
      %1341 = vmatprep.mubr.f32.mxu0 0.0
      %1342 = vmatmul.mubr.f32.gmra.mrb[0].mxu0 %v1155
      %v1343 = vpop.f32.mrb[0].mxu0
      %v1344 = vadd.f32 0.0, %v1343
      %v1345 = vpop.f32.mrb[0].mxu0
      %1346 = vmatprep.mubr.f32.mxu0 0.0
      %1347 = vmatmul.mubr.f32.gmra.mrb[0].mxu0 %v1157
      %v1348 = vpop.f32.mrb[0].mxu0
      %v1349 = vadd.f32 0.0, %v1348
      %v1350 = vpop.f32.mrb[0].mxu0
      %1351 = vmatprep.mubr.f32.mxu0 0.0
      %1352 = vmatmul.mubr.f32.gmra.mrb[0].mxu0 %v1159
      %v1353 = vpop.f32.mrb[0].mxu0
      %v1354 = vadd.f32 0.0, %v1353
      %v1355 = vpop.f32.mrb[0].mxu0
      %1356 = vmatprep.mubr.f32.mxu0 0.0
      %1357 = vmatmul.mubr.f32.gmra.mrb[0].mxu0 %v1161
      %v1358 = vpop.f32.mrb[0].mxu0
      %v1359 = vadd.f32 0.0, %v1358
      %v1360 = vpop.f32.mrb[0].mxu0
      %1361 = vmatprep.mubr.f32.mxu0 0.0
      %1362 = vmatmul.mubr.f32.gmra.mrb[0].mxu0 %v1163
      %v1363 = vpop.f32.mrb[0].mxu0
      %v1364 = vadd.f32 0.0, %v1363
      %v1365 = vpop.f32.mrb[0].mxu0
      %1366 = vmatprep.mubr.f32.mxu0 0.0
      %1367 = vmatmul.mubr.f32.gmra.mrb[0].mxu0 %v1165
      %v1368 = vpop.f32.mrb[0].mxu0
      %v1369 = vadd.f32 0.0, %v1368
      %v1370 = vpop.f32.mrb[0].mxu0
      %1371 = vmatprep.mubr.f32.mxu0 0.0
      %1372 = vmatmul.mubr.f32.gmra.mrb[0].mxu0 %v1167
      %v1373 = vpop.f32.mrb[0].mxu0
      %v1374 = vadd.f32 0.0, %v1373
      %v1375 = vpop.f32.mrb[0].mxu0
      %1376 = vmatprep.mubr.f32.mxu0 0.0
      %1377 = vmatmul.mubr.f32.gmra.mrb[0].mxu0 %v1169
      %v1378 = vpop.f32.mrb[0].mxu0
      %v1379 = vadd.f32 0.0, %v1378
      %v1380 = vpop.f32.mrb[0].mxu0
      %1381 = vmatprep.mubr.f32.mxu0 0.0
      %1382 = vmatmul.mubr.f32.gmra.mrb[0].mxu0 %v1171
      %v1383 = vpop.f32.mrb[0].mxu0
      %v1384 = vadd.f32 0.0, %v1383
      %v1385 = vpop.f32.mrb[0].mxu0
      %1386 = vmatprep.mubr.f32.mxu0 0.0
      %1387 = vmatmul.mubr.f32.gmra.mrb[0].mxu0 %v1173
      %v1388 = vpop.f32.mrb[0].mxu0
      %v1389 = vadd.f32 0.0, %v1388
      %v1390 = vpop.f32.mrb[0].mxu0
      %1391 = vmatprep.mubr.f32.mxu0 0.0
      %1392 = vmatmul.mubr.f32.gmra.mrb[0].mxu0 %v1175
      %v1393 = vpop.f32.mrb[0].mxu0
      %v1394 = vadd.f32 0.0, %v1393
      %v1395 = vpop.f32.mrb[0].mxu0
      %1396 = vmatprep.mubr.f32.mxu0 0.0
      %1397 = vmatmul.mubr.f32.gmra.mrb[0].mxu0 %v1177
      %v1398 = vpop.f32.mrb[0].mxu0
      %v1399 = vadd.f32 0.0, %v1398
      %v1400 = vpop.f32.mrb[0].mxu0
      %1401 = vmatprep.mubr.f32.mxu0 0.0
      %1402 = vmatmul.mubr.f32.gmra.mrb[0].mxu0 %v1179
      %v1403 = vpop.f32.mrb[0].mxu0
      %v1404 = vadd.f32 0.0, %v1403
      %v1405 = vpop.f32.mrb[0].mxu0
      %1406 = vmatprep.mubr.f32.mxu0 0.0
      %1407 = vmatmul.mubr.f32.gmra.mrb[0].mxu0 %v1181
      %v1408 = vpop.f32.mrb[0].mxu0
      %v1409 = vadd.f32 0.0, %v1408
      %v1410 = vpop.f32.mrb[0].mxu0
      %1411 = vmatprep.mubr.f32.mxu0 0.0
      %1412 = vmatmul.mubr.f32.gmra.mrb[0].mxu0 %v1183
      %v1413 = vpop.f32.mrb[0].mxu0
      %v1414 = vadd.f32 0.0, %v1413
      %v1415 = vpop.f32.mrb[0].mxu0
      %1416 = vmatprep.mubr.f32.mxu0 0.0
      %1417 = vmatmul.mubr.f32.gmra.mrb[0].mxu0 %v1185
      %v1418 = vpop.f32.mrb[0].mxu0
      %v1419 = vadd.f32 0.0, %v1418
      %v1420 = vpop.f32.mrb[0].mxu0
      %1421 = vmatprep.mubr.f32.mxu0 0.0
      %1422 = vmatmul.mubr.f32.gmra.mrb[0].mxu0 %v1187
      %v1423 = vpop.f32.mrb[0].mxu0
      %v1424 = vadd.f32 0.0, %v1423
      %v1425 = vpop.f32.mrb[0].mxu0
      %1426 = vmatprep.mubr.f32.mxu0 0.0
      %1427 = vmatmul.mubr.f32.gmra.mrb[0].mxu0 %v1189
      %v1428 = vpop.f32.mrb[0].mxu0
      %v1429 = vadd.f32 0.0, %v1428
      %v1430 = vpop.f32.mrb[0].mxu0
      %1431 = vmatprep.mubr.f32.mxu0 0.0
      %1432 = vmatmul.mubr.f32.gmra.mrb[0].mxu0 %v1191
      %v1433 = vpop.f32.mrb[0].mxu0
      %v1434 = vadd.f32 0.0, %v1433
      %v1435 = vpop.f32.mrb[0].mxu0
      %1436 = vmatprep.mubr.f32.mxu0 0.0
      %1437 = vmatmul.mubr.f32.gmra.mrb[0].mxu0 %v1193
      %v1438 = vpop.f32.mrb[0].mxu0
      %v1439 = vadd.f32 0.0, %v1438
      %v1440 = vpop.f32.mrb[0].mxu0
      %1441 = vmatprep.mubr.f32.mxu0 0.0
      %1442 = vmatmul.mubr.f32.gmra.mrb[0].mxu0 %v1195
      %v1443 = vpop.f32.mrb[0].mxu0
      %v1444 = vadd.f32 0.0, %v1443
      %v1445 = vpop.f32.mrb[0].mxu0
      %1446 = vmatprep.mubr.f32.mxu0 0.0
      %1447 = vmatmul.mubr.f32.gmra.mrb[0].mxu0 %v1197
      %v1448 = vpop.f32.mrb[0].mxu0
      %v1449 = vadd.f32 0.0, %v1448
      %v1450 = vpop.f32.mrb[0].mxu0
      %1451 = vmatprep.mubr.f32.mxu0 0.0
      %1452 = vmatmul.mubr.f32.gmra.mrb[0].mxu0 %v1199
      %v1453 = vpop.f32.mrb[0].mxu0
      %v1454 = vadd.f32 0.0, %v1453
      %v1455 = vpop.f32.mrb[0].mxu0
      %1456 = vmatprep.mubr.f32.mxu0 0.0
      %1457 = vmatmul.mubr.f32.gmra.mrb[0].mxu0 %v1201
      %v1458 = vpop.f32.mrb[0].mxu0
      %v1459 = vadd.f32 0.0, %v1458
      %v1460 = vpop.f32.mrb[0].mxu0
      %1461 = vmatprep.mubr.f32.mxu0 0.0
      %1462 = vmatmul.mubr.f32.gmra.mrb[0].mxu0 %v1203
      %v1463 = vpop.f32.mrb[0].mxu0
      %v1464 = vadd.f32 0.0, %v1463
      %v1465 = vpop.f32.mrb[0].mxu0
      %1466 = vmatprep.mubr.f32.mxu0 0.0
      %1467 = vmatmul.mubr.f32.gmra.mrb[0].mxu0 %v1205
      %v1468 = vpop.f32.mrb[0].mxu0
      %v1469 = vadd.f32 0.0, %v1468
      %v1470 = vpop.f32.mrb[0].mxu0
      %1471 = vmatprep.mubr.f32.mxu0 0.0
      %1472 = vmatmul.mubr.f32.gmra.mrb[0].mxu0 %v1207
      %v1473 = vpop.f32.mrb[0].mxu0
      %v1474 = vadd.f32 0.0, %v1473
      %v1475 = vpop.f32.mrb[0].mxu0
      %1476 = vdwg.mxu0
      %v1477 = vadd.f32 %v850, %v1279
      %v1478 = vadd.f32 %v855, %v1284
      %v1479 = vadd.f32 %v860, %v1289
      %v1480 = vadd.f32 %v865, %v1294
      %v1481 = vadd.f32 %v870, %v1299
      %v1482 = vadd.f32 %v875, %v1304
      %v1483 = vadd.f32 %v880, %v1309
      %v1484 = vadd.f32 %v885, %v1314
      %v1485 = vadd.f32 %v890, %v1319
      %v1486 = vadd.f32 %v895, %v1324
      %v1487 = vadd.f32 %v900, %v1329
      %v1488 = vadd.f32 %v905, %v1334
      %v1489 = vadd.f32 %v910, %v1339
      %v1490 = vadd.f32 %v915, %v1344
      %v1491 = vadd.f32 %v920, %v1349
      %v1492 = vadd.f32 %v925, %v1354
      %v1493 = vadd.f32 %v930, %v1359
      %v1494 = vadd.f32 %v935, %v1364
      %v1495 = vadd.f32 %v940, %v1369
      %v1496 = vadd.f32 %v945, %v1374
      %v1497 = vadd.f32 %v950, %v1379
      %v1498 = vadd.f32 %v955, %v1384
      %v1499 = vadd.f32 %v960, %v1389
      %v1500 = vadd.f32 %v965, %v1394
      %v1501 = vadd.f32 %v970, %v1399
      %v1502 = vadd.f32 %v975, %v1404
      %v1503 = vadd.f32 %v980, %v1409
      %v1504 = vadd.f32 %v985, %v1414
      %v1505 = vadd.f32 %v990, %v1419
      %v1506 = vadd.f32 %v995, %v1424
      %v1507 = vadd.f32 %v1000, %v1429
      %v1508 = vadd.f32 %v1005, %v1434
      %v1509 = vadd.f32 %v1010, %v1439
      %v1510 = vadd.f32 %v1015, %v1444
      %v1511 = vadd.f32 %v1020, %v1449
      %v1512 = vadd.f32 %v1025, %v1454
      %v1513 = vadd.f32 %v1030, %v1459
      %v1514 = vadd.f32 %v1035, %v1464
      %v1515 = vadd.f32 %v1040, %v1469
      %v1516 = vadd.f32 %v1045, %v1474
      %v1517 = vrot.slane %v223, 4
      %v1518 = vsel %vm352, %v211, 0
      %v1521 = vsel %vm352, %v212, 0
      %v1524 = vsel %vm352, %v213, 0
      %v1527 = vsel %vm352, %v214, 0
      %v1530 = vsel %vm352, %v215, 0
      %v1532 = vsel %vm433, %v1517, 0
      %1534 = vmatprep.subr.mxu0 0.0
      %1535 = vmatpush1.msra.mxu0 %v1532
      %1536 = vmatprep.subr.mxu0 0.0
      %1537 = vmatpush1.msra.mxu0 0.0
      %1538 = vmatprep.subr.mxu0 0.0
      %1539 = vmatpush1.msra.mxu0 0.0
      %1540 = vmatprep.subr.mxu0 0.0
      %1541 = vmatpush1.msra.mxu0 0.0
      %1542 = vmatprep.subr.mxu0 0.0
      %1543 = vmatpush1.msra.mxu0 0.0
      %1544 = vmatprep.subr.mxu0 0.0
      %1545 = vmatpush1.msra.mxu0 0.0
      %1546 = vmatprep.subr.mxu0 0.0
      %1547 = vmatpush1.msra.mxu0 0.0
      %1548 = vmatprep.subr.mxu0 0.0
      %1549 = vmatpush1.msra.mxu0 0.0
      %1550 = vmatprep.subr.mxu0 0.0
      %1551 = vmatpush1.msra.mxu0 0.0
      %1552 = vmatprep.subr.mxu0 0.0
      %1553 = vmatpush1.msra.mxu0 0.0
      %1554 = vmatprep.subr.mxu0 0.0
      %1555 = vmatpush1.msra.mxu0 0.0
      %1556 = vmatprep.subr.mxu0 0.0
      %1557 = vmatpush1.msra.mxu0 0.0
      %1558 = vmatprep.subr.mxu0 0.0
      %1559 = vmatpush1.msra.mxu0 0.0
      %1560 = vmatprep.subr.mxu0 0.0
      %1561 = vmatpush1.msra.mxu0 0.0
      %1562 = vmatprep.subr.mxu0 0.0
      %1563 = vmatpush1.msra.mxu0 0.0
      %1564 = vmatprep.subr.mxu0 0.0
      %1565 = vmatpush1.msra.mxu0 0.0
      %1566 = vmatprep.subr.mxu0 0.0
      %1567 = vmatpush1.msra.mxu0 0.0
      %1568 = vmatprep.subr.mxu0 0.0
      %1569 = vmatpush1.msra.mxu0 0.0
      %1570 = vmatprep.subr.mxu0 0.0
      %1571 = vmatpush1.msra.mxu0 0.0
      %1572 = vmatprep.subr.mxu0 0.0
      %1573 = vmatpush1.msra.mxu0 0.0
      %1574 = vmatprep.subr.mxu0 0.0
      %1575 = vmatpush1.msra.mxu0 0.0
      %1576 = vmatprep.subr.mxu0 0.0
      %1577 = vmatpush1.msra.mxu0 0.0
      %1578 = vmatprep.subr.mxu0 0.0
      %1579 = vmatpush1.msra.mxu0 0.0
      %1580 = vmatprep.subr.mxu0 0.0
      %1581 = vmatpush1.msra.mxu0 0.0
      %1582 = vmatprep.subr.mxu0 0.0
      %1583 = vmatpush1.msra.mxu0 0.0
      %1584 = vmatprep.subr.mxu0 0.0
      %1585 = vmatpush1.msra.mxu0 0.0
      %1586 = vmatprep.subr.mxu0 0.0
      %1587 = vmatpush1.msra.mxu0 0.0
      %1588 = vmatprep.subr.mxu0 0.0
      %1589 = vmatpush1.msra.mxu0 0.0
      %1590 = vmatprep.subr.mxu0 0.0
      %1591 = vmatpush1.msra.mxu0 0.0
      %1592 = vmatprep.subr.mxu0 0.0
      %1593 = vmatpush1.msra.mxu0 0.0
      %1594 = vmatprep.subr.mxu0 0.0
      %1595 = vmatpush1.msra.mxu0 0.0
      %1596 = vmatprep.subr.mxu0 0.0
      %1597 = vmatpush1.msra.mxu0 0.0
      %1598 = vmatprep.mubr.f32.mxu0 0.0
      %1599 = vmatmul.mubr.f32.gmra.mrb[0].mxu0 %v711
      %v1600 = vpop.f32.mrb[0].mxu0
      %v1601 = vadd.f32 0.0, %v1600
      %v1602 = vpop.f32.mrb[0].mxu0
      %1603 = vmatprep.mubr.f32.mxu0 0.0
      %1604 = vmatmul.mubr.f32.gmra.mrb[0].mxu0 %v713
      %v1605 = vpop.f32.mrb[0].mxu0
      %v1606 = vadd.f32 0.0, %v1605
      %v1607 = vpop.f32.mrb[0].mxu0
      %1608 = vmatprep.mubr.f32.mxu0 0.0
      %1609 = vmatmul.mubr.f32.gmra.mrb[0].mxu0 %v715
      %v1610 = vpop.f32.mrb[0].mxu0
      %v1611 = vadd.f32 0.0, %v1610
      %v1612 = vpop.f32.mrb[0].mxu0
      %1613 = vmatprep.mubr.f32.mxu0 0.0
      %1614 = vmatmul.mubr.f32.gmra.mrb[0].mxu0 %v717
      %v1615 = vpop.f32.mrb[0].mxu0
      %v1616 = vadd.f32 0.0, %v1615
      %v1617 = vpop.f32.mrb[0].mxu0
      %1618 = vmatprep.mubr.f32.mxu0 0.0
      %1619 = vmatmul.mubr.f32.gmra.mrb[0].mxu0 %v719
      %v1620 = vpop.f32.mrb[0].mxu0
      %v1621 = vadd.f32 0.0, %v1620
      %v1622 = vpop.f32.mrb[0].mxu0
      %1623 = vmatprep.mubr.f32.mxu0 0.0
      %1624 = vmatmul.mubr.f32.gmra.mrb[0].mxu0 %v721
      %v1625 = vpop.f32.mrb[0].mxu0
      %v1626 = vadd.f32 0.0, %v1625
      %v1627 = vpop.f32.mrb[0].mxu0
      %1628 = vmatprep.mubr.f32.mxu0 0.0
      %1629 = vmatmul.mubr.f32.gmra.mrb[0].mxu0 %v723
      %v1630 = vpop.f32.mrb[0].mxu0
      %v1631 = vadd.f32 0.0, %v1630
      %v1632 = vpop.f32.mrb[0].mxu0
      %1633 = vmatprep.mubr.f32.mxu0 0.0
      %1634 = vmatmul.mubr.f32.gmra.mrb[0].mxu0 %v725
      %v1635 = vpop.f32.mrb[0].mxu0
      %v1636 = vadd.f32 0.0, %v1635
      %v1637 = vpop.f32.mrb[0].mxu0
      %1638 = vmatprep.mubr.f32.mxu0 0.0
      %1639 = vmatmul.mubr.f32.gmra.mrb[0].mxu0 %v727
      %v1640 = vpop.f32.mrb[0].mxu0
      %v1641 = vadd.f32 0.0, %v1640
      %v1642 = vpop.f32.mrb[0].mxu0
      %1643 = vmatprep.mubr.f32.mxu0 0.0
      %1644 = vmatmul.mubr.f32.gmra.mrb[0].mxu0 %v729
      %v1645 = vpop.f32.mrb[0].mxu0
      %v1646 = vadd.f32 0.0, %v1645
      %v1647 = vpop.f32.mrb[0].mxu0
      %1648 = vmatprep.mubr.f32.mxu0 0.0
      %1649 = vmatmul.mubr.f32.gmra.mrb[0].mxu0 %v731
      %v1650 = vpop.f32.mrb[0].mxu0
      %v1651 = vadd.f32 0.0, %v1650
      %v1652 = vpop.f32.mrb[0].mxu0
      %1653 = vmatprep.mubr.f32.mxu0 0.0
      %1654 = vmatmul.mubr.f32.gmra.mrb[0].mxu0 %v733
      %v1655 = vpop.f32.mrb[0].mxu0
      %v1656 = vadd.f32 0.0, %v1655
      %v1657 = vpop.f32.mrb[0].mxu0
      %1658 = vmatprep.mubr.f32.mxu0 0.0
      %1659 = vmatmul.mubr.f32.gmra.mrb[0].mxu0 %v735
      %v1660 = vpop.f32.mrb[0].mxu0
      %v1661 = vadd.f32 0.0, %v1660
      %v1662 = vpop.f32.mrb[0].mxu0
      %1663 = vmatprep.mubr.f32.mxu0 0.0
      %1664 = vmatmul.mubr.f32.gmra.mrb[0].mxu0 %v737
      %v1665 = vpop.f32.mrb[0].mxu0
      %v1666 = vadd.f32 0.0, %v1665
      %v1667 = vpop.f32.mrb[0].mxu0
      %1668 = vmatprep.mubr.f32.mxu0 0.0
      %1669 = vmatmul.mubr.f32.gmra.mrb[0].mxu0 %v739
      %v1670 = vpop.f32.mrb[0].mxu0
      %v1671 = vadd.f32 0.0, %v1670
      %v1672 = vpop.f32.mrb[0].mxu0
      %1673 = vmatprep.mubr.f32.mxu0 0.0
      %1674 = vmatmul.mubr.f32.gmra.mrb[0].mxu0 %v741
      %v1675 = vpop.f32.mrb[0].mxu0
      %v1676 = vadd.f32 0.0, %v1675
      %v1677 = vpop.f32.mrb[0].mxu0
      %1678 = vmatprep.mubr.f32.mxu0 0.0
      %1679 = vmatmul.mubr.f32.gmra.mrb[0].mxu0 %v743
      %v1680 = vpop.f32.mrb[0].mxu0
      %v1681 = vadd.f32 0.0, %v1680
      %v1682 = vpop.f32.mrb[0].mxu0
      %1683 = vmatprep.mubr.f32.mxu0 0.0
      %1684 = vmatmul.mubr.f32.gmra.mrb[0].mxu0 %v745
      %v1685 = vpop.f32.mrb[0].mxu0
      %v1686 = vadd.f32 0.0, %v1685
      %v1687 = vpop.f32.mrb[0].mxu0
      %1688 = vmatprep.mubr.f32.mxu0 0.0
      %1689 = vmatmul.mubr.f32.gmra.mrb[0].mxu0 %v747
      %v1690 = vpop.f32.mrb[0].mxu0
      %v1691 = vadd.f32 0.0, %v1690
      %v1692 = vpop.f32.mrb[0].mxu0
      %1693 = vmatprep.mubr.f32.mxu0 0.0
      %1694 = vmatmul.mubr.f32.gmra.mrb[0].mxu0 %v749
      %v1695 = vpop.f32.mrb[0].mxu0
      %v1696 = vadd.f32 0.0, %v1695
      %v1697 = vpop.f32.mrb[0].mxu0
      %1698 = vmatprep.mubr.f32.mxu0 0.0
      %1699 = vmatmul.mubr.f32.gmra.mrb[0].mxu0 %v751
      %v1700 = vpop.f32.mrb[0].mxu0
      %v1701 = vadd.f32 0.0, %v1700
      %v1702 = vpop.f32.mrb[0].mxu0
      %1703 = vmatprep.mubr.f32.mxu0 0.0
      %1704 = vmatmul.mubr.f32.gmra.mrb[0].mxu0 %v753
      %v1705 = vpop.f32.mrb[0].mxu0
      %v1706 = vadd.f32 0.0, %v1705
      %v1707 = vpop.f32.mrb[0].mxu0
      %1708 = vmatprep.mubr.f32.mxu0 0.0
      %1709 = vmatmul.mubr.f32.gmra.mrb[0].mxu0 %v755
      %v1710 = vpop.f32.mrb[0].mxu0
      %v1711 = vadd.f32 0.0, %v1710
      %v1712 = vpop.f32.mrb[0].mxu0
      %1713 = vmatprep.mubr.f32.mxu0 0.0
      %1714 = vmatmul.mubr.f32.gmra.mrb[0].mxu0 %v757
      %v1715 = vpop.f32.mrb[0].mxu0
      %v1716 = vadd.f32 0.0, %v1715
      %v1717 = vpop.f32.mrb[0].mxu0
      %1718 = vmatprep.mubr.f32.mxu0 0.0
      %1719 = vmatmul.mubr.f32.gmra.mrb[0].mxu0 %v759
      %v1720 = vpop.f32.mrb[0].mxu0
      %v1721 = vadd.f32 0.0, %v1720
      %v1722 = vpop.f32.mrb[0].mxu0
      %1723 = vmatprep.mubr.f32.mxu0 0.0
      %1724 = vmatmul.mubr.f32.gmra.mrb[0].mxu0 %v761
      %v1725 = vpop.f32.mrb[0].mxu0
      %v1726 = vadd.f32 0.0, %v1725
      %v1727 = vpop.f32.mrb[0].mxu0
      %1728 = vmatprep.mubr.f32.mxu0 0.0
      %1729 = vmatmul.mubr.f32.gmra.mrb[0].mxu0 %v763
      %v1730 = vpop.f32.mrb[0].mxu0
      %v1731 = vadd.f32 0.0, %v1730
      %v1732 = vpop.f32.mrb[0].mxu0
      %1733 = vmatprep.mubr.f32.mxu0 0.0
      %1734 = vmatmul.mubr.f32.gmra.mrb[0].mxu0 %v765
      %v1735 = vpop.f32.mrb[0].mxu0
      %v1736 = vadd.f32 0.0, %v1735
      %v1737 = vpop.f32.mrb[0].mxu0
      %1738 = vmatprep.mubr.f32.mxu0 0.0
      %1739 = vmatmul.mubr.f32.gmra.mrb[0].mxu0 %v767
      %v1740 = vpop.f32.mrb[0].mxu0
      %v1741 = vadd.f32 0.0, %v1740
      %v1742 = vpop.f32.mrb[0].mxu0
      %1743 = vmatprep.mubr.f32.mxu0 0.0
      %1744 = vmatmul.mubr.f32.gmra.mrb[0].mxu0 %v769
      %v1745 = vpop.f32.mrb[0].mxu0
      %v1746 = vadd.f32 0.0, %v1745
      %v1747 = vpop.f32.mrb[0].mxu0
      %1748 = vmatprep.mubr.f32.mxu0 0.0
      %1749 = vmatmul.mubr.f32.gmra.mrb[0].mxu0 %v771
      %v1750 = vpop.f32.mrb[0].mxu0
      %v1751 = vadd.f32 0.0, %v1750
      %v1752 = vpop.f32.mrb[0].mxu0
      %1753 = vmatprep.mubr.f32.mxu0 0.0
      %1754 = vmatmul.mubr.f32.gmra.mrb[0].mxu0 %v773
      %v1755 = vpop.f32.mrb[0].mxu0
      %v1756 = vadd.f32 0.0, %v1755
      %v1757 = vpop.f32.mrb[0].mxu0
      %1758 = vmatprep.mubr.f32.mxu0 0.0
      %1759 = vmatmul.mubr.f32.gmra.mrb[0].mxu0 %v775
      %v1760 = vpop.f32.mrb[0].mxu0
      %v1761 = vadd.f32 0.0, %v1760
      %v1762 = vpop.f32.mrb[0].mxu0
      %1763 = vmatprep.mubr.f32.mxu0 0.0
      %1764 = vmatmul.mubr.f32.gmra.mrb[0].mxu0 %v777
      %v1765 = vpop.f32.mrb[0].mxu0
      %v1766 = vadd.f32 0.0, %v1765
      %v1767 = vpop.f32.mrb[0].mxu0
      %1768 = vmatprep.mubr.f32.mxu0 0.0
      %1769 = vmatmul.mubr.f32.gmra.mrb[0].mxu0 %v779
      %v1770 = vpop.f32.mrb[0].mxu0
      %v1771 = vadd.f32 0.0, %v1770
      %v1772 = vpop.f32.mrb[0].mxu0
      %1773 = vmatprep.mubr.f32.mxu0 0.0
      %1774 = vmatmul.mubr.f32.gmra.mrb[0].mxu0 %v1518
      %v1775 = vpop.f32.mrb[0].mxu0
      %v1776 = vadd.f32 0.0, %v1775
      %v1777 = vpop.f32.mrb[0].mxu0
      %1778 = vmatprep.mubr.f32.mxu0 0.0
      %1779 = vmatmul.mubr.f32.gmra.mrb[0].mxu0 %v1521
      %v1780 = vpop.f32.mrb[0].mxu0
      %v1781 = vadd.f32 0.0, %v1780
      %v1782 = vpop.f32.mrb[0].mxu0
      %1783 = vmatprep.mubr.f32.mxu0 0.0
      %1784 = vmatmul.mubr.f32.gmra.mrb[0].mxu0 %v1524
      %v1785 = vpop.f32.mrb[0].mxu0
      %v1786 = vadd.f32 0.0, %v1785
      %v1787 = vpop.f32.mrb[0].mxu0
      %1788 = vmatprep.mubr.f32.mxu0 0.0
      %1789 = vmatmul.mubr.f32.gmra.mrb[0].mxu0 %v1527
      %v1790 = vpop.f32.mrb[0].mxu0
      %v1791 = vadd.f32 0.0, %v1790
      %v1792 = vpop.f32.mrb[0].mxu0
      %1793 = vmatprep.mubr.f32.mxu0 0.0
      %1794 = vmatmul.mubr.f32.gmra.mrb[0].mxu0 %v1530
      %v1795 = vpop.f32.mrb[0].mxu0
      %v1796 = vadd.f32 0.0, %v1795
      %v1797 = vpop.f32.mrb[0].mxu0
      %1798 = vdwg.mxu0
      %v1799 = vadd.f32 %v1477, %v1601
      %v1800 = vadd.f32 %v1478, %v1606
      %v1801 = vadd.f32 %v1479, %v1611
      %v1802 = vadd.f32 %v1480, %v1616
      %v1803 = vadd.f32 %v1481, %v1621
      %v1804 = vadd.f32 %v1482, %v1626
      %v1805 = vadd.f32 %v1483, %v1631
      %v1806 = vadd.f32 %v1484, %v1636
      %v1807 = vadd.f32 %v1485, %v1641
      %v1808 = vadd.f32 %v1486, %v1646
      %v1809 = vadd.f32 %v1487, %v1651
      %v1810 = vadd.f32 %v1488, %v1656
      %v1811 = vadd.f32 %v1489, %v1661
      %v1812 = vadd.f32 %v1490, %v1666
      %v1813 = vadd.f32 %v1491, %v1671
      %v1814 = vadd.f32 %v1492, %v1676
      %v1815 = vadd.f32 %v1493, %v1681
      %v1816 = vadd.f32 %v1494, %v1686
      %v1817 = vadd.f32 %v1495, %v1691
      %v1818 = vadd.f32 %v1496, %v1696
      %v1819 = vadd.f32 %v1497, %v1701
      %v1820 = vadd.f32 %v1498, %v1706
      %v1821 = vadd.f32 %v1499, %v1711
      %v1822 = vadd.f32 %v1500, %v1716
      %v1823 = vadd.f32 %v1501, %v1721
      %v1824 = vadd.f32 %v1502, %v1726
      %v1825 = vadd.f32 %v1503, %v1731
      %v1826 = vadd.f32 %v1504, %v1736
      %v1827 = vadd.f32 %v1505, %v1741
      %v1828 = vadd.f32 %v1506, %v1746
      %v1829 = vadd.f32 %v1507, %v1751
      %v1830 = vadd.f32 %v1508, %v1756
      %v1831 = vadd.f32 %v1509, %v1761
      %v1832 = vadd.f32 %v1510, %v1766
      %v1833 = vadd.f32 %v1511, %v1771
      %v1834 = vadd.f32 %v1512, %v1776
      %v1835 = vadd.f32 %v1513, %v1781
      %v1836 = vadd.f32 %v1514, %v1786
      %v1837 = vadd.f32 %v1515, %v1791
      %v1838 = vadd.f32 %v1516, %v1796
      %v1840 = vrot.slane %v212, 2
      %v1841 = vsel %vm268, %v348, %v1840
      %v1842 = vrot.slane %v213, 2
      %v1843 = vsel %vm268, %v1840, %v1842
      %v1844 = vrot.slane %v214, 2
      %v1845 = vsel %vm268, %v1842, %v1844
      %v1846 = vrot.slane %v215, 2
      %v1847 = vsel %vm268, %v1844, %v1846
      %v1848 = vrot.slane %v216, 2
      %v1849 = vsel %vm268, %v1846, %v1848
      %v1850 = vsel %vm352, %v1841, 0
      %v1852 = vsel %vm352, %v1843, 0
      %v1854 = vsel %vm352, %v1845, 0
      %v1856 = vsel %vm352, %v1847, 0
      %v1858 = vsel %vm352, %v1849, 0
      %v1861 = vsel %vm433, %v224, 0
      %1863 = vmatprep.subr.mxu0 0.0
      %1864 = vmatpush1.msra.mxu0 %v1861
      %1865 = vmatprep.subr.mxu0 0.0
      %1866 = vmatpush1.msra.mxu0 0.0
      %1867 = vmatprep.subr.mxu0 0.0
      %1868 = vmatpush1.msra.mxu0 0.0
      %1869 = vmatprep.subr.mxu0 0.0
      %1870 = vmatpush1.msra.mxu0 0.0
      %1871 = vmatprep.subr.mxu0 0.0
      %1872 = vmatpush1.msra.mxu0 0.0
      %1873 = vmatprep.subr.mxu0 0.0
      %1874 = vmatpush1.msra.mxu0 0.0
      %1875 = vmatprep.subr.mxu0 0.0
      %1876 = vmatpush1.msra.mxu0 0.0
      %1877 = vmatprep.subr.mxu0 0.0
      %1878 = vmatpush1.msra.mxu0 0.0
      %1879 = vmatprep.subr.mxu0 0.0
      %1880 = vmatpush1.msra.mxu0 0.0
      %1881 = vmatprep.subr.mxu0 0.0
      %1882 = vmatpush1.msra.mxu0 0.0
      %1883 = vmatprep.subr.mxu0 0.0
      %1884 = vmatpush1.msra.mxu0 0.0
      %1885 = vmatprep.subr.mxu0 0.0
      %1886 = vmatpush1.msra.mxu0 0.0
      %1887 = vmatprep.subr.mxu0 0.0
      %1888 = vmatpush1.msra.mxu0 0.0
      %1889 = vmatprep.subr.mxu0 0.0
      %1890 = vmatpush1.msra.mxu0 0.0
      %1891 = vmatprep.subr.mxu0 0.0
      %1892 = vmatpush1.msra.mxu0 0.0
      %1893 = vmatprep.subr.mxu0 0.0
      %1894 = vmatpush1.msra.mxu0 0.0
      %1895 = vmatprep.subr.mxu0 0.0
      %1896 = vmatpush1.msra.mxu0 0.0
      %1897 = vmatprep.subr.mxu0 0.0
      %1898 = vmatpush1.msra.mxu0 0.0
      %1899 = vmatprep.subr.mxu0 0.0
      %1900 = vmatpush1.msra.mxu0 0.0
      %1901 = vmatprep.subr.mxu0 0.0
      %1902 = vmatpush1.msra.mxu0 0.0
      %1903 = vmatprep.subr.mxu0 0.0
      %1904 = vmatpush1.msra.mxu0 0.0
      %1905 = vmatprep.subr.mxu0 0.0
      %1906 = vmatpush1.msra.mxu0 0.0
      %1907 = vmatprep.subr.mxu0 0.0
      %1908 = vmatpush1.msra.mxu0 0.0
      %1909 = vmatprep.subr.mxu0 0.0
      %1910 = vmatpush1.msra.mxu0 0.0
      %1911 = vmatprep.subr.mxu0 0.0
      %1912 = vmatpush1.msra.mxu0 0.0
      %1913 = vmatprep.subr.mxu0 0.0
      %1914 = vmatpush1.msra.mxu0 0.0
      %1915 = vmatprep.subr.mxu0 0.0
      %1916 = vmatpush1.msra.mxu0 0.0
      %1917 = vmatprep.subr.mxu0 0.0
      %1918 = vmatpush1.msra.mxu0 0.0
      %1919 = vmatprep.subr.mxu0 0.0
      %1920 = vmatpush1.msra.mxu0 0.0
      %1921 = vmatprep.subr.mxu0 0.0
      %1922 = vmatpush1.msra.mxu0 0.0
      %1923 = vmatprep.subr.mxu0 0.0
      %1924 = vmatpush1.msra.mxu0 0.0
      %1925 = vmatprep.subr.mxu0 0.0
      %1926 = vmatpush1.msra.mxu0 0.0
      %1927 = vmatprep.mubr.f32.mxu0 0.0
      %1928 = vmatmul.mubr.f32.gmra.mrb[0].mxu0 %v363
      %v1929 = vpop.f32.mrb[0].mxu0
      %v1930 = vadd.f32 0.0, %v1929
      %v1931 = vpop.f32.mrb[0].mxu0
      %1932 = vmatprep.mubr.f32.mxu0 0.0
      %1933 = vmatmul.mubr.f32.gmra.mrb[0].mxu0 %v365
      %v1934 = vpop.f32.mrb[0].mxu0
      %v1935 = vadd.f32 0.0, %v1934
      %v1936 = vpop.f32.mrb[0].mxu0
      %1937 = vmatprep.mubr.f32.mxu0 0.0
      %1938 = vmatmul.mubr.f32.gmra.mrb[0].mxu0 %v367
      %v1939 = vpop.f32.mrb[0].mxu0
      %v1940 = vadd.f32 0.0, %v1939
      %v1941 = vpop.f32.mrb[0].mxu0
      %1942 = vmatprep.mubr.f32.mxu0 0.0
      %1943 = vmatmul.mubr.f32.gmra.mrb[0].mxu0 %v369
      %v1944 = vpop.f32.mrb[0].mxu0
      %v1945 = vadd.f32 0.0, %v1944
      %v1946 = vpop.f32.mrb[0].mxu0
      %1947 = vmatprep.mubr.f32.mxu0 0.0
      %1948 = vmatmul.mubr.f32.gmra.mrb[0].mxu0 %v371
      %v1949 = vpop.f32.mrb[0].mxu0
      %v1950 = vadd.f32 0.0, %v1949
      %v1951 = vpop.f32.mrb[0].mxu0
      %1952 = vmatprep.mubr.f32.mxu0 0.0
      %1953 = vmatmul.mubr.f32.gmra.mrb[0].mxu0 %v373
      %v1954 = vpop.f32.mrb[0].mxu0
      %v1955 = vadd.f32 0.0, %v1954
      %v1956 = vpop.f32.mrb[0].mxu0
      %1957 = vmatprep.mubr.f32.mxu0 0.0
      %1958 = vmatmul.mubr.f32.gmra.mrb[0].mxu0 %v375
      %v1959 = vpop.f32.mrb[0].mxu0
      %v1960 = vadd.f32 0.0, %v1959
      %v1961 = vpop.f32.mrb[0].mxu0
      %1962 = vmatprep.mubr.f32.mxu0 0.0
      %1963 = vmatmul.mubr.f32.gmra.mrb[0].mxu0 %v377
      %v1964 = vpop.f32.mrb[0].mxu0
      %v1965 = vadd.f32 0.0, %v1964
      %v1966 = vpop.f32.mrb[0].mxu0
      %1967 = vmatprep.mubr.f32.mxu0 0.0
      %1968 = vmatmul.mubr.f32.gmra.mrb[0].mxu0 %v379
      %v1969 = vpop.f32.mrb[0].mxu0
      %v1970 = vadd.f32 0.0, %v1969
      %v1971 = vpop.f32.mrb[0].mxu0
      %1972 = vmatprep.mubr.f32.mxu0 0.0
      %1973 = vmatmul.mubr.f32.gmra.mrb[0].mxu0 %v381
      %v1974 = vpop.f32.mrb[0].mxu0
      %v1975 = vadd.f32 0.0, %v1974
      %v1976 = vpop.f32.mrb[0].mxu0
      %1977 = vmatprep.mubr.f32.mxu0 0.0
      %1978 = vmatmul.mubr.f32.gmra.mrb[0].mxu0 %v383
      %v1979 = vpop.f32.mrb[0].mxu0
      %v1980 = vadd.f32 0.0, %v1979
      %v1981 = vpop.f32.mrb[0].mxu0
      %1982 = vmatprep.mubr.f32.mxu0 0.0
      %1983 = vmatmul.mubr.f32.gmra.mrb[0].mxu0 %v385
      %v1984 = vpop.f32.mrb[0].mxu0
      %v1985 = vadd.f32 0.0, %v1984
      %v1986 = vpop.f32.mrb[0].mxu0
      %1987 = vmatprep.mubr.f32.mxu0 0.0
      %1988 = vmatmul.mubr.f32.gmra.mrb[0].mxu0 %v387
      %v1989 = vpop.f32.mrb[0].mxu0
      %v1990 = vadd.f32 0.0, %v1989
      %v1991 = vpop.f32.mrb[0].mxu0
      %1992 = vmatprep.mubr.f32.mxu0 0.0
      %1993 = vmatmul.mubr.f32.gmra.mrb[0].mxu0 %v389
      %v1994 = vpop.f32.mrb[0].mxu0
      %v1995 = vadd.f32 0.0, %v1994
      %v1996 = vpop.f32.mrb[0].mxu0
      %1997 = vmatprep.mubr.f32.mxu0 0.0
      %1998 = vmatmul.mubr.f32.gmra.mrb[0].mxu0 %v391
      %v1999 = vpop.f32.mrb[0].mxu0
      %v2000 = vadd.f32 0.0, %v1999
      %v2001 = vpop.f32.mrb[0].mxu0
      %2002 = vmatprep.mubr.f32.mxu0 0.0
      %2003 = vmatmul.mubr.f32.gmra.mrb[0].mxu0 %v393
      %v2004 = vpop.f32.mrb[0].mxu0
      %v2005 = vadd.f32 0.0, %v2004
      %v2006 = vpop.f32.mrb[0].mxu0
      %2007 = vmatprep.mubr.f32.mxu0 0.0
      %2008 = vmatmul.mubr.f32.gmra.mrb[0].mxu0 %v395
      %v2009 = vpop.f32.mrb[0].mxu0
      %v2010 = vadd.f32 0.0, %v2009
      %v2011 = vpop.f32.mrb[0].mxu0
      %2012 = vmatprep.mubr.f32.mxu0 0.0
      %2013 = vmatmul.mubr.f32.gmra.mrb[0].mxu0 %v397
      %v2014 = vpop.f32.mrb[0].mxu0
      %v2015 = vadd.f32 0.0, %v2014
      %v2016 = vpop.f32.mrb[0].mxu0
      %2017 = vmatprep.mubr.f32.mxu0 0.0
      %2018 = vmatmul.mubr.f32.gmra.mrb[0].mxu0 %v399
      %v2019 = vpop.f32.mrb[0].mxu0
      %v2020 = vadd.f32 0.0, %v2019
      %v2021 = vpop.f32.mrb[0].mxu0
      %2022 = vmatprep.mubr.f32.mxu0 0.0
      %2023 = vmatmul.mubr.f32.gmra.mrb[0].mxu0 %v401
      %v2024 = vpop.f32.mrb[0].mxu0
      %v2025 = vadd.f32 0.0, %v2024
      %v2026 = vpop.f32.mrb[0].mxu0
      %2027 = vmatprep.mubr.f32.mxu0 0.0
      %2028 = vmatmul.mubr.f32.gmra.mrb[0].mxu0 %v403
      %v2029 = vpop.f32.mrb[0].mxu0
      %v2030 = vadd.f32 0.0, %v2029
      %v2031 = vpop.f32.mrb[0].mxu0
      %2032 = vmatprep.mubr.f32.mxu0 0.0
      %2033 = vmatmul.mubr.f32.gmra.mrb[0].mxu0 %v405
      %v2034 = vpop.f32.mrb[0].mxu0
      %v2035 = vadd.f32 0.0, %v2034
      %v2036 = vpop.f32.mrb[0].mxu0
      %2037 = vmatprep.mubr.f32.mxu0 0.0
      %2038 = vmatmul.mubr.f32.gmra.mrb[0].mxu0 %v407
      %v2039 = vpop.f32.mrb[0].mxu0
      %v2040 = vadd.f32 0.0, %v2039
      %v2041 = vpop.f32.mrb[0].mxu0
      %2042 = vmatprep.mubr.f32.mxu0 0.0
      %2043 = vmatmul.mubr.f32.gmra.mrb[0].mxu0 %v409
      %v2044 = vpop.f32.mrb[0].mxu0
      %v2045 = vadd.f32 0.0, %v2044
      %v2046 = vpop.f32.mrb[0].mxu0
      %2047 = vmatprep.mubr.f32.mxu0 0.0
      %2048 = vmatmul.mubr.f32.gmra.mrb[0].mxu0 %v411
      %v2049 = vpop.f32.mrb[0].mxu0
      %v2050 = vadd.f32 0.0, %v2049
      %v2051 = vpop.f32.mrb[0].mxu0
      %2052 = vmatprep.mubr.f32.mxu0 0.0
      %2053 = vmatmul.mubr.f32.gmra.mrb[0].mxu0 %v413
      %v2054 = vpop.f32.mrb[0].mxu0
      %v2055 = vadd.f32 0.0, %v2054
      %v2056 = vpop.f32.mrb[0].mxu0
      %2057 = vmatprep.mubr.f32.mxu0 0.0
      %2058 = vmatmul.mubr.f32.gmra.mrb[0].mxu0 %v415
      %v2059 = vpop.f32.mrb[0].mxu0
      %v2060 = vadd.f32 0.0, %v2059
      %v2061 = vpop.f32.mrb[0].mxu0
      %2062 = vmatprep.mubr.f32.mxu0 0.0
      %2063 = vmatmul.mubr.f32.gmra.mrb[0].mxu0 %v417
      %v2064 = vpop.f32.mrb[0].mxu0
      %v2065 = vadd.f32 0.0, %v2064
      %v2066 = vpop.f32.mrb[0].mxu0
      %2067 = vmatprep.mubr.f32.mxu0 0.0
      %2068 = vmatmul.mubr.f32.gmra.mrb[0].mxu0 %v419
      %v2069 = vpop.f32.mrb[0].mxu0
      %v2070 = vadd.f32 0.0, %v2069
      %v2071 = vpop.f32.mrb[0].mxu0
      %2072 = vmatprep.mubr.f32.mxu0 0.0
      %2073 = vmatmul.mubr.f32.gmra.mrb[0].mxu0 %v421
      %v2074 = vpop.f32.mrb[0].mxu0
      %v2075 = vadd.f32 0.0, %v2074
      %v2076 = vpop.f32.mrb[0].mxu0
      %2077 = vmatprep.mubr.f32.mxu0 0.0
      %2078 = vmatmul.mubr.f32.gmra.mrb[0].mxu0 %v423
      %v2079 = vpop.f32.mrb[0].mxu0
      %v2080 = vadd.f32 0.0, %v2079
      %v2081 = vpop.f32.mrb[0].mxu0
      %2082 = vmatprep.mubr.f32.mxu0 0.0
      %2083 = vmatmul.mubr.f32.gmra.mrb[0].mxu0 %v425
      %v2084 = vpop.f32.mrb[0].mxu0
      %v2085 = vadd.f32 0.0, %v2084
      %v2086 = vpop.f32.mrb[0].mxu0
      %2087 = vmatprep.mubr.f32.mxu0 0.0
      %2088 = vmatmul.mubr.f32.gmra.mrb[0].mxu0 %v427
      %v2089 = vpop.f32.mrb[0].mxu0
      %v2090 = vadd.f32 0.0, %v2089
      %v2091 = vpop.f32.mrb[0].mxu0
      %2092 = vmatprep.mubr.f32.mxu0 0.0
      %2093 = vmatmul.mubr.f32.gmra.mrb[0].mxu0 %v429
      %v2094 = vpop.f32.mrb[0].mxu0
      %v2095 = vadd.f32 0.0, %v2094
      %v2096 = vpop.f32.mrb[0].mxu0
      %2097 = vmatprep.mubr.f32.mxu0 0.0
      %2098 = vmatmul.mubr.f32.gmra.mrb[0].mxu0 %v431
      %v2099 = vpop.f32.mrb[0].mxu0
      %v2100 = vadd.f32 0.0, %v2099
      %v2101 = vpop.f32.mrb[0].mxu0
      %2102 = vmatprep.mubr.f32.mxu0 0.0
      %2103 = vmatmul.mubr.f32.gmra.mrb[0].mxu0 %v1850
      %v2104 = vpop.f32.mrb[0].mxu0
      %v2105 = vadd.f32 0.0, %v2104
      %v2106 = vpop.f32.mrb[0].mxu0
      %2107 = vmatprep.mubr.f32.mxu0 0.0
      %2108 = vmatmul.mubr.f32.gmra.mrb[0].mxu0 %v1852
      %v2109 = vpop.f32.mrb[0].mxu0
      %v2110 = vadd.f32 0.0, %v2109
      %v2111 = vpop.f32.mrb[0].mxu0
      %2112 = vmatprep.mubr.f32.mxu0 0.0
      %2113 = vmatmul.mubr.f32.gmra.mrb[0].mxu0 %v1854
      %v2114 = vpop.f32.mrb[0].mxu0
      %v2115 = vadd.f32 0.0, %v2114
      %v2116 = vpop.f32.mrb[0].mxu0
      %2117 = vmatprep.mubr.f32.mxu0 0.0
      %2118 = vmatmul.mubr.f32.gmra.mrb[0].mxu0 %v1856
      %v2119 = vpop.f32.mrb[0].mxu0
      %v2120 = vadd.f32 0.0, %v2119
      %v2121 = vpop.f32.mrb[0].mxu0
      %2122 = vmatprep.mubr.f32.mxu0 0.0
      %2123 = vmatmul.mubr.f32.gmra.mrb[0].mxu0 %v1858
      %v2124 = vpop.f32.mrb[0].mxu0
      %v2125 = vadd.f32 0.0, %v2124
      %v2126 = vpop.f32.mrb[0].mxu0
      %2127 = vdwg.mxu0
      %v2128 = vadd.f32 %v1799, %v1930
      %v2129 = vadd.f32 %v1800, %v1935
      %v2130 = vadd.f32 %v1801, %v1940
      %v2131 = vadd.f32 %v1802, %v1945
      %v2132 = vadd.f32 %v1803, %v1950
      %v2133 = vadd.f32 %v1804, %v1955
      %v2134 = vadd.f32 %v1805, %v1960
      %v2135 = vadd.f32 %v1806, %v1965
      %v2136 = vadd.f32 %v1807, %v1970
      %v2137 = vadd.f32 %v1808, %v1975
      %v2138 = vadd.f32 %v1809, %v1980
      %v2139 = vadd.f32 %v1810, %v1985
      %v2140 = vadd.f32 %v1811, %v1990
      %v2141 = vadd.f32 %v1812, %v1995
      %v2142 = vadd.f32 %v1813, %v2000
      %v2143 = vadd.f32 %v1814, %v2005
      %v2144 = vadd.f32 %v1815, %v2010
      %v2145 = vadd.f32 %v1816, %v2015
      %v2146 = vadd.f32 %v1817, %v2020
      %v2147 = vadd.f32 %v1818, %v2025
      %v2148 = vadd.f32 %v1819, %v2030
      %v2149 = vadd.f32 %v1820, %v2035
      %v2150 = vadd.f32 %v1821, %v2040
      %v2151 = vadd.f32 %v1822, %v2045
      %v2152 = vadd.f32 %v1823, %v2050
      %v2153 = vadd.f32 %v1824, %v2055
      %v2154 = vadd.f32 %v1825, %v2060
      %v2155 = vadd.f32 %v1826, %v2065
      %v2156 = vadd.f32 %v1827, %v2070
      %v2157 = vadd.f32 %v1828, %v2075
      %v2158 = vadd.f32 %v1829, %v2080
      %v2159 = vadd.f32 %v1830, %v2085
      %v2160 = vadd.f32 %v1831, %v2090
      %v2161 = vadd.f32 %v1832, %v2095
      %v2162 = vadd.f32 %v1833, %v2100
      %v2163 = vadd.f32 %v1834, %v2105
      %v2164 = vadd.f32 %v1835, %v2110
      %v2165 = vadd.f32 %v1836, %v2115
      %v2166 = vadd.f32 %v1837, %v2120
      %v2167 = vadd.f32 %v1838, %v2125
      %v2168 = vrot.slane %v212, 4
      %v2169 = vsel %vm433, %v1127, %v2168
      %v2170 = vrot.slane %v213, 4
      %v2171 = vsel %vm433, %v2168, %v2170
      %v2172 = vrot.slane %v214, 4
      %v2173 = vsel %vm433, %v2170, %v2172
      %v2174 = vrot.slane %v215, 4
      %v2175 = vsel %vm433, %v2172, %v2174
      %v2176 = vrot.slane %v216, 4
      %v2177 = vsel %vm433, %v2174, %v2176
      %v2178 = vrot.slane %v224, 4
      %v2179 = vsel %vm352, %v2169, 0
      %v2181 = vsel %vm352, %v2171, 0
      %v2183 = vsel %vm352, %v2173, 0
      %v2185 = vsel %vm352, %v2175, 0
      %v2187 = vsel %vm352, %v2177, 0
      %v2189 = vsel %vm433, %v2178, 0
      %2191 = vmatprep.subr.mxu0 0.0
      %2192 = vmatpush1.msra.mxu0 %v2189
      %2193 = vmatprep.subr.mxu0 0.0
      %2194 = vmatpush1.msra.mxu0 0.0
      %2195 = vmatprep.subr.mxu0 0.0
      %2196 = vmatpush1.msra.mxu0 0.0
      %2197 = vmatprep.subr.mxu0 0.0
      %2198 = vmatpush1.msra.mxu0 0.0
      %2199 = vmatprep.subr.mxu0 0.0
      %2200 = vmatpush1.msra.mxu0 0.0
      %2201 = vmatprep.subr.mxu0 0.0
      %2202 = vmatpush1.msra.mxu0 0.0
      %2203 = vmatprep.subr.mxu0 0.0
      %2204 = vmatpush1.msra.mxu0 0.0
      %2205 = vmatprep.subr.mxu0 0.0
      %2206 = vmatpush1.msra.mxu0 0.0
      %2207 = vmatprep.subr.mxu0 0.0
      %2208 = vmatpush1.msra.mxu0 0.0
      %2209 = vmatprep.subr.mxu0 0.0
      %2210 = vmatpush1.msra.mxu0 0.0
      %2211 = vmatprep.subr.mxu0 0.0
      %2212 = vmatpush1.msra.mxu0 0.0
      %2213 = vmatprep.subr.mxu0 0.0
      %2214 = vmatpush1.msra.mxu0 0.0
      %2215 = vmatprep.subr.mxu0 0.0
      %2216 = vmatpush1.msra.mxu0 0.0
      %2217 = vmatprep.subr.mxu0 0.0
      %2218 = vmatpush1.msra.mxu0 0.0
      %2219 = vmatprep.subr.mxu0 0.0
      %2220 = vmatpush1.msra.mxu0 0.0
      %2221 = vmatprep.subr.mxu0 0.0
      %2222 = vmatpush1.msra.mxu0 0.0
      %2223 = vmatprep.subr.mxu0 0.0
      %2224 = vmatpush1.msra.mxu0 0.0
      %2225 = vmatprep.subr.mxu0 0.0
      %2226 = vmatpush1.msra.mxu0 0.0
      %2227 = vmatprep.subr.mxu0 0.0
      %2228 = vmatpush1.msra.mxu0 0.0
      %2229 = vmatprep.subr.mxu0 0.0
      %2230 = vmatpush1.msra.mxu0 0.0
      %2231 = vmatprep.subr.mxu0 0.0
      %2232 = vmatpush1.msra.mxu0 0.0
      %2233 = vmatprep.subr.mxu0 0.0
      %2234 = vmatpush1.msra.mxu0 0.0
      %2235 = vmatprep.subr.mxu0 0.0
      %2236 = vmatpush1.msra.mxu0 0.0
      %2237 = vmatprep.subr.mxu0 0.0
      %2238 = vmatpush1.msra.mxu0 0.0
      %2239 = vmatprep.subr.mxu0 0.0
      %2240 = vmatpush1.msra.mxu0 0.0
      %2241 = vmatprep.subr.mxu0 0.0
      %2242 = vmatpush1.msra.mxu0 0.0
      %2243 = vmatprep.subr.mxu0 0.0
      %2244 = vmatpush1.msra.mxu0 0.0
      %2245 = vmatprep.subr.mxu0 0.0
      %2246 = vmatpush1.msra.mxu0 0.0
      %2247 = vmatprep.subr.mxu0 0.0
      %2248 = vmatpush1.msra.mxu0 0.0
      %2249 = vmatprep.subr.mxu0 0.0
      %2250 = vmatpush1.msra.mxu0 0.0
      %2251 = vmatprep.subr.mxu0 0.0
      %2252 = vmatpush1.msra.mxu0 0.0
      %2253 = vmatprep.subr.mxu0 0.0
      %2254 = vmatpush1.msra.mxu0 0.0
      %2255 = vmatprep.mubr.f32.mxu0 0.0
      %2256 = vmatmul.mubr.f32.gmra.mrb[0].mxu0 %v1139
      %v2257 = vpop.f32.mrb[0].mxu0
      %v2258 = vadd.f32 0.0, %v2257
      %v2259 = vpop.f32.mrb[0].mxu0
      %2260 = vmatprep.mubr.f32.mxu0 0.0
      %2261 = vmatmul.mubr.f32.gmra.mrb[0].mxu0 %v1141
      %v2262 = vpop.f32.mrb[0].mxu0
      %v2263 = vadd.f32 0.0, %v2262
      %v2264 = vpop.f32.mrb[0].mxu0
      %2265 = vmatprep.mubr.f32.mxu0 0.0
      %2266 = vmatmul.mubr.f32.gmra.mrb[0].mxu0 %v1143
      %v2267 = vpop.f32.mrb[0].mxu0
      %v2268 = vadd.f32 0.0, %v2267
      %v2269 = vpop.f32.mrb[0].mxu0
      %2270 = vmatprep.mubr.f32.mxu0 0.0
      %2271 = vmatmul.mubr.f32.gmra.mrb[0].mxu0 %v1145
      %v2272 = vpop.f32.mrb[0].mxu0
      %v2273 = vadd.f32 0.0, %v2272
      %v2274 = vpop.f32.mrb[0].mxu0
      %2275 = vmatprep.mubr.f32.mxu0 0.0
      %2276 = vmatmul.mubr.f32.gmra.mrb[0].mxu0 %v1147
      %v2277 = vpop.f32.mrb[0].mxu0
      %v2278 = vadd.f32 0.0, %v2277
      %v2279 = vpop.f32.mrb[0].mxu0
      %2280 = vmatprep.mubr.f32.mxu0 0.0
      %2281 = vmatmul.mubr.f32.gmra.mrb[0].mxu0 %v1149
      %v2282 = vpop.f32.mrb[0].mxu0
      %v2283 = vadd.f32 0.0, %v2282
      %v2284 = vpop.f32.mrb[0].mxu0
      %2285 = vmatprep.mubr.f32.mxu0 0.0
      %2286 = vmatmul.mubr.f32.gmra.mrb[0].mxu0 %v1151
      %v2287 = vpop.f32.mrb[0].mxu0
      %v2288 = vadd.f32 0.0, %v2287
      %v2289 = vpop.f32.mrb[0].mxu0
      %2290 = vmatprep.mubr.f32.mxu0 0.0
      %2291 = vmatmul.mubr.f32.gmra.mrb[0].mxu0 %v1153
      %v2292 = vpop.f32.mrb[0].mxu0
      %v2293 = vadd.f32 0.0, %v2292
      %v2294 = vpop.f32.mrb[0].mxu0
      %2295 = vmatprep.mubr.f32.mxu0 0.0
      %2296 = vmatmul.mubr.f32.gmra.mrb[0].mxu0 %v1155
      %v2297 = vpop.f32.mrb[0].mxu0
      %v2298 = vadd.f32 0.0, %v2297
      %v2299 = vpop.f32.mrb[0].mxu0
      %2300 = vmatprep.mubr.f32.mxu0 0.0
      %2301 = vmatmul.mubr.f32.gmra.mrb[0].mxu0 %v1157
      %v2302 = vpop.f32.mrb[0].mxu0
      %v2303 = vadd.f32 0.0, %v2302
      %v2304 = vpop.f32.mrb[0].mxu0
      %2305 = vmatprep.mubr.f32.mxu0 0.0
      %2306 = vmatmul.mubr.f32.gmra.mrb[0].mxu0 %v1159
      %v2307 = vpop.f32.mrb[0].mxu0
      %v2308 = vadd.f32 0.0, %v2307
      %v2309 = vpop.f32.mrb[0].mxu0
      %2310 = vmatprep.mubr.f32.mxu0 0.0
      %2311 = vmatmul.mubr.f32.gmra.mrb[0].mxu0 %v1161
      %v2312 = vpop.f32.mrb[0].mxu0
      %v2313 = vadd.f32 0.0, %v2312
      %v2314 = vpop.f32.mrb[0].mxu0
      %2315 = vmatprep.mubr.f32.mxu0 0.0
      %2316 = vmatmul.mubr.f32.gmra.mrb[0].mxu0 %v1163
      %v2317 = vpop.f32.mrb[0].mxu0
      %v2318 = vadd.f32 0.0, %v2317
      %v2319 = vpop.f32.mrb[0].mxu0
      %2320 = vmatprep.mubr.f32.mxu0 0.0
      %2321 = vmatmul.mubr.f32.gmra.mrb[0].mxu0 %v1165
      %v2322 = vpop.f32.mrb[0].mxu0
      %v2323 = vadd.f32 0.0, %v2322
      %v2324 = vpop.f32.mrb[0].mxu0
      %2325 = vmatprep.mubr.f32.mxu0 0.0
      %2326 = vmatmul.mubr.f32.gmra.mrb[0].mxu0 %v1167
      %v2327 = vpop.f32.mrb[0].mxu0
      %v2328 = vadd.f32 0.0, %v2327
      %v2329 = vpop.f32.mrb[0].mxu0
      %2330 = vmatprep.mubr.f32.mxu0 0.0
      %2331 = vmatmul.mubr.f32.gmra.mrb[0].mxu0 %v1169
      %v2332 = vpop.f32.mrb[0].mxu0
      %v2333 = vadd.f32 0.0, %v2332
      %v2334 = vpop.f32.mrb[0].mxu0
      %2335 = vmatprep.mubr.f32.mxu0 0.0
      %2336 = vmatmul.mubr.f32.gmra.mrb[0].mxu0 %v1171
      %v2337 = vpop.f32.mrb[0].mxu0
      %v2338 = vadd.f32 0.0, %v2337
      %v2339 = vpop.f32.mrb[0].mxu0
      %2340 = vmatprep.mubr.f32.mxu0 0.0
      %2341 = vmatmul.mubr.f32.gmra.mrb[0].mxu0 %v1173
      %v2342 = vpop.f32.mrb[0].mxu0
      %v2343 = vadd.f32 0.0, %v2342
      %v2344 = vpop.f32.mrb[0].mxu0
      %2345 = vmatprep.mubr.f32.mxu0 0.0
      %2346 = vmatmul.mubr.f32.gmra.mrb[0].mxu0 %v1175
      %v2347 = vpop.f32.mrb[0].mxu0
      %v2348 = vadd.f32 0.0, %v2347
      %v2349 = vpop.f32.mrb[0].mxu0
      %2350 = vmatprep.mubr.f32.mxu0 0.0
      %2351 = vmatmul.mubr.f32.gmra.mrb[0].mxu0 %v1177
      %v2352 = vpop.f32.mrb[0].mxu0
      %v2353 = vadd.f32 0.0, %v2352
      %v2354 = vpop.f32.mrb[0].mxu0
      %2355 = vmatprep.mubr.f32.mxu0 0.0
      %2356 = vmatmul.mubr.f32.gmra.mrb[0].mxu0 %v1179
      %v2357 = vpop.f32.mrb[0].mxu0
      %v2358 = vadd.f32 0.0, %v2357
      %v2359 = vpop.f32.mrb[0].mxu0
      %2360 = vmatprep.mubr.f32.mxu0 0.0
      %2361 = vmatmul.mubr.f32.gmra.mrb[0].mxu0 %v1181
      %v2362 = vpop.f32.mrb[0].mxu0
      %v2363 = vadd.f32 0.0, %v2362
      %v2364 = vpop.f32.mrb[0].mxu0
      %2365 = vmatprep.mubr.f32.mxu0 0.0
      %2366 = vmatmul.mubr.f32.gmra.mrb[0].mxu0 %v1183
      %v2367 = vpop.f32.mrb[0].mxu0
      %v2368 = vadd.f32 0.0, %v2367
      %v2369 = vpop.f32.mrb[0].mxu0
      %2370 = vmatprep.mubr.f32.mxu0 0.0
      %2371 = vmatmul.mubr.f32.gmra.mrb[0].mxu0 %v1185
      %v2372 = vpop.f32.mrb[0].mxu0
      %v2373 = vadd.f32 0.0, %v2372
      %v2374 = vpop.f32.mrb[0].mxu0
      %2375 = vmatprep.mubr.f32.mxu0 0.0
      %2376 = vmatmul.mubr.f32.gmra.mrb[0].mxu0 %v1187
      %v2377 = vpop.f32.mrb[0].mxu0
      %v2378 = vadd.f32 0.0, %v2377
      %v2379 = vpop.f32.mrb[0].mxu0
      %2380 = vmatprep.mubr.f32.mxu0 0.0
      %2381 = vmatmul.mubr.f32.gmra.mrb[0].mxu0 %v1189
      %v2382 = vpop.f32.mrb[0].mxu0
      %v2383 = vadd.f32 0.0, %v2382
      %v2384 = vpop.f32.mrb[0].mxu0
      %2385 = vmatprep.mubr.f32.mxu0 0.0
      %2386 = vmatmul.mubr.f32.gmra.mrb[0].mxu0 %v1191
      %v2387 = vpop.f32.mrb[0].mxu0
      %v2388 = vadd.f32 0.0, %v2387
      %v2389 = vpop.f32.mrb[0].mxu0
      %2390 = vmatprep.mubr.f32.mxu0 0.0
      %2391 = vmatmul.mubr.f32.gmra.mrb[0].mxu0 %v1193
      %v2392 = vpop.f32.mrb[0].mxu0
      %v2393 = vadd.f32 0.0, %v2392
      %v2394 = vpop.f32.mrb[0].mxu0
      %2395 = vmatprep.mubr.f32.mxu0 0.0
      %2396 = vmatmul.mubr.f32.gmra.mrb[0].mxu0 %v1195
      %v2397 = vpop.f32.mrb[0].mxu0
      %v2398 = vadd.f32 0.0, %v2397
      %v2399 = vpop.f32.mrb[0].mxu0
      %2400 = vmatprep.mubr.f32.mxu0 0.0
      %2401 = vmatmul.mubr.f32.gmra.mrb[0].mxu0 %v1197
      %v2402 = vpop.f32.mrb[0].mxu0
      %v2403 = vadd.f32 0.0, %v2402
      %v2404 = vpop.f32.mrb[0].mxu0
      %2405 = vmatprep.mubr.f32.mxu0 0.0
      %2406 = vmatmul.mubr.f32.gmra.mrb[0].mxu0 %v1199
      %v2407 = vpop.f32.mrb[0].mxu0
      %v2408 = vadd.f32 0.0, %v2407
      %v2409 = vpop.f32.mrb[0].mxu0
      %2410 = vmatprep.mubr.f32.mxu0 0.0
      %2411 = vmatmul.mubr.f32.gmra.mrb[0].mxu0 %v1201
      %v2412 = vpop.f32.mrb[0].mxu0
      %v2413 = vadd.f32 0.0, %v2412
      %v2414 = vpop.f32.mrb[0].mxu0
      %2415 = vmatprep.mubr.f32.mxu0 0.0
      %2416 = vmatmul.mubr.f32.gmra.mrb[0].mxu0 %v1203
      %v2417 = vpop.f32.mrb[0].mxu0
      %v2418 = vadd.f32 0.0, %v2417
      %v2419 = vpop.f32.mrb[0].mxu0
      %2420 = vmatprep.mubr.f32.mxu0 0.0
      %2421 = vmatmul.mubr.f32.gmra.mrb[0].mxu0 %v1205
      %v2422 = vpop.f32.mrb[0].mxu0
      %v2423 = vadd.f32 0.0, %v2422
      %v2424 = vpop.f32.mrb[0].mxu0
      %2425 = vmatprep.mubr.f32.mxu0 0.0
      %2426 = vmatmul.mubr.f32.gmra.mrb[0].mxu0 %v1207
      %v2427 = vpop.f32.mrb[0].mxu0
      %v2428 = vadd.f32 0.0, %v2427
      %v2429 = vpop.f32.mrb[0].mxu0
      %2430 = vmatprep.mubr.f32.mxu0 0.0
      %2431 = vmatmul.mubr.f32.gmra.mrb[0].mxu0 %v2179
      %v2432 = vpop.f32.mrb[0].mxu0
      %v2433 = vadd.f32 0.0, %v2432
      %v2434 = vpop.f32.mrb[0].mxu0
      %2435 = vmatprep.mubr.f32.mxu0 0.0
      %2436 = vmatmul.mubr.f32.gmra.mrb[0].mxu0 %v2181
      %v2437 = vpop.f32.mrb[0].mxu0
      %v2438 = vadd.f32 0.0, %v2437
      %v2439 = vpop.f32.mrb[0].mxu0
      %2440 = vmatprep.mubr.f32.mxu0 0.0
      %2441 = vmatmul.mubr.f32.gmra.mrb[0].mxu0 %v2183
      %v2442 = vpop.f32.mrb[0].mxu0
      %v2443 = vadd.f32 0.0, %v2442
      %v2444 = vpop.f32.mrb[0].mxu0
      %2445 = vmatprep.mubr.f32.mxu0 0.0
      %2446 = vmatmul.mubr.f32.gmra.mrb[0].mxu0 %v2185
      %v2447 = vpop.f32.mrb[0].mxu0
      %v2448 = vadd.f32 0.0, %v2447
      %v2449 = vpop.f32.mrb[0].mxu0
      %2450 = vmatprep.mubr.f32.mxu0 0.0
      %2451 = vmatmul.mubr.f32.gmra.mrb[0].mxu0 %v2187
      %v2452 = vpop.f32.mrb[0].mxu0
      %v2453 = vadd.f32 0.0, %v2452
      %v2454 = vpop.f32.mrb[0].mxu0
      %2455 = vdwg.mxu0
      %v2456 = vadd.f32 %v2128, %v2258
      %v2457 = vadd.f32 %v2129, %v2263
      %v2458 = vadd.f32 %v2130, %v2268
      %v2459 = vadd.f32 %v2131, %v2273
      %v2460 = vadd.f32 %v2132, %v2278
      %v2461 = vadd.f32 %v2133, %v2283
      %v2462 = vadd.f32 %v2134, %v2288
      %v2463 = vadd.f32 %v2135, %v2293
      %v2464 = vadd.f32 %v2136, %v2298
      %v2465 = vadd.f32 %v2137, %v2303
      %v2466 = vadd.f32 %v2138, %v2308
      %v2467 = vadd.f32 %v2139, %v2313
      %v2468 = vadd.f32 %v2140, %v2318
      %v2469 = vadd.f32 %v2141, %v2323
      %v2470 = vadd.f32 %v2142, %v2328
      %v2471 = vadd.f32 %v2143, %v2333
      %v2472 = vadd.f32 %v2144, %v2338
      %v2473 = vadd.f32 %v2145, %v2343
      %v2474 = vadd.f32 %v2146, %v2348
      %v2475 = vadd.f32 %v2147, %v2353
      %v2476 = vadd.f32 %v2148, %v2358
      %v2477 = vadd.f32 %v2149, %v2363
      %v2478 = vadd.f32 %v2150, %v2368
      %v2479 = vadd.f32 %v2151, %v2373
      %v2480 = vadd.f32 %v2152, %v2378
      %v2481 = vadd.f32 %v2153, %v2383
      %v2482 = vadd.f32 %v2154, %v2388
      %v2483 = vadd.f32 %v2155, %v2393
      %v2484 = vadd.f32 %v2156, %v2398
      %v2485 = vadd.f32 %v2157, %v2403
      %v2486 = vadd.f32 %v2158, %v2408
      %v2487 = vadd.f32 %v2159, %v2413
      %v2488 = vadd.f32 %v2160, %v2418
      %v2489 = vadd.f32 %v2161, %v2423
      %v2490 = vadd.f32 %v2162, %v2428
      %v2491 = vadd.f32 %v2163, %v2433
      %v2492 = vadd.f32 %v2164, %v2438
      %v2493 = vadd.f32 %v2165, %v2443
      %v2494 = vadd.f32 %v2166, %v2448
      %v2495 = vadd.f32 %v2167, %v2453
      %v2496 = vsel %vm352, %v216, 0
      %v2499 = vsel %vm352, %v217, 0
      %v2502 = vsel %vm352, %v218, 0
      %v2505 = vsel %vm352, %v219, 0
      %v2508 = vsel %vm352, %v220, 0
      %v2511 = vsel %vm433, %v225, 0
      %2513 = vmatprep.subr.mxu0 0.0
      %2514 = vmatpush1.msra.mxu0 %v2511
      %2515 = vmatprep.subr.mxu0 0.0
      %2516 = vmatpush1.msra.mxu0 0.0
      %2517 = vmatprep.subr.mxu0 0.0
      %2518 = vmatpush1.msra.mxu0 0.0
      %2519 = vmatprep.subr.mxu0 0.0
      %2520 = vmatpush1.msra.mxu0 0.0
      %2521 = vmatprep.subr.mxu0 0.0
      %2522 = vmatpush1.msra.mxu0 0.0
      %2523 = vmatprep.subr.mxu0 0.0
      %2524 = vmatpush1.msra.mxu0 0.0
      %2525 = vmatprep.subr.mxu0 0.0
      %2526 = vmatpush1.msra.mxu0 0.0
      %2527 = vmatprep.subr.mxu0 0.0
      %2528 = vmatpush1.msra.mxu0 0.0
      %2529 = vmatprep.subr.mxu0 0.0
      %2530 = vmatpush1.msra.mxu0 0.0
      %2531 = vmatprep.subr.mxu0 0.0
      %2532 = vmatpush1.msra.mxu0 0.0
      %2533 = vmatprep.subr.mxu0 0.0
      %2534 = vmatpush1.msra.mxu0 0.0
      %2535 = vmatprep.subr.mxu0 0.0
      %2536 = vmatpush1.msra.mxu0 0.0
      %2537 = vmatprep.subr.mxu0 0.0
      %2538 = vmatpush1.msra.mxu0 0.0
      %2539 = vmatprep.subr.mxu0 0.0
      %2540 = vmatpush1.msra.mxu0 0.0
      %2541 = vmatprep.subr.mxu0 0.0
      %2542 = vmatpush1.msra.mxu0 0.0
      %2543 = vmatprep.subr.mxu0 0.0
      %2544 = vmatpush1.msra.mxu0 0.0
      %2545 = vmatprep.subr.mxu0 0.0
      %2546 = vmatpush1.msra.mxu0 0.0
      %2547 = vmatprep.subr.mxu0 0.0
      %2548 = vmatpush1.msra.mxu0 0.0
      %2549 = vmatprep.subr.mxu0 0.0
      %2550 = vmatpush1.msra.mxu0 0.0
      %2551 = vmatprep.subr.mxu0 0.0
      %2552 = vmatpush1.msra.mxu0 0.0
      %2553 = vmatprep.subr.mxu0 0.0
      %2554 = vmatpush1.msra.mxu0 0.0
      %2555 = vmatprep.subr.mxu0 0.0
      %2556 = vmatpush1.msra.mxu0 0.0
      %2557 = vmatprep.subr.mxu0 0.0
      %2558 = vmatpush1.msra.mxu0 0.0
      %2559 = vmatprep.subr.mxu0 0.0
      %2560 = vmatpush1.msra.mxu0 0.0
      %2561 = vmatprep.subr.mxu0 0.0
      %2562 = vmatpush1.msra.mxu0 0.0
      %2563 = vmatprep.subr.mxu0 0.0
      %2564 = vmatpush1.msra.mxu0 0.0
      %2565 = vmatprep.subr.mxu0 0.0
      %2566 = vmatpush1.msra.mxu0 0.0
      %2567 = vmatprep.subr.mxu0 0.0
      %2568 = vmatpush1.msra.mxu0 0.0
      %2569 = vmatprep.subr.mxu0 0.0
      %2570 = vmatpush1.msra.mxu0 0.0
      %2571 = vmatprep.subr.mxu0 0.0
      %2572 = vmatpush1.msra.mxu0 0.0
      %2573 = vmatprep.subr.mxu0 0.0
      %2574 = vmatpush1.msra.mxu0 0.0
      %2575 = vmatprep.subr.mxu0 0.0
      %2576 = vmatpush1.msra.mxu0 0.0
      %2577 = vmatprep.mubr.f32.mxu0 0.0
      %2578 = vmatmul.mubr.f32.gmra.mrb[0].mxu0 %v721
      %v2579 = vpop.f32.mrb[0].mxu0
      %v2580 = vadd.f32 0.0, %v2579
      %v2581 = vpop.f32.mrb[0].mxu0
      %2582 = vmatprep.mubr.f32.mxu0 0.0
      %2583 = vmatmul.mubr.f32.gmra.mrb[0].mxu0 %v723
      %v2584 = vpop.f32.mrb[0].mxu0
      %v2585 = vadd.f32 0.0, %v2584
      %v2586 = vpop.f32.mrb[0].mxu0
      %2587 = vmatprep.mubr.f32.mxu0 0.0
      %2588 = vmatmul.mubr.f32.gmra.mrb[0].mxu0 %v725
      %v2589 = vpop.f32.mrb[0].mxu0
      %v2590 = vadd.f32 0.0, %v2589
      %v2591 = vpop.f32.mrb[0].mxu0
      %2592 = vmatprep.mubr.f32.mxu0 0.0
      %2593 = vmatmul.mubr.f32.gmra.mrb[0].mxu0 %v727
      %v2594 = vpop.f32.mrb[0].mxu0
      %v2595 = vadd.f32 0.0, %v2594
      %v2596 = vpop.f32.mrb[0].mxu0
      %2597 = vmatprep.mubr.f32.mxu0 0.0
      %2598 = vmatmul.mubr.f32.gmra.mrb[0].mxu0 %v729
      %v2599 = vpop.f32.mrb[0].mxu0
      %v2600 = vadd.f32 0.0, %v2599
      %v2601 = vpop.f32.mrb[0].mxu0
      %2602 = vmatprep.mubr.f32.mxu0 0.0
      %2603 = vmatmul.mubr.f32.gmra.mrb[0].mxu0 %v731
      %v2604 = vpop.f32.mrb[0].mxu0
      %v2605 = vadd.f32 0.0, %v2604
      %v2606 = vpop.f32.mrb[0].mxu0
      %2607 = vmatprep.mubr.f32.mxu0 0.0
      %2608 = vmatmul.mubr.f32.gmra.mrb[0].mxu0 %v733
      %v2609 = vpop.f32.mrb[0].mxu0
      %v2610 = vadd.f32 0.0, %v2609
      %v2611 = vpop.f32.mrb[0].mxu0
      %2612 = vmatprep.mubr.f32.mxu0 0.0
      %2613 = vmatmul.mubr.f32.gmra.mrb[0].mxu0 %v735
      %v2614 = vpop.f32.mrb[0].mxu0
      %v2615 = vadd.f32 0.0, %v2614
      %v2616 = vpop.f32.mrb[0].mxu0
      %2617 = vmatprep.mubr.f32.mxu0 0.0
      %2618 = vmatmul.mubr.f32.gmra.mrb[0].mxu0 %v737
      %v2619 = vpop.f32.mrb[0].mxu0
      %v2620 = vadd.f32 0.0, %v2619
      %v2621 = vpop.f32.mrb[0].mxu0
      %2622 = vmatprep.mubr.f32.mxu0 0.0
      %2623 = vmatmul.mubr.f32.gmra.mrb[0].mxu0 %v739
      %v2624 = vpop.f32.mrb[0].mxu0
      %v2625 = vadd.f32 0.0, %v2624
      %v2626 = vpop.f32.mrb[0].mxu0
      %2627 = vmatprep.mubr.f32.mxu0 0.0
      %2628 = vmatmul.mubr.f32.gmra.mrb[0].mxu0 %v741
      %v2629 = vpop.f32.mrb[0].mxu0
      %v2630 = vadd.f32 0.0, %v2629
      %v2631 = vpop.f32.mrb[0].mxu0
      %2632 = vmatprep.mubr.f32.mxu0 0.0
      %2633 = vmatmul.mubr.f32.gmra.mrb[0].mxu0 %v743
      %v2634 = vpop.f32.mrb[0].mxu0
      %v2635 = vadd.f32 0.0, %v2634
      %v2636 = vpop.f32.mrb[0].mxu0
      %2637 = vmatprep.mubr.f32.mxu0 0.0
      %2638 = vmatmul.mubr.f32.gmra.mrb[0].mxu0 %v745
      %v2639 = vpop.f32.mrb[0].mxu0
      %v2640 = vadd.f32 0.0, %v2639
      %v2641 = vpop.f32.mrb[0].mxu0
      %2642 = vmatprep.mubr.f32.mxu0 0.0
      %2643 = vmatmul.mubr.f32.gmra.mrb[0].mxu0 %v747
      %v2644 = vpop.f32.mrb[0].mxu0
      %v2645 = vadd.f32 0.0, %v2644
      %v2646 = vpop.f32.mrb[0].mxu0
      %2647 = vmatprep.mubr.f32.mxu0 0.0
      %2648 = vmatmul.mubr.f32.gmra.mrb[0].mxu0 %v749
      %v2649 = vpop.f32.mrb[0].mxu0
      %v2650 = vadd.f32 0.0, %v2649
      %v2651 = vpop.f32.mrb[0].mxu0
      %2652 = vmatprep.mubr.f32.mxu0 0.0
      %2653 = vmatmul.mubr.f32.gmra.mrb[0].mxu0 %v751
      %v2654 = vpop.f32.mrb[0].mxu0
      %v2655 = vadd.f32 0.0, %v2654
      %v2656 = vpop.f32.mrb[0].mxu0
      %2657 = vmatprep.mubr.f32.mxu0 0.0
      %2658 = vmatmul.mubr.f32.gmra.mrb[0].mxu0 %v753
      %v2659 = vpop.f32.mrb[0].mxu0
      %v2660 = vadd.f32 0.0, %v2659
      %v2661 = vpop.f32.mrb[0].mxu0
      %2662 = vmatprep.mubr.f32.mxu0 0.0
      %2663 = vmatmul.mubr.f32.gmra.mrb[0].mxu0 %v755
      %v2664 = vpop.f32.mrb[0].mxu0
      %v2665 = vadd.f32 0.0, %v2664
      %v2666 = vpop.f32.mrb[0].mxu0
      %2667 = vmatprep.mubr.f32.mxu0 0.0
      %2668 = vmatmul.mubr.f32.gmra.mrb[0].mxu0 %v757
      %v2669 = vpop.f32.mrb[0].mxu0
      %v2670 = vadd.f32 0.0, %v2669
      %v2671 = vpop.f32.mrb[0].mxu0
      %2672 = vmatprep.mubr.f32.mxu0 0.0
      %2673 = vmatmul.mubr.f32.gmra.mrb[0].mxu0 %v759
      %v2674 = vpop.f32.mrb[0].mxu0
      %v2675 = vadd.f32 0.0, %v2674
      %v2676 = vpop.f32.mrb[0].mxu0
      %2677 = vmatprep.mubr.f32.mxu0 0.0
      %2678 = vmatmul.mubr.f32.gmra.mrb[0].mxu0 %v761
      %v2679 = vpop.f32.mrb[0].mxu0
      %v2680 = vadd.f32 0.0, %v2679
      %v2681 = vpop.f32.mrb[0].mxu0
      %2682 = vmatprep.mubr.f32.mxu0 0.0
      %2683 = vmatmul.mubr.f32.gmra.mrb[0].mxu0 %v763
      %v2684 = vpop.f32.mrb[0].mxu0
      %v2685 = vadd.f32 0.0, %v2684
      %v2686 = vpop.f32.mrb[0].mxu0
      %2687 = vmatprep.mubr.f32.mxu0 0.0
      %2688 = vmatmul.mubr.f32.gmra.mrb[0].mxu0 %v765
      %v2689 = vpop.f32.mrb[0].mxu0
      %v2690 = vadd.f32 0.0, %v2689
      %v2691 = vpop.f32.mrb[0].mxu0
      %2692 = vmatprep.mubr.f32.mxu0 0.0
      %2693 = vmatmul.mubr.f32.gmra.mrb[0].mxu0 %v767
      %v2694 = vpop.f32.mrb[0].mxu0
      %v2695 = vadd.f32 0.0, %v2694
      %v2696 = vpop.f32.mrb[0].mxu0
      %2697 = vmatprep.mubr.f32.mxu0 0.0
      %2698 = vmatmul.mubr.f32.gmra.mrb[0].mxu0 %v769
      %v2699 = vpop.f32.mrb[0].mxu0
      %v2700 = vadd.f32 0.0, %v2699
      %v2701 = vpop.f32.mrb[0].mxu0
      %2702 = vmatprep.mubr.f32.mxu0 0.0
      %2703 = vmatmul.mubr.f32.gmra.mrb[0].mxu0 %v771
      %v2704 = vpop.f32.mrb[0].mxu0
      %v2705 = vadd.f32 0.0, %v2704
      %v2706 = vpop.f32.mrb[0].mxu0
      %2707 = vmatprep.mubr.f32.mxu0 0.0
      %2708 = vmatmul.mubr.f32.gmra.mrb[0].mxu0 %v773
      %v2709 = vpop.f32.mrb[0].mxu0
      %v2710 = vadd.f32 0.0, %v2709
      %v2711 = vpop.f32.mrb[0].mxu0
      %2712 = vmatprep.mubr.f32.mxu0 0.0
      %2713 = vmatmul.mubr.f32.gmra.mrb[0].mxu0 %v775
      %v2714 = vpop.f32.mrb[0].mxu0
      %v2715 = vadd.f32 0.0, %v2714
      %v2716 = vpop.f32.mrb[0].mxu0
      %2717 = vmatprep.mubr.f32.mxu0 0.0
      %2718 = vmatmul.mubr.f32.gmra.mrb[0].mxu0 %v777
      %v2719 = vpop.f32.mrb[0].mxu0
      %v2720 = vadd.f32 0.0, %v2719
      %v2721 = vpop.f32.mrb[0].mxu0
      %2722 = vmatprep.mubr.f32.mxu0 0.0
      %2723 = vmatmul.mubr.f32.gmra.mrb[0].mxu0 %v779
      %v2724 = vpop.f32.mrb[0].mxu0
      %v2725 = vadd.f32 0.0, %v2724
      %v2726 = vpop.f32.mrb[0].mxu0
      %2727 = vmatprep.mubr.f32.mxu0 0.0
      %2728 = vmatmul.mubr.f32.gmra.mrb[0].mxu0 %v1518
      %v2729 = vpop.f32.mrb[0].mxu0
      %v2730 = vadd.f32 0.0, %v2729
      %v2731 = vpop.f32.mrb[0].mxu0
      %2732 = vmatprep.mubr.f32.mxu0 0.0
      %2733 = vmatmul.mubr.f32.gmra.mrb[0].mxu0 %v1521
      %v2734 = vpop.f32.mrb[0].mxu0
      %v2735 = vadd.f32 0.0, %v2734
      %v2736 = vpop.f32.mrb[0].mxu0
      %2737 = vmatprep.mubr.f32.mxu0 0.0
      %2738 = vmatmul.mubr.f32.gmra.mrb[0].mxu0 %v1524
      %v2739 = vpop.f32.mrb[0].mxu0
      %v2740 = vadd.f32 0.0, %v2739
      %v2741 = vpop.f32.mrb[0].mxu0
      %2742 = vmatprep.mubr.f32.mxu0 0.0
      %2743 = vmatmul.mubr.f32.gmra.mrb[0].mxu0 %v1527
      %v2744 = vpop.f32.mrb[0].mxu0
      %v2745 = vadd.f32 0.0, %v2744
      %v2746 = vpop.f32.mrb[0].mxu0
      %2747 = vmatprep.mubr.f32.mxu0 0.0
      %2748 = vmatmul.mubr.f32.gmra.mrb[0].mxu0 %v1530
      %v2749 = vpop.f32.mrb[0].mxu0
      %v2750 = vadd.f32 0.0, %v2749
      %v2751 = vpop.f32.mrb[0].mxu0
      %2752 = vmatprep.mubr.f32.mxu0 0.0
      %2753 = vmatmul.mubr.f32.gmra.mrb[0].mxu0 %v2496
      %v2754 = vpop.f32.mrb[0].mxu0
      %v2755 = vadd.f32 0.0, %v2754
      %v2756 = vpop.f32.mrb[0].mxu0
      %2757 = vmatprep.mubr.f32.mxu0 0.0
      %2758 = vmatmul.mubr.f32.gmra.mrb[0].mxu0 %v2499
      %v2759 = vpop.f32.mrb[0].mxu0
      %v2760 = vadd.f32 0.0, %v2759
      %v2761 = vpop.f32.mrb[0].mxu0
      %2762 = vmatprep.mubr.f32.mxu0 0.0
      %2763 = vmatmul.mubr.f32.gmra.mrb[0].mxu0 %v2502
      %v2764 = vpop.f32.mrb[0].mxu0
      %v2765 = vadd.f32 0.0, %v2764
      %v2766 = vpop.f32.mrb[0].mxu0
      %2767 = vmatprep.mubr.f32.mxu0 0.0
      %2768 = vmatmul.mubr.f32.gmra.mrb[0].mxu0 %v2505
      %v2769 = vpop.f32.mrb[0].mxu0
      %v2770 = vadd.f32 0.0, %v2769
      %v2771 = vpop.f32.mrb[0].mxu0
      %2772 = vmatprep.mubr.f32.mxu0 0.0
      %2773 = vmatmul.mubr.f32.gmra.mrb[0].mxu0 %v2508
      %v2774 = vpop.f32.mrb[0].mxu0
      %v2775 = vadd.f32 0.0, %v2774
      %v2776 = vpop.f32.mrb[0].mxu0
      %2777 = vdwg.mxu0
      %v2778 = vadd.f32 %v2456, %v2580
      %v2779 = vadd.f32 %v2457, %v2585
      %v2780 = vadd.f32 %v2458, %v2590
      %v2781 = vadd.f32 %v2459, %v2595
      %v2782 = vadd.f32 %v2460, %v2600
      %v2783 = vadd.f32 %v2461, %v2605
      %v2784 = vadd.f32 %v2462, %v2610
      %v2785 = vadd.f32 %v2463, %v2615
      %v2786 = vadd.f32 %v2464, %v2620
      %v2787 = vadd.f32 %v2465, %v2625
      %v2788 = vadd.f32 %v2466, %v2630
      %v2789 = vadd.f32 %v2467, %v2635
      %v2790 = vadd.f32 %v2468, %v2640
      %v2791 = vadd.f32 %v2469, %v2645
      %v2792 = vadd.f32 %v2470, %v2650
      %v2793 = vadd.f32 %v2471, %v2655
      %v2794 = vadd.f32 %v2472, %v2660
      %v2795 = vadd.f32 %v2473, %v2665
      %v2796 = vadd.f32 %v2474, %v2670
      %v2797 = vadd.f32 %v2475, %v2675
      %v2798 = vadd.f32 %v2476, %v2680
      %v2799 = vadd.f32 %v2477, %v2685
      %v2800 = vadd.f32 %v2478, %v2690
      %v2801 = vadd.f32 %v2479, %v2695
      %v2802 = vadd.f32 %v2480, %v2700
      %v2803 = vadd.f32 %v2481, %v2705
      %v2804 = vadd.f32 %v2482, %v2710
      %v2805 = vadd.f32 %v2483, %v2715
      %v2806 = vadd.f32 %v2484, %v2720
      %v2807 = vadd.f32 %v2485, %v2725
      %v2808 = vadd.f32 %v2486, %v2730
      %v2809 = vadd.f32 %v2487, %v2735
      %v2810 = vadd.f32 %v2488, %v2740
      %v2811 = vadd.f32 %v2489, %v2745
      %v2812 = vadd.f32 %v2490, %v2750
      %v2813 = vadd.f32 %v2491, %v2755
      %v2814 = vadd.f32 %v2492, %v2760
      %v2815 = vadd.f32 %v2493, %v2765
      %v2816 = vadd.f32 %v2494, %v2770
      %v2817 = vadd.f32 %v2495, %v2775
      %v2819 = vrot.slane %v217, 2
      %v2820 = vsel %vm268, %v1848, %v2819
      %v2821 = vrot.slane %v218, 2
      %v2822 = vsel %vm268, %v2819, %v2821
      %v2823 = vrot.slane %v219, 2
      %v2824 = vsel %vm268, %v2821, %v2823
      %v2825 = vrot.slane %v220, 2
      %v2826 = vsel %vm268, %v2823, %v2825
      %v2827 = vrot.slane %v221, 2
      %v2828 = vsel %vm268, %v2825, %v2827
      %v2829 = vrot.slane %v225, 4
      %v2830 = vsel %vm352, %v2820, 0
      %v2832 = vsel %vm352, %v2822, 0
      %v2834 = vsel %vm352, %v2824, 0
      %v2836 = vsel %vm352, %v2826, 0
      %v2838 = vsel %vm352, %v2828, 0
      %v2840 = vsel %vm433, %v2829, 0
      %2842 = vmatprep.subr.mxu0 0.0
      %2843 = vmatpush1.msra.mxu0 %v2840
      %2844 = vmatprep.subr.mxu0 0.0
      %2845 = vmatpush1.msra.mxu0 0.0
      %2846 = vmatprep.subr.mxu0 0.0
      %2847 = vmatpush1.msra.mxu0 0.0
      %2848 = vmatprep.subr.mxu0 0.0
      %2849 = vmatpush1.msra.mxu0 0.0
      %2850 = vmatprep.subr.mxu0 0.0
      %2851 = vmatpush1.msra.mxu0 0.0
      %2852 = vmatprep.subr.mxu0 0.0
      %2853 = vmatpush1.msra.mxu0 0.0
      %2854 = vmatprep.subr.mxu0 0.0
      %2855 = vmatpush1.msra.mxu0 0.0
      %2856 = vmatprep.subr.mxu0 0.0
      %2857 = vmatpush1.msra.mxu0 0.0
      %2858 = vmatprep.subr.mxu0 0.0
      %2859 = vmatpush1.msra.mxu0 0.0
      %2860 = vmatprep.subr.mxu0 0.0
      %2861 = vmatpush1.msra.mxu0 0.0
      %2862 = vmatprep.subr.mxu0 0.0
      %2863 = vmatpush1.msra.mxu0 0.0
      %2864 = vmatprep.subr.mxu0 0.0
      %2865 = vmatpush1.msra.mxu0 0.0
      %2866 = vmatprep.subr.mxu0 0.0
      %2867 = vmatpush1.msra.mxu0 0.0
      %2868 = vmatprep.subr.mxu0 0.0
      %2869 = vmatpush1.msra.mxu0 0.0
      %2870 = vmatprep.subr.mxu0 0.0
      %2871 = vmatpush1.msra.mxu0 0.0
      %2872 = vmatprep.subr.mxu0 0.0
      %2873 = vmatpush1.msra.mxu0 0.0
      %2874 = vmatprep.subr.mxu0 0.0
      %2875 = vmatpush1.msra.mxu0 0.0
      %2876 = vmatprep.subr.mxu0 0.0
      %2877 = vmatpush1.msra.mxu0 0.0
      %2878 = vmatprep.subr.mxu0 0.0
      %2879 = vmatpush1.msra.mxu0 0.0
      %2880 = vmatprep.subr.mxu0 0.0
      %2881 = vmatpush1.msra.mxu0 0.0
      %2882 = vmatprep.subr.mxu0 0.0
      %2883 = vmatpush1.msra.mxu0 0.0
      %2884 = vmatprep.subr.mxu0 0.0
      %2885 = vmatpush1.msra.mxu0 0.0
      %2886 = vmatprep.subr.mxu0 0.0
      %2887 = vmatpush1.msra.mxu0 0.0
      %2888 = vmatprep.subr.mxu0 0.0
      %2889 = vmatpush1.msra.mxu0 0.0
      %2890 = vmatprep.subr.mxu0 0.0
      %2891 = vmatpush1.msra.mxu0 0.0
      %2892 = vmatprep.subr.mxu0 0.0
      %2893 = vmatpush1.msra.mxu0 0.0
      %2894 = vmatprep.subr.mxu0 0.0
      %2895 = vmatpush1.msra.mxu0 0.0
      %2896 = vmatprep.subr.mxu0 0.0
      %2897 = vmatpush1.msra.mxu0 0.0
      %2898 = vmatprep.subr.mxu0 0.0
      %2899 = vmatpush1.msra.mxu0 0.0
      %2900 = vmatprep.subr.mxu0 0.0
      %2901 = vmatpush1.msra.mxu0 0.0
      %2902 = vmatprep.subr.mxu0 0.0
      %2903 = vmatpush1.msra.mxu0 0.0
      %2904 = vmatprep.subr.mxu0 0.0
      %2905 = vmatpush1.msra.mxu0 0.0
      %2906 = vmatprep.mubr.f32.mxu0 0.0
      %2907 = vmatmul.mubr.f32.gmra.mrb[0].mxu0 %v373
      %v2908 = vpop.f32.mrb[0].mxu0
      %v2909 = vadd.f32 0.0, %v2908
      %v2910 = vpop.f32.mrb[0].mxu0
      %2911 = vmatprep.mubr.f32.mxu0 0.0
      %2912 = vmatmul.mubr.f32.gmra.mrb[0].mxu0 %v375
      %v2913 = vpop.f32.mrb[0].mxu0
      %v2914 = vadd.f32 0.0, %v2913
      %v2915 = vpop.f32.mrb[0].mxu0
      %2916 = vmatprep.mubr.f32.mxu0 0.0
      %2917 = vmatmul.mubr.f32.gmra.mrb[0].mxu0 %v377
      %v2918 = vpop.f32.mrb[0].mxu0
      %v2919 = vadd.f32 0.0, %v2918
      %v2920 = vpop.f32.mrb[0].mxu0
      %2921 = vmatprep.mubr.f32.mxu0 0.0
      %2922 = vmatmul.mubr.f32.gmra.mrb[0].mxu0 %v379
      %v2923 = vpop.f32.mrb[0].mxu0
      %v2924 = vadd.f32 0.0, %v2923
      %v2925 = vpop.f32.mrb[0].mxu0
      %2926 = vmatprep.mubr.f32.mxu0 0.0
      %2927 = vmatmul.mubr.f32.gmra.mrb[0].mxu0 %v381
      %v2928 = vpop.f32.mrb[0].mxu0
      %v2929 = vadd.f32 0.0, %v2928
      %v2930 = vpop.f32.mrb[0].mxu0
      %2931 = vmatprep.mubr.f32.mxu0 0.0
      %2932 = vmatmul.mubr.f32.gmra.mrb[0].mxu0 %v383
      %v2933 = vpop.f32.mrb[0].mxu0
      %v2934 = vadd.f32 0.0, %v2933
      %v2935 = vpop.f32.mrb[0].mxu0
      %2936 = vmatprep.mubr.f32.mxu0 0.0
      %2937 = vmatmul.mubr.f32.gmra.mrb[0].mxu0 %v385
      %v2938 = vpop.f32.mrb[0].mxu0
      %v2939 = vadd.f32 0.0, %v2938
      %v2940 = vpop.f32.mrb[0].mxu0
      %2941 = vmatprep.mubr.f32.mxu0 0.0
      %2942 = vmatmul.mubr.f32.gmra.mrb[0].mxu0 %v387
      %v2943 = vpop.f32.mrb[0].mxu0
      %v2944 = vadd.f32 0.0, %v2943
      %v2945 = vpop.f32.mrb[0].mxu0
      %2946 = vmatprep.mubr.f32.mxu0 0.0
      %2947 = vmatmul.mubr.f32.gmra.mrb[0].mxu0 %v389
      %v2948 = vpop.f32.mrb[0].mxu0
      %v2949 = vadd.f32 0.0, %v2948
      %v2950 = vpop.f32.mrb[0].mxu0
      %2951 = vmatprep.mubr.f32.mxu0 0.0
      %2952 = vmatmul.mubr.f32.gmra.mrb[0].mxu0 %v391
      %v2953 = vpop.f32.mrb[0].mxu0
      %v2954 = vadd.f32 0.0, %v2953
      %v2955 = vpop.f32.mrb[0].mxu0
      %2956 = vmatprep.mubr.f32.mxu0 0.0
      %2957 = vmatmul.mubr.f32.gmra.mrb[0].mxu0 %v393
      %v2958 = vpop.f32.mrb[0].mxu0
      %v2959 = vadd.f32 0.0, %v2958
      %v2960 = vpop.f32.mrb[0].mxu0
      %2961 = vmatprep.mubr.f32.mxu0 0.0
      %2962 = vmatmul.mubr.f32.gmra.mrb[0].mxu0 %v395
      %v2963 = vpop.f32.mrb[0].mxu0
      %v2964 = vadd.f32 0.0, %v2963
      %v2965 = vpop.f32.mrb[0].mxu0
      %2966 = vmatprep.mubr.f32.mxu0 0.0
      %2967 = vmatmul.mubr.f32.gmra.mrb[0].mxu0 %v397
      %v2968 = vpop.f32.mrb[0].mxu0
      %v2969 = vadd.f32 0.0, %v2968
      %v2970 = vpop.f32.mrb[0].mxu0
      %2971 = vmatprep.mubr.f32.mxu0 0.0
      %2972 = vmatmul.mubr.f32.gmra.mrb[0].mxu0 %v399
      %v2973 = vpop.f32.mrb[0].mxu0
      %v2974 = vadd.f32 0.0, %v2973
      %v2975 = vpop.f32.mrb[0].mxu0
      %2976 = vmatprep.mubr.f32.mxu0 0.0
      %2977 = vmatmul.mubr.f32.gmra.mrb[0].mxu0 %v401
      %v2978 = vpop.f32.mrb[0].mxu0
      %v2979 = vadd.f32 0.0, %v2978
      %v2980 = vpop.f32.mrb[0].mxu0
      %2981 = vmatprep.mubr.f32.mxu0 0.0
      %2982 = vmatmul.mubr.f32.gmra.mrb[0].mxu0 %v403
      %v2983 = vpop.f32.mrb[0].mxu0
      %v2984 = vadd.f32 0.0, %v2983
      %v2985 = vpop.f32.mrb[0].mxu0
      %2986 = vmatprep.mubr.f32.mxu0 0.0
      %2987 = vmatmul.mubr.f32.gmra.mrb[0].mxu0 %v405
      %v2988 = vpop.f32.mrb[0].mxu0
      %v2989 = vadd.f32 0.0, %v2988
      %v2990 = vpop.f32.mrb[0].mxu0
      %2991 = vmatprep.mubr.f32.mxu0 0.0
      %2992 = vmatmul.mubr.f32.gmra.mrb[0].mxu0 %v407
      %v2993 = vpop.f32.mrb[0].mxu0
      %v2994 = vadd.f32 0.0, %v2993
      %v2995 = vpop.f32.mrb[0].mxu0
      %2996 = vmatprep.mubr.f32.mxu0 0.0
      %2997 = vmatmul.mubr.f32.gmra.mrb[0].mxu0 %v409
      %v2998 = vpop.f32.mrb[0].mxu0
      %v2999 = vadd.f32 0.0, %v2998
      %v3000 = vpop.f32.mrb[0].mxu0
      %3001 = vmatprep.mubr.f32.mxu0 0.0
      %3002 = vmatmul.mubr.f32.gmra.mrb[0].mxu0 %v411
      %v3003 = vpop.f32.mrb[0].mxu0
      %v3004 = vadd.f32 0.0, %v3003
      %v3005 = vpop.f32.mrb[0].mxu0
      %3006 = vmatprep.mubr.f32.mxu0 0.0
      %3007 = vmatmul.mubr.f32.gmra.mrb[0].mxu0 %v413
      %v3008 = vpop.f32.mrb[0].mxu0
      %v3009 = vadd.f32 0.0, %v3008
      %v3010 = vpop.f32.mrb[0].mxu0
      %3011 = vmatprep.mubr.f32.mxu0 0.0
      %3012 = vmatmul.mubr.f32.gmra.mrb[0].mxu0 %v415
      %v3013 = vpop.f32.mrb[0].mxu0
      %v3014 = vadd.f32 0.0, %v3013
      %v3015 = vpop.f32.mrb[0].mxu0
      %3016 = vmatprep.mubr.f32.mxu0 0.0
      %3017 = vmatmul.mubr.f32.gmra.mrb[0].mxu0 %v417
      %v3018 = vpop.f32.mrb[0].mxu0
      %v3019 = vadd.f32 0.0, %v3018
      %v3020 = vpop.f32.mrb[0].mxu0
      %3021 = vmatprep.mubr.f32.mxu0 0.0
      %3022 = vmatmul.mubr.f32.gmra.mrb[0].mxu0 %v419
      %v3023 = vpop.f32.mrb[0].mxu0
      %v3024 = vadd.f32 0.0, %v3023
      %v3025 = vpop.f32.mrb[0].mxu0
      %3026 = vmatprep.mubr.f32.mxu0 0.0
      %3027 = vmatmul.mubr.f32.gmra.mrb[0].mxu0 %v421
      %v3028 = vpop.f32.mrb[0].mxu0
      %v3029 = vadd.f32 0.0, %v3028
      %v3030 = vpop.f32.mrb[0].mxu0
      %3031 = vmatprep.mubr.f32.mxu0 0.0
      %3032 = vmatmul.mubr.f32.gmra.mrb[0].mxu0 %v423
      %v3033 = vpop.f32.mrb[0].mxu0
      %v3034 = vadd.f32 0.0, %v3033
      %v3035 = vpop.f32.mrb[0].mxu0
      %3036 = vmatprep.mubr.f32.mxu0 0.0
      %3037 = vmatmul.mubr.f32.gmra.mrb[0].mxu0 %v425
      %v3038 = vpop.f32.mrb[0].mxu0
      %v3039 = vadd.f32 0.0, %v3038
      %v3040 = vpop.f32.mrb[0].mxu0
      %3041 = vmatprep.mubr.f32.mxu0 0.0
      %3042 = vmatmul.mubr.f32.gmra.mrb[0].mxu0 %v427
      %v3043 = vpop.f32.mrb[0].mxu0
      %v3044 = vadd.f32 0.0, %v3043
      %v3045 = vpop.f32.mrb[0].mxu0
      %3046 = vmatprep.mubr.f32.mxu0 0.0
      %3047 = vmatmul.mubr.f32.gmra.mrb[0].mxu0 %v429
      %v3048 = vpop.f32.mrb[0].mxu0
      %v3049 = vadd.f32 0.0, %v3048
      %v3050 = vpop.f32.mrb[0].mxu0
      %3051 = vmatprep.mubr.f32.mxu0 0.0
      %3052 = vmatmul.mubr.f32.gmra.mrb[0].mxu0 %v431
      %v3053 = vpop.f32.mrb[0].mxu0
      %v3054 = vadd.f32 0.0, %v3053
      %v3055 = vpop.f32.mrb[0].mxu0
      %3056 = vmatprep.mubr.f32.mxu0 0.0
      %3057 = vmatmul.mubr.f32.gmra.mrb[0].mxu0 %v1850
      %v3058 = vpop.f32.mrb[0].mxu0
      %v3059 = vadd.f32 0.0, %v3058
      %v3060 = vpop.f32.mrb[0].mxu0
      %3061 = vmatprep.mubr.f32.mxu0 0.0
      %3062 = vmatmul.mubr.f32.gmra.mrb[0].mxu0 %v1852
      %v3063 = vpop.f32.mrb[0].mxu0
      %v3064 = vadd.f32 0.0, %v3063
      %v3065 = vpop.f32.mrb[0].mxu0
      %3066 = vmatprep.mubr.f32.mxu0 0.0
      %3067 = vmatmul.mubr.f32.gmra.mrb[0].mxu0 %v1854
      %v3068 = vpop.f32.mrb[0].mxu0
      %v3069 = vadd.f32 0.0, %v3068
      %v3070 = vpop.f32.mrb[0].mxu0
      %3071 = vmatprep.mubr.f32.mxu0 0.0
      %3072 = vmatmul.mubr.f32.gmra.mrb[0].mxu0 %v1856
      %v3073 = vpop.f32.mrb[0].mxu0
      %v3074 = vadd.f32 0.0, %v3073
      %v3075 = vpop.f32.mrb[0].mxu0
      %3076 = vmatprep.mubr.f32.mxu0 0.0
      %3077 = vmatmul.mubr.f32.gmra.mrb[0].mxu0 %v1858
      %v3078 = vpop.f32.mrb[0].mxu0
      %v3079 = vadd.f32 0.0, %v3078
      %v3080 = vpop.f32.mrb[0].mxu0
      %3081 = vmatprep.mubr.f32.mxu0 0.0
      %3082 = vmatmul.mubr.f32.gmra.mrb[0].mxu0 %v2830
      %v3083 = vpop.f32.mrb[0].mxu0
      %v3084 = vadd.f32 0.0, %v3083
      %v3085 = vpop.f32.mrb[0].mxu0
      %3086 = vmatprep.mubr.f32.mxu0 0.0
      %3087 = vmatmul.mubr.f32.gmra.mrb[0].mxu0 %v2832
      %v3088 = vpop.f32.mrb[0].mxu0
      %v3089 = vadd.f32 0.0, %v3088
      %v3090 = vpop.f32.mrb[0].mxu0
      %3091 = vmatprep.mubr.f32.mxu0 0.0
      %3092 = vmatmul.mubr.f32.gmra.mrb[0].mxu0 %v2834
      %v3093 = vpop.f32.mrb[0].mxu0
      %v3094 = vadd.f32 0.0, %v3093
      %v3095 = vpop.f32.mrb[0].mxu0
      %3096 = vmatprep.mubr.f32.mxu0 0.0
      %3097 = vmatmul.mubr.f32.gmra.mrb[0].mxu0 %v2836
      %v3098 = vpop.f32.mrb[0].mxu0
      %v3099 = vadd.f32 0.0, %v3098
      %v3100 = vpop.f32.mrb[0].mxu0
      %3101 = vmatprep.mubr.f32.mxu0 0.0
      %3102 = vmatmul.mubr.f32.gmra.mrb[0].mxu0 %v2838
      %v3103 = vpop.f32.mrb[0].mxu0
      %v3104 = vadd.f32 0.0, %v3103
      %v3105 = vpop.f32.mrb[0].mxu0
      %3106 = vdwg.mxu0
      %v3107 = vadd.f32 %v2778, %v2909
      %v3108 = vadd.f32 %v2779, %v2914
      %v3109 = vadd.f32 %v2780, %v2919
      %v3110 = vadd.f32 %v2781, %v2924
      %v3111 = vadd.f32 %v2782, %v2929
      %v3112 = vadd.f32 %v2783, %v2934
      %v3113 = vadd.f32 %v2784, %v2939
      %v3114 = vadd.f32 %v2785, %v2944
      %v3115 = vadd.f32 %v2786, %v2949
      %v3116 = vadd.f32 %v2787, %v2954
      %v3117 = vadd.f32 %v2788, %v2959
      %v3118 = vadd.f32 %v2789, %v2964
      %v3119 = vadd.f32 %v2790, %v2969
      %v3120 = vadd.f32 %v2791, %v2974
      %v3121 = vadd.f32 %v2792, %v2979
      %v3122 = vadd.f32 %v2793, %v2984
      %v3123 = vadd.f32 %v2794, %v2989
      %v3124 = vadd.f32 %v2795, %v2994
      %v3125 = vadd.f32 %v2796, %v2999
      %v3126 = vadd.f32 %v2797, %v3004
      %v3127 = vadd.f32 %v2798, %v3009
      %v3128 = vadd.f32 %v2799, %v3014
      %v3129 = vadd.f32 %v2800, %v3019
      %v3130 = vadd.f32 %v2801, %v3024
      %v3131 = vadd.f32 %v2802, %v3029
      %v3132 = vadd.f32 %v2803, %v3034
      %v3133 = vadd.f32 %v2804, %v3039
      %v3134 = vadd.f32 %v2805, %v3044
      %v3135 = vadd.f32 %v2806, %v3049
      %v3136 = vadd.f32 %v2807, %v3054
      %v3137 = vadd.f32 %v2808, %v3059
      %v3138 = vadd.f32 %v2809, %v3064
      %v3139 = vadd.f32 %v2810, %v3069
      %v3140 = vadd.f32 %v2811, %v3074
      %v3141 = vadd.f32 %v2812, %v3079
      %v3142 = vadd.f32 %v2813, %v3084
      %v3143 = vadd.f32 %v2814, %v3089
      %v3144 = vadd.f32 %v2815, %v3094
      %v3145 = vadd.f32 %v2816, %v3099
      %v3146 = vadd.f32 %v2817, %v3104
      %v3147 = vrot.slane %v217, 4
      %v3148 = vsel %vm433, %v2176, %v3147
      %v3149 = vrot.slane %v218, 4
      %v3150 = vsel %vm433, %v3147, %v3149
      %v3151 = vrot.slane %v219, 4
      %v3152 = vsel %vm433, %v3149, %v3151
      %v3153 = vrot.slane %v220, 4
      %v3154 = vsel %vm433, %v3151, %v3153
      %v3155 = vrot.slane %v221, 4
      %v3156 = vsel %vm433, %v3153, %v3155
      %v3157 = vsel %vm352, %v3148, 0
      %v3159 = vsel %vm352, %v3150, 0
      %v3161 = vsel %vm352, %v3152, 0
      %v3163 = vsel %vm352, %v3154, 0
      %v3165 = vsel %vm352, %v3156, 0
      %v3168 = vsel %vm433, %v226, 0
      %3170 = vmatprep.subr.mxu0 0.0
      %3171 = vmatpush1.msra.mxu0 %v3168
      %3172 = vmatprep.subr.mxu0 0.0
      %3173 = vmatpush1.msra.mxu0 0.0
      %3174 = vmatprep.subr.mxu0 0.0
      %3175 = vmatpush1.msra.mxu0 0.0
      %3176 = vmatprep.subr.mxu0 0.0
      %3177 = vmatpush1.msra.mxu0 0.0
      %3178 = vmatprep.subr.mxu0 0.0
      %3179 = vmatpush1.msra.mxu0 0.0
      %3180 = vmatprep.subr.mxu0 0.0
      %3181 = vmatpush1.msra.mxu0 0.0
      %3182 = vmatprep.subr.mxu0 0.0
      %3183 = vmatpush1.msra.mxu0 0.0
      %3184 = vmatprep.subr.mxu0 0.0
      %3185 = vmatpush1.msra.mxu0 0.0
      %3186 = vmatprep.subr.mxu0 0.0
      %3187 = vmatpush1.msra.mxu0 0.0
      %3188 = vmatprep.subr.mxu0 0.0
      %3189 = vmatpush1.msra.mxu0 0.0
      %3190 = vmatprep.subr.mxu0 0.0
      %3191 = vmatpush1.msra.mxu0 0.0
      %3192 = vmatprep.subr.mxu0 0.0
      %3193 = vmatpush1.msra.mxu0 0.0
      %3194 = vmatprep.subr.mxu0 0.0
      %3195 = vmatpush1.msra.mxu0 0.0
      %3196 = vmatprep.subr.mxu0 0.0
      %3197 = vmatpush1.msra.mxu0 0.0
      %3198 = vmatprep.subr.mxu0 0.0
      %3199 = vmatpush1.msra.mxu0 0.0
      %3200 = vmatprep.subr.mxu0 0.0
      %3201 = vmatpush1.msra.mxu0 0.0
      %3202 = vmatprep.subr.mxu0 0.0
      %3203 = vmatpush1.msra.mxu0 0.0
      %3204 = vmatprep.subr.mxu0 0.0
      %3205 = vmatpush1.msra.mxu0 0.0
      %3206 = vmatprep.subr.mxu0 0.0
      %3207 = vmatpush1.msra.mxu0 0.0
      %3208 = vmatprep.subr.mxu0 0.0
      %3209 = vmatpush1.msra.mxu0 0.0
      %3210 = vmatprep.subr.mxu0 0.0
      %3211 = vmatpush1.msra.mxu0 0.0
      %3212 = vmatprep.subr.mxu0 0.0
      %3213 = vmatpush1.msra.mxu0 0.0
      %3214 = vmatprep.subr.mxu0 0.0
      %3215 = vmatpush1.msra.mxu0 0.0
      %3216 = vmatprep.subr.mxu0 0.0
      %3217 = vmatpush1.msra.mxu0 0.0
      %3218 = vmatprep.subr.mxu0 0.0
      %3219 = vmatpush1.msra.mxu0 0.0
      %3220 = vmatprep.subr.mxu0 0.0
      %3221 = vmatpush1.msra.mxu0 0.0
      %3222 = vmatprep.subr.mxu0 0.0
      %3223 = vmatpush1.msra.mxu0 0.0
      %3224 = vmatprep.subr.mxu0 0.0
      %3225 = vmatpush1.msra.mxu0 0.0
      %3226 = vmatprep.subr.mxu0 0.0
      %3227 = vmatpush1.msra.mxu0 0.0
      %3228 = vmatprep.subr.mxu0 0.0
      %3229 = vmatpush1.msra.mxu0 0.0
      %3230 = vmatprep.subr.mxu0 0.0
      %3231 = vmatpush1.msra.mxu0 0.0
      %3232 = vmatprep.subr.mxu0 0.0
      %3233 = vmatpush1.msra.mxu0 0.0
      %3234 = vmatprep.mubr.f32.mxu0 0.0
      %3235 = vmatmul.mubr.f32.gmra.mrb[0].mxu0 %v1149
      %v3236 = vpop.f32.mrb[0].mxu0
      %v3237 = vadd.f32 0.0, %v3236
      %v3238 = vpop.f32.mrb[0].mxu0
      %3239 = vmatprep.mubr.f32.mxu0 0.0
      %3240 = vmatmul.mubr.f32.gmra.mrb[0].mxu0 %v1151
      %v3241 = vpop.f32.mrb[0].mxu0
      %v3242 = vadd.f32 0.0, %v3241
      %v3243 = vpop.f32.mrb[0].mxu0
      %3244 = vmatprep.mubr.f32.mxu0 0.0
      %3245 = vmatmul.mubr.f32.gmra.mrb[0].mxu0 %v1153
      %v3246 = vpop.f32.mrb[0].mxu0
      %v3247 = vadd.f32 0.0, %v3246
      %v3248 = vpop.f32.mrb[0].mxu0
      %3249 = vmatprep.mubr.f32.mxu0 0.0
      %3250 = vmatmul.mubr.f32.gmra.mrb[0].mxu0 %v1155
      %v3251 = vpop.f32.mrb[0].mxu0
      %v3252 = vadd.f32 0.0, %v3251
      %v3253 = vpop.f32.mrb[0].mxu0
      %3254 = vmatprep.mubr.f32.mxu0 0.0
      %3255 = vmatmul.mubr.f32.gmra.mrb[0].mxu0 %v1157
      %v3256 = vpop.f32.mrb[0].mxu0
      %v3257 = vadd.f32 0.0, %v3256
      %v3258 = vpop.f32.mrb[0].mxu0
      %3259 = vmatprep.mubr.f32.mxu0 0.0
      %3260 = vmatmul.mubr.f32.gmra.mrb[0].mxu0 %v1159
      %v3261 = vpop.f32.mrb[0].mxu0
      %v3262 = vadd.f32 0.0, %v3261
      %v3263 = vpop.f32.mrb[0].mxu0
      %3264 = vmatprep.mubr.f32.mxu0 0.0
      %3265 = vmatmul.mubr.f32.gmra.mrb[0].mxu0 %v1161
      %v3266 = vpop.f32.mrb[0].mxu0
      %v3267 = vadd.f32 0.0, %v3266
      %v3268 = vpop.f32.mrb[0].mxu0
      %3269 = vmatprep.mubr.f32.mxu0 0.0
      %3270 = vmatmul.mubr.f32.gmra.mrb[0].mxu0 %v1163
      %v3271 = vpop.f32.mrb[0].mxu0
      %v3272 = vadd.f32 0.0, %v3271
      %v3273 = vpop.f32.mrb[0].mxu0
      %3274 = vmatprep.mubr.f32.mxu0 0.0
      %3275 = vmatmul.mubr.f32.gmra.mrb[0].mxu0 %v1165
      %v3276 = vpop.f32.mrb[0].mxu0
      %v3277 = vadd.f32 0.0, %v3276
      %v3278 = vpop.f32.mrb[0].mxu0
      %3279 = vmatprep.mubr.f32.mxu0 0.0
      %3280 = vmatmul.mubr.f32.gmra.mrb[0].mxu0 %v1167
      %v3281 = vpop.f32.mrb[0].mxu0
      %v3282 = vadd.f32 0.0, %v3281
      %v3283 = vpop.f32.mrb[0].mxu0
      %3284 = vmatprep.mubr.f32.mxu0 0.0
      %3285 = vmatmul.mubr.f32.gmra.mrb[0].mxu0 %v1169
      %v3286 = vpop.f32.mrb[0].mxu0
      %v3287 = vadd.f32 0.0, %v3286
      %v3288 = vpop.f32.mrb[0].mxu0
      %3289 = vmatprep.mubr.f32.mxu0 0.0
      %3290 = vmatmul.mubr.f32.gmra.mrb[0].mxu0 %v1171
      %v3291 = vpop.f32.mrb[0].mxu0
      %v3292 = vadd.f32 0.0, %v3291
      %v3293 = vpop.f32.mrb[0].mxu0
      %3294 = vmatprep.mubr.f32.mxu0 0.0
      %3295 = vmatmul.mubr.f32.gmra.mrb[0].mxu0 %v1173
      %v3296 = vpop.f32.mrb[0].mxu0
      %v3297 = vadd.f32 0.0, %v3296
      %v3298 = vpop.f32.mrb[0].mxu0
      %3299 = vmatprep.mubr.f32.mxu0 0.0
      %3300 = vmatmul.mubr.f32.gmra.mrb[0].mxu0 %v1175
      %v3301 = vpop.f32.mrb[0].mxu0
      %v3302 = vadd.f32 0.0, %v3301
      %v3303 = vpop.f32.mrb[0].mxu0
      %3304 = vmatprep.mubr.f32.mxu0 0.0
      %3305 = vmatmul.mubr.f32.gmra.mrb[0].mxu0 %v1177
      %v3306 = vpop.f32.mrb[0].mxu0
      %v3307 = vadd.f32 0.0, %v3306
      %v3308 = vpop.f32.mrb[0].mxu0
      %3309 = vmatprep.mubr.f32.mxu0 0.0
      %3310 = vmatmul.mubr.f32.gmra.mrb[0].mxu0 %v1179
      %v3311 = vpop.f32.mrb[0].mxu0
      %v3312 = vadd.f32 0.0, %v3311
      %v3313 = vpop.f32.mrb[0].mxu0
      %3314 = vmatprep.mubr.f32.mxu0 0.0
      %3315 = vmatmul.mubr.f32.gmra.mrb[0].mxu0 %v1181
      %v3316 = vpop.f32.mrb[0].mxu0
      %v3317 = vadd.f32 0.0, %v3316
      %v3318 = vpop.f32.mrb[0].mxu0
      %3319 = vmatprep.mubr.f32.mxu0 0.0
      %3320 = vmatmul.mubr.f32.gmra.mrb[0].mxu0 %v1183
      %v3321 = vpop.f32.mrb[0].mxu0
      %v3322 = vadd.f32 0.0, %v3321
      %v3323 = vpop.f32.mrb[0].mxu0
      %3324 = vmatprep.mubr.f32.mxu0 0.0
      %3325 = vmatmul.mubr.f32.gmra.mrb[0].mxu0 %v1185
      %v3326 = vpop.f32.mrb[0].mxu0
      %v3327 = vadd.f32 0.0, %v3326
      %v3328 = vpop.f32.mrb[0].mxu0
      %3329 = vmatprep.mubr.f32.mxu0 0.0
      %3330 = vmatmul.mubr.f32.gmra.mrb[0].mxu0 %v1187
      %v3331 = vpop.f32.mrb[0].mxu0
      %v3332 = vadd.f32 0.0, %v3331
      %v3333 = vpop.f32.mrb[0].mxu0
      %3334 = vmatprep.mubr.f32.mxu0 0.0
      %3335 = vmatmul.mubr.f32.gmra.mrb[0].mxu0 %v1189
      %v3336 = vpop.f32.mrb[0].mxu0
      %v3337 = vadd.f32 0.0, %v3336
      %v3338 = vpop.f32.mrb[0].mxu0
      %3339 = vmatprep.mubr.f32.mxu0 0.0
      %3340 = vmatmul.mubr.f32.gmra.mrb[0].mxu0 %v1191
      %v3341 = vpop.f32.mrb[0].mxu0
      %v3342 = vadd.f32 0.0, %v3341
      %v3343 = vpop.f32.mrb[0].mxu0
      %3344 = vmatprep.mubr.f32.mxu0 0.0
      %3345 = vmatmul.mubr.f32.gmra.mrb[0].mxu0 %v1193
      %v3346 = vpop.f32.mrb[0].mxu0
      %v3347 = vadd.f32 0.0, %v3346
      %v3348 = vpop.f32.mrb[0].mxu0
      %3349 = vmatprep.mubr.f32.mxu0 0.0
      %3350 = vmatmul.mubr.f32.gmra.mrb[0].mxu0 %v1195
      %v3351 = vpop.f32.mrb[0].mxu0
      %v3352 = vadd.f32 0.0, %v3351
      %v3353 = vpop.f32.mrb[0].mxu0
      %3354 = vmatprep.mubr.f32.mxu0 0.0
      %3355 = vmatmul.mubr.f32.gmra.mrb[0].mxu0 %v1197
      %v3356 = vpop.f32.mrb[0].mxu0
      %v3357 = vadd.f32 0.0, %v3356
      %v3358 = vpop.f32.mrb[0].mxu0
      %3359 = vmatprep.mubr.f32.mxu0 0.0
      %3360 = vmatmul.mubr.f32.gmra.mrb[0].mxu0 %v1199
      %v3361 = vpop.f32.mrb[0].mxu0
      %v3362 = vadd.f32 0.0, %v3361
      %v3363 = vpop.f32.mrb[0].mxu0
      %3364 = vmatprep.mubr.f32.mxu0 0.0
      %3365 = vmatmul.mubr.f32.gmra.mrb[0].mxu0 %v1201
      %v3366 = vpop.f32.mrb[0].mxu0
      %v3367 = vadd.f32 0.0, %v3366
      %v3368 = vpop.f32.mrb[0].mxu0
      %3369 = vmatprep.mubr.f32.mxu0 0.0
      %3370 = vmatmul.mubr.f32.gmra.mrb[0].mxu0 %v1203
      %v3371 = vpop.f32.mrb[0].mxu0
      %v3372 = vadd.f32 0.0, %v3371
      %v3373 = vpop.f32.mrb[0].mxu0
      %3374 = vmatprep.mubr.f32.mxu0 0.0
      %3375 = vmatmul.mubr.f32.gmra.mrb[0].mxu0 %v1205
      %v3376 = vpop.f32.mrb[0].mxu0
      %v3377 = vadd.f32 0.0, %v3376
      %v3378 = vpop.f32.mrb[0].mxu0
      %3379 = vmatprep.mubr.f32.mxu0 0.0
      %3380 = vmatmul.mubr.f32.gmra.mrb[0].mxu0 %v1207
      %v3381 = vpop.f32.mrb[0].mxu0
      %v3382 = vadd.f32 0.0, %v3381
      %v3383 = vpop.f32.mrb[0].mxu0
      %3384 = vmatprep.mubr.f32.mxu0 0.0
      %3385 = vmatmul.mubr.f32.gmra.mrb[0].mxu0 %v2179
      %v3386 = vpop.f32.mrb[0].mxu0
      %v3387 = vadd.f32 0.0, %v3386
      %v3388 = vpop.f32.mrb[0].mxu0
      %3389 = vmatprep.mubr.f32.mxu0 0.0
      %3390 = vmatmul.mubr.f32.gmra.mrb[0].mxu0 %v2181
      %v3391 = vpop.f32.mrb[0].mxu0
      %v3392 = vadd.f32 0.0, %v3391
      %v3393 = vpop.f32.mrb[0].mxu0
      %3394 = vmatprep.mubr.f32.mxu0 0.0
      %3395 = vmatmul.mubr.f32.gmra.mrb[0].mxu0 %v2183
      %v3396 = vpop.f32.mrb[0].mxu0
      %v3397 = vadd.f32 0.0, %v3396
      %v3398 = vpop.f32.mrb[0].mxu0
      %3399 = vmatprep.mubr.f32.mxu0 0.0
      %3400 = vmatmul.mubr.f32.gmra.mrb[0].mxu0 %v2185
      %v3401 = vpop.f32.mrb[0].mxu0
      %v3402 = vadd.f32 0.0, %v3401
      %v3403 = vpop.f32.mrb[0].mxu0
      %3404 = vmatprep.mubr.f32.mxu0 0.0
      %3405 = vmatmul.mubr.f32.gmra.mrb[0].mxu0 %v2187
      %v3406 = vpop.f32.mrb[0].mxu0
      %v3407 = vadd.f32 0.0, %v3406
      %v3408 = vpop.f32.mrb[0].mxu0
      %3409 = vmatprep.mubr.f32.mxu0 0.0
      %3410 = vmatmul.mubr.f32.gmra.mrb[0].mxu0 %v3157
      %v3411 = vpop.f32.mrb[0].mxu0
      %v3412 = vadd.f32 0.0, %v3411
      %v3413 = vpop.f32.mrb[0].mxu0
      %3414 = vmatprep.mubr.f32.mxu0 0.0
      %3415 = vmatmul.mubr.f32.gmra.mrb[0].mxu0 %v3159
      %v3416 = vpop.f32.mrb[0].mxu0
      %v3417 = vadd.f32 0.0, %v3416
      %v3418 = vpop.f32.mrb[0].mxu0
      %3419 = vmatprep.mubr.f32.mxu0 0.0
      %3420 = vmatmul.mubr.f32.gmra.mrb[0].mxu0 %v3161
      %v3421 = vpop.f32.mrb[0].mxu0
      %v3422 = vadd.f32 0.0, %v3421
      %v3423 = vpop.f32.mrb[0].mxu0
      %3424 = vmatprep.mubr.f32.mxu0 0.0
      %3425 = vmatmul.mubr.f32.gmra.mrb[0].mxu0 %v3163
      %v3426 = vpop.f32.mrb[0].mxu0
      %v3427 = vadd.f32 0.0, %v3426
      %v3428 = vpop.f32.mrb[0].mxu0
      %3429 = vmatprep.mubr.f32.mxu0 0.0
      %3430 = vmatmul.mubr.f32.gmra.mrb[0].mxu0 %v3165
      %v3431 = vpop.f32.mrb[0].mxu0
      %v3432 = vadd.f32 0.0, %v3431
      %v3433 = vpop.f32.mrb[0].mxu0
      %3434 = vdwg.mxu0
      %v3435 = vadd.f32 %v3107, %v3237
      %v3436 = vadd.f32 %v3108, %v3242
      %v3437 = vadd.f32 %v3109, %v3247
      %v3438 = vadd.f32 %v3110, %v3252
      %v3439 = vadd.f32 %v3111, %v3257
      %v3440 = vadd.f32 %v3112, %v3262
      %v3441 = vadd.f32 %v3113, %v3267
      %v3442 = vadd.f32 %v3114, %v3272
      %v3443 = vadd.f32 %v3115, %v3277
      %v3444 = vadd.f32 %v3116, %v3282
      %v3445 = vadd.f32 %v3117, %v3287
      %v3446 = vadd.f32 %v3118, %v3292
      %v3447 = vadd.f32 %v3119, %v3297
      %v3448 = vadd.f32 %v3120, %v3302
      %v3449 = vadd.f32 %v3121, %v3307
      %v3450 = vadd.f32 %v3122, %v3312
      %v3451 = vadd.f32 %v3123, %v3317
      %v3452 = vadd.f32 %v3124, %v3322
      %v3453 = vadd.f32 %v3125, %v3327
      %v3454 = vadd.f32 %v3126, %v3332
      %v3455 = vadd.f32 %v3127, %v3337
      %v3456 = vadd.f32 %v3128, %v3342
      %v3457 = vadd.f32 %v3129, %v3347
      %v3458 = vadd.f32 %v3130, %v3352
      %v3459 = vadd.f32 %v3131, %v3357
      %v3460 = vadd.f32 %v3132, %v3362
      %v3461 = vadd.f32 %v3133, %v3367
      %v3462 = vadd.f32 %v3134, %v3372
      %v3463 = vadd.f32 %v3135, %v3377
      %v3464 = vadd.f32 %v3136, %v3382
      %v3465 = vadd.f32 %v3137, %v3387
      %v3466 = vadd.f32 %v3138, %v3392
      %v3467 = vadd.f32 %v3139, %v3397
      %v3468 = vadd.f32 %v3140, %v3402
      %v3469 = vadd.f32 %v3141, %v3407
      %v3470 = vadd.f32 %v3142, %v3412
      %v3471 = vadd.f32 %v3143, %v3417
      %v3472 = vadd.f32 %v3144, %v3422
      %v3473 = vadd.f32 %v3145, %v3427
      %v3474 = vadd.f32 %v3146, %v3432
      %v3475 = vld [vmem:[%s2] sm:$0x1]
      %v3477 = vlaneseq
      %v3478 = vshrl.u32 %v3477, 7
      %v3479 = vsub.s32 0, %v3478
      %v3480 = vrot.slane %v3475, %v3479
      %v3482 = vadd.f32 %v3435, %v3480
      %v3483 = vadd.f32 %v3436, %v3480
      %v3484 = vadd.f32 %v3437, %v3480
      %v3485 = vadd.f32 %v3438, %v3480
      %v3486 = vadd.f32 %v3439, %v3480
      %v3487 = vadd.f32 %v3440, %v3480
      %v3488 = vadd.f32 %v3441, %v3480
      %v3489 = vadd.f32 %v3442, %v3480
      %v3490 = vadd.f32 %v3443, %v3480
      %v3491 = vadd.f32 %v3444, %v3480
      %v3492 = vadd.f32 %v3445, %v3480
      %v3493 = vadd.f32 %v3446, %v3480
      %v3494 = vadd.f32 %v3447, %v3480
      %v3495 = vadd.f32 %v3448, %v3480
      %v3496 = vadd.f32 %v3449, %v3480
      %v3497 = vadd.f32 %v3450, %v3480
      %v3498 = vadd.f32 %v3451, %v3480
      %v3499 = vadd.f32 %v3452, %v3480
      %v3500 = vadd.f32 %v3453, %v3480
      %v3501 = vadd.f32 %v3454, %v3480
      %v3502 = vadd.f32 %v3455, %v3480
      %v3503 = vadd.f32 %v3456, %v3480
      %v3504 = vadd.f32 %v3457, %v3480
      %v3505 = vadd.f32 %v3458, %v3480
      %v3506 = vadd.f32 %v3459, %v3480
      %v3507 = vadd.f32 %v3460, %v3480
      %v3508 = vadd.f32 %v3461, %v3480
      %v3509 = vadd.f32 %v3462, %v3480
      %v3510 = vadd.f32 %v3463, %v3480
      %v3511 = vadd.f32 %v3464, %v3480
      %v3512 = vadd.f32 %v3465, %v3480
      %v3513 = vadd.f32 %v3466, %v3480
      %v3514 = vadd.f32 %v3467, %v3480
      %v3515 = vadd.f32 %v3468, %v3480
      %v3516 = vadd.f32 %v3469, %v3480
      %v3517 = vadd.f32 %v3470, %v3480
      %v3518 = vadd.f32 %v3471, %v3480
      %v3519 = vadd.f32 %v3472, %v3480
      %v3520 = vadd.f32 %v3473, %v3480
      %v3521 = vadd.f32 %v3474, %v3480
      %v3522 = vmax.f32 %v3482, 0.0
      %v3523 = vmax.f32 %v3483, 0.0
      %v3524 = vmax.f32 %v3484, 0.0
      %v3525 = vmax.f32 %v3485, 0.0
      %v3526 = vmax.f32 %v3486, 0.0
      %v3527 = vmax.f32 %v3487, 0.0
      %v3528 = vmax.f32 %v3488, 0.0
      %v3529 = vmax.f32 %v3489, 0.0
      %v3530 = vmax.f32 %v3490, 0.0
      %v3531 = vmax.f32 %v3491, 0.0
      %v3532 = vmax.f32 %v3492, 0.0
      %v3533 = vmax.f32 %v3493, 0.0
      %v3534 = vmax.f32 %v3494, 0.0
      %v3535 = vmax.f32 %v3495, 0.0
      %v3536 = vmax.f32 %v3496, 0.0
      %v3537 = vmax.f32 %v3497, 0.0
      %v3538 = vmax.f32 %v3498, 0.0
      %v3539 = vmax.f32 %v3499, 0.0
      %v3540 = vmax.f32 %v3500, 0.0
      %v3541 = vmax.f32 %v3501, 0.0
      %v3542 = vmax.f32 %v3502, 0.0
      %v3543 = vmax.f32 %v3503, 0.0
      %v3544 = vmax.f32 %v3504, 0.0
      %v3545 = vmax.f32 %v3505, 0.0
      %v3546 = vmax.f32 %v3506, 0.0
      %v3547 = vmax.f32 %v3507, 0.0
      %v3548 = vmax.f32 %v3508, 0.0
      %v3549 = vmax.f32 %v3509, 0.0
      %v3550 = vmax.f32 %v3510, 0.0
      %v3551 = vmax.f32 %v3511, 0.0
      %v3552 = vmax.f32 %v3512, 0.0
      %v3553 = vmax.f32 %v3513, 0.0
      %v3554 = vmax.f32 %v3514, 0.0
      %v3555 = vmax.f32 %v3515, 0.0
      %v3556 = vmax.f32 %v3516, 0.0
      %v3557 = vmax.f32 %v3517, 0.0
      %v3558 = vmax.f32 %v3518, 0.0
      %v3559 = vmax.f32 %v3519, 0.0
      %v3560 = vmax.f32 %v3520, 0.0
      %v3561 = vmax.f32 %v3521, 0.0
      %3562 = vst [vmem:[%s170] sm:$0xff] %v3522
      %3563 = vst [vmem:[%s170 + $0x8] sm:$0xff] %v3523
      %3564 = vst [vmem:[%s170 + $0x10] sm:$0xff] %v3524
      %3565 = vst [vmem:[%s170 + $0x18] sm:$0xff] %v3525
      %3566 = vst [vmem:[%s170 + $0x20] sm:$0xff] %v3526
      %3567 = vst [vmem:[%s170 + $0x28] sm:$0xff] %v3527
      %3568 = vst [vmem:[%s170 + $0x30] sm:$0xff] %v3528
      %3569 = vst [vmem:[%s170 + $0x38] sm:$0xff] %v3529
      %3570 = vst [vmem:[%s170 + $0x40] sm:$0xff] %v3530
      %3571 = vst [vmem:[%s170 + $0x48] sm:$0xff] %v3531
      %3572 = vst [vmem:[%s170 + $0x50] sm:$0xff] %v3532
      %3573 = vst [vmem:[%s170 + $0x58] sm:$0xff] %v3533
      %3574 = vst [vmem:[%s170 + $0x60] sm:$0xff] %v3534
      %3575 = vst [vmem:[%s170 + $0x68] sm:$0xff] %v3535
      %3576 = vst [vmem:[%s170 + $0x70] sm:$0xff] %v3536
      %3577 = vst [vmem:[%s170 + $0x78] sm:$0xff] %v3537
      %3578 = vst [vmem:[%s170 + $0x80] sm:$0xff] %v3538
      %3579 = vst [vmem:[%s170 + $0x88] sm:$0xff] %v3539
      %3580 = vst [vmem:[%s170 + $0x90] sm:$0xff] %v3540
      %3581 = vst [vmem:[%s170 + $0x98] sm:$0xff] %v3541
      %3582 = vst [vmem:[%s170 + $0xa0] sm:$0xff] %v3542
      %3583 = vst [vmem:[%s170 + $0xa8] sm:$0xff] %v3543
      %3584 = vst [vmem:[%s170 + $0xb0] sm:$0xff] %v3544
      %3585 = vst [vmem:[%s170 + $0xb8] sm:$0xff] %v3545
      %3586 = vst [vmem:[%s170 + $0xc0] sm:$0xff] %v3546
      %3587 = vst [vmem:[%s170 + $0xc8] sm:$0xff] %v3547
      %3588 = vst [vmem:[%s170 + $0xd0] sm:$0xff] %v3548
      %3589 = vst [vmem:[%s170 + $0xd8] sm:$0xff] %v3549
      %3590 = vst [vmem:[%s170 + $0xe0] sm:$0xff] %v3550
      %3591 = vst [vmem:[%s170 + $0xe8] sm:$0xff] %v3551
      %3592 = vst [vmem:[%s170 + $0xf0] sm:$0xff] %v3552
      %3593 = vst [vmem:[%s170 + $0xf8] sm:$0xff] %v3553
      %3594 = vst [vmem:[%s170 + $0x100] sm:$0xff] %v3554
      %3595 = vst [vmem:[%s170 + $0x108] sm:$0xff] %v3555
      %3596 = vst [vmem:[%s170 + $0x110] sm:$0xff] %v3556
      %3597 = vst [vmem:[%s170 + $0x118] sm:$0xff] %v3557
      %3598 = vst [vmem:[%s170 + $0x120] sm:$0xff] %v3558
      %3599 = vst [vmem:[%s170 + $0x128] sm:$0xff] %v3559
      %3600 = vst [vmem:[%s170 + $0x130] sm:$0xff] %v3560
      %3601 = vst [vmem:[%s170 + $0x138] sm:$0xff] %v3561
      %p3602 = scmp.lt.s32.totalorder %s14, 1
      %s3603 = scalar_select %p3602, %s14, 1
      %s3604 = smul.addr %s3603, 40
      %s3605 = smul.addr %s3604, 8
      %s3606 = scalar_lea.vmem %s3, %s3605
      // Predicated region
      $region33: #{dilated_conv_block.1} parent=31 // pred_check
        %p3607 = pneg %p100
      $region34: #{dilated_conv_block.1} parent=31 // pred_check_branch
        %3609 = sbr.rel (%p3607) target = $region36
      $region35: #{dilated_conv_block.1} parent=31 // pred_region
        _
      $region36: #{dilated_conv_block.1} parent=31 // pred_fallthru
        _
    $region32: #{dilated_conv_block.1} parent=5 // pred_fallthru
      _
    %p3610 = scmp.le.s32.totalorder 2, %s9
    // Predicated region
    $region37: #{dilated_conv_block.1} parent=5 // pred_check
      %p3611 = pneg %p3610
    $region38: #{dilated_conv_block.1} parent=5 // pred_check_branch
      %3613 = sbr.rel (%p3611) target = $region40
    $region39: #{dilated_conv_block.1} parent=5 // pred_region
      %s3614 = ssub.s32 %s9, 2
      // Predicated region
      $region41: #{dilated_conv_block.1} parent=39 // pred_check
        %p3615 = pneg %p106
      $region42: #{dilated_conv_block.1} parent=39 // pred_check_branch
        %3617 = sbr.rel (%p3615) target = $region44
      $region43: #{dilated_conv_block.1} parent=39 // pred_region
        %p3618 = scmp.lt.s32.totalorder %s15, 1
        %s3619 = scalar_select %p3618, %s15, 1
        %s3620 = smul.addr %s3619, 40
        %s3621 = smul.addr %s3620, 8
        %s3622 = scalar_lea.vmem %s3, %s3621
      $region44: #{dilated_conv_block.1} parent=39 // pred_fallthru
        _
    $region40: #{dilated_conv_block.1} parent=5 // pred_fallthru
      _
  $region6: #{dilated_conv_block.1} parent=0 // loop_footer
    %s13 = sadd.s32 1, %s9
  $region7: #{dilated_conv_block.1} parent=0 // loop_footer_branch
    %8 = sbr.rel target = $region3
  $region8: #{dilated_conv_block.1} parent=0 // loop_exit
    _

</llo_original>
